<compile_context>
chip_gen: v6e
topology: v6e:2x2x1
jax: 0.10.0
libtpu: 0.0.40
codegen_flags: <defaults>
</compile_context>

<pallas_src>
import functools

import jax
import jax.numpy as jnp
from jax import lax
from jax.experimental import pallas as pl
from jax.experimental.pallas import tpu as pltpu


# ------------------------------ fused kernel ------------------------------- #
def _fused_attention_kernel(x_ref, wq_ref, wk_ref, wv_ref, wp_ref, bp_ref,
                            o_ref, qkv_ref, attn_ref, *,
                            num_heads, head_dim, n_mt, seq_len, batch_tile):
    """One row-slab (batch_tile * seq_len tokens) per grid step."""
    H, D, N, Bt = num_heads, head_dim, seq_len, batch_tile
    C = H * D

    xb = x_ref[...]                                            # (Bt*N, C) bf16

    # qkv projection: three slab matmuls (f32 accumulation on the MXU), staged
    # into VMEM scratch at 128-aligned lane offsets so only small per-(batch,
    # head) tiles live in vregs afterwards.  Wq already carries softmax scale.
    qkv_ref[:, 0:C] = jnp.dot(xb, wq_ref[...],
                              preferred_element_type=jnp.float32)
    qkv_ref[:, C:2 * C] = jnp.dot(xb, wk_ref[...],
                                  preferred_element_type=jnp.float32)
    qkv_ref[:, 2 * C:3 * C] = jnp.dot(xb, wv_ref[...],
                                      preferred_element_type=jnp.float32)

    # Hoisted masks (built once; JAX does not CSE broadcasts inside loops).
    lane = lax.broadcasted_iota(jnp.int32, (1, C), 1)
    head_f32 = [((lane >= h * D) & (lane < (h + 1) * D)).astype(jnp.float32)
                for h in range(H)]
    head_bf16 = [m.astype(jnp.bfloat16) for m in head_f32]

    rows_i = lax.broadcasted_iota(jnp.int32, (N, N), 0)
    cols_i = lax.broadcasted_iota(jnp.int32, (N, N), 1)
    # template queries (rows < n_mt) must not attend to search keys (>= n_mt)
    tmpl_mask = jnp.where((rows_i < n_mt) & (cols_i >= n_mt),
                          jnp.float32(-1e30), jnp.float32(0.0))

    for b in range(Bt):                          # static unroll, Bt is small
        r0 = b * N                               # N % 8 == 0 -> aligned rows
        qb = qkv_ref[r0:r0 + N, 0:C].astype(jnp.bfloat16)        # (N, C)
        kb = qkv_ref[r0:r0 + N, C:2 * C].astype(jnp.bfloat16)    # (N, C)
        vb = qkv_ref[r0:r0 + N, 2 * C:3 * C].astype(jnp.bfloat16)

        acc = jnp.zeros((N, C), jnp.float32)
        for h in range(H):
            # Per-head scores via full-C contraction with masked q lanes: same
            # MXU cost as a D-wide contraction (K is padded to 128 anyway) but
            # no non-128-aligned lane slices / relayouts.
            s = lax.dot_general(qb * head_bf16[h], kb,
                                (((1,), (1,)), ((), ())),
                                preferred_element_type=jnp.float32)  # (N, N)
            s = s + tmpl_mask
            p = jnp.exp(s - jnp.max(s, axis=-1, keepdims=True))
            p = p * pl.reciprocal(jnp.sum(p, axis=-1, keepdims=True),
                                  approx=True)
            oh = jnp.dot(p.astype(jnp.bfloat16), vb,
                         preferred_element_type=jnp.float32)         # (N, C)
            acc = acc + oh * head_f32[h]          # keep only head-h lanes
        attn_ref[r0:r0 + N, :] = acc              # sublane-aligned f32 store

    # Output projection over the whole slab (+ bias), stored lane-dense.
    out = jnp.dot(attn_ref[...].astype(jnp.bfloat16), wp_ref[...],
                  preferred_element_type=jnp.float32) + bp_ref[...]
    o_ref[...] = out.astype(o_ref.dtype)


# ------------------------------ full forward ------------------------------- #
def attention_forward(x, params, num_heads, t_h, t_w, s_h, s_w, *,
                      batch_tile=None):
    B, N, C = x.shape
    assert C % num_heads == 0
    D = C // num_heads
    scale = D ** (-0.5)
    n_mt = t_h * t_w * 2
    assert N == n_mt + s_h * s_w
    assert N % 8 == 0, "per-batch row blocks must stay sublane aligned"
    assert C % 128 == 0, "keep channels lane-dense (true for real MixFormer)"
    # TODO(synk): pad N to a multiple of 8 for token configs that are not.

    if batch_tile is None:
        # <=2 grid steps: both v7x TensorCores busy; negligible extra per-step
        # cost on single-TC v5e/v6e.  On v5e prefer batch_tile*N ~ mult of 128.
        batch_tile = B // 2 if (B % 2 == 0 and B >= 2) else B
    assert B % batch_tile == 0
    grid_b = B // batch_tile
    rows = batch_tile * N

    # Trace-time parameter prep: fold the softmax scale into Wq, split the
    # fused qkv weight (so the kernel never lane-slices at odd offsets) and
    # cast everything feeding the MXU to bf16 (halves weight/x DMA bytes).
    wqkv = params["qkv_w"]
    wq = (wqkv[:, :C] * scale).astype(jnp.bfloat16)
    wk = wqkv[:, C:2 * C].astype(jnp.bfloat16)
    wv = wqkv[:, 2 * C:].astype(jnp.bfloat16)
    wp = params["proj_w"].astype(jnp.bfloat16)
    bp = params["proj_b"].astype(jnp.float32).reshape(1, C)
    x2 = x.reshape(B * N, C).astype(jnp.bfloat16)     # contiguous reshape

    kern = functools.partial(_fused_attention_kernel,
                             num_heads=num_heads, head_dim=D, n_mt=n_mt,
                             seq_len=N, batch_tile=batch_tile)

    flops = (2 * B * N * C * (3 * C)                  # qkv
             + 2 * B * num_heads * N * N * C * 2      # scores + p@v (masked-C)
             + 2 * B * N * C * C)                     # proj
    cost = pl.CostEstimate(
        flops=flops,
        transcendentals=B * num_heads * N * N,
        bytes_accessed=(B * N * C) * 2 + (4 * C * C) * 2 + C * 4
        + (B * N * C) * 4)

    # TODO(synk): mark the constant-index weight specs pl.Buffered(1) and set
    # vmem_limit_bytes once scaled to real MixFormer widths (multi-MiB weights).
    out = pl.pallas_call(
        kern,
        out_shape=jax.ShapeDtypeStruct((B * N, C), x.dtype),
        grid=(grid_b,),
        in_specs=[
            pl.BlockSpec((rows, C), lambda b: (b, 0)),   # x row-slab per step
            pl.BlockSpec((C, C), lambda b: (0, 0)),      # Wq (scale folded)
            pl.BlockSpec((C, C), lambda b: (0, 0)),      # Wk
            pl.BlockSpec((C, C), lambda b: (0, 0)),      # Wv
            pl.BlockSpec((C, C), lambda b: (0, 0)),      # Wproj
            pl.BlockSpec((1, C), lambda b: (0, 0)),      # proj bias
        ],
        out_specs=pl.BlockSpec((rows, C), lambda b: (b, 0)),
        scratch_shapes=[
            pltpu.VMEM((rows, 3 * C), jnp.float32),      # staged q|k|v
            pltpu.VMEM((rows, C), jnp.float32),          # pre-proj attn out
        ],
        compiler_params=pltpu.CompilerParams(
            dimension_semantics=("parallel",)),
        cost_estimate=cost,
    )(x2, wq, wk, wv, wp, bp)
    return out.reshape(B, N, C)


# --------------------------- pure-JAX reference ----------------------------- #
def attention_reference(x, params, num_heads, t_h, t_w, s_h, s_w):
    B, N, C = x.shape
    D = C // num_heads
    scale = D ** (-0.5)
    n_mt = t_h * t_w * 2

    qkv = x @ params["qkv_w"]                       # qkv_bias=False
    qkv = qkv.reshape(B, N, 3, num_heads, D).transpose(2, 0, 3, 1, 4)
    q, k, v = qkv[0], qkv[1], qkv[2]

    q_mt, q_s = q[:, :, :n_mt], q[:, :, n_mt:]
    k_mt = k[:, :, :n_mt]
    v_mt = v[:, :, :n_mt]

    a_mt = jax.nn.softmax(q_mt @ jnp.swapaxes(k_mt, -2, -1) * scale, axis=-1)
    x_mt = (a_mt @ v_mt).transpose(0, 2, 1, 3).reshape(B, n_mt, C)

    a_s = jax.nn.softmax(q_s @ jnp.swapaxes(k, -2, -1) * scale, axis=-1)
    x_s = (a_s @ v).transpose(0, 2, 1, 3).reshape(B, s_h * s_w, C)

    out = jnp.concatenate([x_mt, x_s], axis=1)
    return out @ params["proj_w"] + params["proj_b"]


# ----------------------------------- main ----------------------------------- #
if __name__ == "__main__":
    B = 8
    C = 128                      # lane-dense channel width (real: 384 / 768)
    num_heads = 4
    t_h = t_w = 2                # template: 2 * t_h * t_w = 8 tokens
    s_h = s_w = 4                # search:   s_h * s_w    = 16 tokens
    N = t_h * t_w * 2 + s_h * s_w   # 24

    key = jax.random.PRNGKey(0)
    kx, kq, kp, kb = jax.random.split(key, 4)

    x = jax.random.normal(kx, (B, N, C), dtype=jnp.float32)

    # deterministic parameter init (qkv_bias=False -> no qkv bias at all)
    params = {
        "qkv_w": jax.random.normal(kq, (C, 3 * C), dtype=jnp.float32) * 0.05,
        "proj_w": jax.random.normal(kp, (C, C), dtype=jnp.float32) * 0.05,
        "proj_b": jax.random.normal(kb, (1, C), dtype=jnp.float32) * 0.05,
    }

    out = attention_forward(x, params, num_heads, t_h, t_w, s_h, s_w)
    out = jax.block_until_ready(out)

    ref = attention_reference(x, params, num_heads, t_h, t_w, s_h, s_w)
    assert out.shape == (B, N, C)
    err = float(jnp.max(jnp.abs(out - ref)))
    # tolerance covers bf16 MXU inputs + approx-reciprocal softmax
    assert jnp.allclose(out, ref, rtol=2e-2, atol=2e-2), err

    print("KERNEL_OK")
</pallas_src>

<mosaic_0001>
module attributes {stable_mosaic.version = 11 : i64} {
  func.func @_fused_attention_kernel(%arg0: i32, %arg1: memref<96x128xbf16, #tpu.memory_space<vmem>>, %arg2: memref<128x128xbf16, #tpu.memory_space<vmem>>, %arg3: memref<128x128xbf16, #tpu.memory_space<vmem>>, %arg4: memref<128x128xbf16, #tpu.memory_space<vmem>>, %arg5: memref<128x128xbf16, #tpu.memory_space<vmem>>, %arg6: memref<1x128xf32, #tpu.memory_space<vmem>>, %arg7: memref<96x128xf32, #tpu.memory_space<vmem>>, %arg8: memref<96x384xf32, #tpu.memory_space<vmem>>, %arg9: memref<96x128xf32, #tpu.memory_space<vmem>>) attributes {dimension_semantics = [#tpu.dimension_semantics<parallel>], iteration_bounds = array<i64: 2>, scalar_prefetch = 0 : i64, scratch_operands = 2 : i64, tpu.core_type = #tpu.core_type<tc>, window_params = [{transform_indices = @transform_0, window_bounds = array<i64: 96, 128>}, {pipeline_mode = #tpu.pipeline_mode<synchronous>, transform_indices = @transform_1, window_bounds = array<i64: 128, 128>}, {pipeline_mode = #tpu.pipeline_mode<synchronous>, transform_indices = @transform_2, window_bounds = array<i64: 128, 128>}, {pipeline_mode = #tpu.pipeline_mode<synchronous>, transform_indices = @transform_3, window_bounds = array<i64: 128, 128>}, {pipeline_mode = #tpu.pipeline_mode<synchronous>, transform_indices = @transform_4, window_bounds = array<i64: 128, 128>}, {pipeline_mode = #tpu.pipeline_mode<synchronous>, transform_indices = @transform_5, window_bounds = array<i64: 1, 128>}, {transform_indices = @transform_6, window_bounds = array<i64: 96, 128>}]} {
    %c0 = arith.constant 0 : index
    %c0_0 = arith.constant 0 : index
    %0 = vector.load %arg1[%c0, %c0_0] : memref<96x128xbf16, #tpu.memory_space<vmem>>, vector<96x128xbf16>
    %c0_1 = arith.constant 0 : index
    %c0_2 = arith.constant 0 : index
    %1 = vector.load %arg2[%c0_1, %c0_2] : memref<128x128xbf16, #tpu.memory_space<vmem>>, vector<128x128xbf16>
    %cst = arith.constant dense<0.000000e+00> : vector<96x128xf32>
    %2 = tpu.matmul %0, %1, %cst {dimension_numbers = #tpu.dot_dimension_numbers<[1], [0], [0], [1], [0, 0, 1, 1], [], []>} : vector<96x128xbf16>, vector<128x128xbf16>, vector<96x128xf32> -> vector<96x128xf32>
    %c0_3 = arith.constant 0 : index
    %c0_4 = arith.constant 0 : index
    %3 = vector.load %arg8[%c0_3, %c0_4] : memref<96x384xf32, #tpu.memory_space<vmem>>, vector<96x128xf32>
    tpu.vector_store %arg8[%c0_3, %c0_4], %2 {strides = array<i32>} : memref<96x384xf32, #tpu.memory_space<vmem>>, vector<96x128xf32>,
    %c0_5 = arith.constant 0 : index
    %c0_6 = arith.constant 0 : index
    %4 = vector.load %arg3[%c0_5, %c0_6] : memref<128x128xbf16, #tpu.memory_space<vmem>>, vector<128x128xbf16>
    %cst_7 = arith.constant dense<0.000000e+00> : vector<96x128xf32>
    %5 = tpu.matmul %0, %4, %cst_7 {dimension_numbers = #tpu.dot_dimension_numbers<[1], [0], [0], [1], [0, 0, 1, 1], [], []>} : vector<96x128xbf16>, vector<128x128xbf16>, vector<96x128xf32> -> vector<96x128xf32>
    %c0_8 = arith.constant 0 : index
    %c128 = arith.constant 128 : index
    %6 = vector.load %arg8[%c0_8, %c128] : memref<96x384xf32, #tpu.memory_space<vmem>>, vector<96x128xf32>
    tpu.vector_store %arg8[%c0_8, %c128], %5 {strides = array<i32>} : memref<96x384xf32, #tpu.memory_space<vmem>>, vector<96x128xf32>,
    %c0_9 = arith.constant 0 : index
    %c0_10 = arith.constant 0 : index
    %7 = vector.load %arg4[%c0_9, %c0_10] : memref<128x128xbf16, #tpu.memory_space<vmem>>, vector<128x128xbf16>
    %cst_11 = arith.constant dense<0.000000e+00> : vector<96x128xf32>
    %8 = tpu.matmul %0, %7, %cst_11 {dimension_numbers = #tpu.dot_dimension_numbers<[1], [0], [0], [1], [0, 0, 1, 1], [], []>} : vector<96x128xbf16>, vector<128x128xbf16>, vector<96x128xf32> -> vector<96x128xf32>
    %c0_12 = arith.constant 0 : index
    %c256 = arith.constant 256 : index
    %9 = vector.load %arg8[%c0_12, %c256] : memref<96x384xf32, #tpu.memory_space<vmem>>, vector<96x128xf32>
    tpu.vector_store %arg8[%c0_12, %c256], %8 {strides = array<i32>} : memref<96x384xf32, #tpu.memory_space<vmem>>, vector<96x128xf32>,
    %10 = tpu.iota {dimensions = array<i32: 1>} : vector<1x128xi32>
    %c0_i32 = arith.constant 0 : i32
    %11 = vector.broadcast %c0_i32 : i32 to vector<1x128xi32>
    %12 = arith.cmpi sge, %10, %11 : vector<1x128xi32>
    %c32_i32 = arith.constant 32 : i32
    %13 = vector.broadcast %c32_i32 : i32 to vector<1x128xi32>
    %14 = arith.cmpi slt, %10, %13 : vector<1x128xi32>
    %15 = arith.andi %12, %14 : vector<1x128xi1>
    %16 = arith.extui %15 : vector<1x128xi1> to vector<1x128xi32>
    %17 = arith.sitofp %16 : vector<1x128xi32> to vector<1x128xf32>
    %c32_i32_13 = arith.constant 32 : i32
    %18 = vector.broadcast %c32_i32_13 : i32 to vector<1x128xi32>
    %19 = arith.cmpi sge, %10, %18 : vector<1x128xi32>
    %c64_i32 = arith.constant 64 : i32
    %20 = vector.broadcast %c64_i32 : i32 to vector<1x128xi32>
    %21 = arith.cmpi slt, %10, %20 : vector<1x128xi32>
    %22 = arith.andi %19, %21 : vector<1x128xi1>
    %23 = arith.extui %22 : vector<1x128xi1> to vector<1x128xi32>
    %24 = arith.sitofp %23 : vector<1x128xi32> to vector<1x128xf32>
    %c64_i32_14 = arith.constant 64 : i32
    %25 = vector.broadcast %c64_i32_14 : i32 to vector<1x128xi32>
    %26 = arith.cmpi sge, %10, %25 : vector<1x128xi32>
    %c96_i32 = arith.constant 96 : i32
    %27 = vector.broadcast %c96_i32 : i32 to vector<1x128xi32>
    %28 = arith.cmpi slt, %10, %27 : vector<1x128xi32>
    %29 = arith.andi %26, %28 : vector<1x128xi1>
    %30 = arith.extui %29 : vector<1x128xi1> to vector<1x128xi32>
    %31 = arith.sitofp %30 : vector<1x128xi32> to vector<1x128xf32>
    %c96_i32_15 = arith.constant 96 : i32
    %32 = vector.broadcast %c96_i32_15 : i32 to vector<1x128xi32>
    %33 = arith.cmpi sge, %10, %32 : vector<1x128xi32>
    %c128_i32 = arith.constant 128 : i32
    %34 = vector.broadcast %c128_i32 : i32 to vector<1x128xi32>
    %35 = arith.cmpi slt, %10, %34 : vector<1x128xi32>
    %36 = arith.andi %33, %35 : vector<1x128xi1>
    %37 = arith.extui %36 : vector<1x128xi1> to vector<1x128xi32>
    %38 = arith.sitofp %37 : vector<1x128xi32> to vector<1x128xf32>
    %39 = arith.truncf %17 : vector<1x128xf32> to vector<1x128xbf16>
    %40 = arith.truncf %24 : vector<1x128xf32> to vector<1x128xbf16>
    %41 = arith.truncf %31 : vector<1x128xf32> to vector<1x128xbf16>
    %42 = arith.truncf %38 : vector<1x128xf32> to vector<1x128xbf16>
    %43 = tpu.iota {dimensions = array<i32: 0>} : vector<24x24xi32>
    %44 = tpu.iota {dimensions = array<i32: 1>} : vector<24x24xi32>
    %c8_i32 = arith.constant 8 : i32
    %45 = vector.broadcast %c8_i32 : i32 to vector<24x24xi32>
    %46 = arith.cmpi slt, %43, %45 : vector<24x24xi32>
    %c8_i32_16 = arith.constant 8 : i32
    %47 = vector.broadcast %c8_i32_16 : i32 to vector<24x24xi32>
    %48 = arith.cmpi sge, %44, %47 : vector<24x24xi32>
    %49 = arith.andi %46, %48 : vector<24x24xi1>
    %cst_17 = arith.constant -1.000000e+30 : f32
    %cst_18 = arith.constant 0.000000e+00 : f32
    %50 = vector.broadcast %cst_17 : f32 to vector<24x24xf32>
    %51 = vector.broadcast %cst_18 : f32 to vector<24x24xf32>
    %52 = arith.select %49, %50, %51 : vector<24x24xi1>, vector<24x24xf32>
    %c0_19 = arith.constant 0 : index
    %c0_20 = arith.constant 0 : index
    %53 = vector.load %arg8[%c0_19, %c0_20] : memref<96x384xf32, #tpu.memory_space<vmem>>, vector<24x128xf32>
    %54 = arith.truncf %53 : vector<24x128xf32> to vector<24x128xbf16>
    %c0_21 = arith.constant 0 : index
    %c128_22 = arith.constant 128 : index
    %55 = vector.load %arg8[%c0_21, %c128_22] : memref<96x384xf32, #tpu.memory_space<vmem>>, vector<24x128xf32>
    %56 = arith.truncf %55 : vector<24x128xf32> to vector<24x128xbf16>
    %c0_23 = arith.constant 0 : index
    %c256_24 = arith.constant 256 : index
    %57 = vector.load %arg8[%c0_23, %c256_24] : memref<96x384xf32, #tpu.memory_space<vmem>>, vector<24x128xf32>
    %58 = arith.truncf %57 : vector<24x128xf32> to vector<24x128xbf16>
    %cst_25 = arith.constant 0.000000e+00 : f32
    %59 = vector.broadcast %cst_25 : f32 to vector<24x128xf32>
    %60 = vector.broadcast %39 : vector<1x128xbf16> to vector<24x128xbf16>
    %61 = arith.mulf %54, %60 : vector<24x128xbf16>
    %cst_26 = arith.constant dense<0.000000e+00> : vector<24x24xf32>
    %62 = tpu.matmul %61, %56, %cst_26 {dimension_numbers = #tpu.dot_dimension_numbers<[1], [1], [0], [0], [0, 0, 1, 0], [], []>} : vector<24x128xbf16>, vector<24x128xbf16>, vector<24x24xf32> -> vector<24x24xf32>
    %63 = arith.addf %62, %52 : vector<24x24xf32>
    %cst_27 = arith.constant dense<0xFF800000> : vector<24xf32>
    %64 = vector.multi_reduction <maximumf>, %63, %cst_27 [1] : vector<24x24xf32> to vector<24xf32>
    %65 = vector.shape_cast %64 : vector<24xf32> to vector<24x1xf32>
    %66 = vector.broadcast %65 : vector<24x1xf32> to vector<24x24xf32>
    %67 = arith.subf %63, %66 : vector<24x24xf32>
    %68 = math.exp %67 : vector<24x24xf32>
    %cst_28 = arith.constant dense<0.000000e+00> : vector<24xf32>
    %69 = vector.multi_reduction <add>, %68, %cst_28 [1] : vector<24x24xf32> to vector<24xf32>
    %70 = vector.shape_cast %69 : vector<24xf32> to vector<24x1xf32>
    %71 = tpu.reciprocal %70 {approx = true} : vector<24x1xf32> -> vector<24x1xf32>
    %72 = vector.broadcast %71 : vector<24x1xf32> to vector<24x24xf32>
    %73 = arith.mulf %68, %72 : vector<24x24xf32>
    %74 = arith.truncf %73 : vector<24x24xf32> to vector<24x24xbf16>
    %cst_29 = arith.constant dense<0.000000e+00> : vector<24x128xf32>
    %75 = tpu.matmul %74, %58, %cst_29 {dimension_numbers = #tpu.dot_dimension_numbers<[1], [0], [0], [1], [0, 0, 1, 1], [], []>} : vector<24x24xbf16>, vector<24x128xbf16>, vector<24x128xf32> -> vector<24x128xf32>
    %76 = vector.broadcast %17 : vector<1x128xf32> to vector<24x128xf32>
    %77 = arith.mulf %75, %76 : vector<24x128xf32>
    %78 = arith.addf %59, %77 : vector<24x128xf32>
    %79 = vector.broadcast %40 : vector<1x128xbf16> to vector<24x128xbf16>
    %80 = arith.mulf %54, %79 : vector<24x128xbf16>
    %cst_30 = arith.constant dense<0.000000e+00> : vector<24x24xf32>
    %81 = tpu.matmul %80, %56, %cst_30 {dimension_numbers = #tpu.dot_dimension_numbers<[1], [1], [0], [0], [0, 0, 1, 0], [], []>} : vector<24x128xbf16>, vector<24x128xbf16>, vector<24x24xf32> -> vector<24x24xf32>
    %82 = arith.addf %81, %52 : vector<24x24xf32>
    %cst_31 = arith.constant dense<0xFF800000> : vector<24xf32>
    %83 = vector.multi_reduction <maximumf>, %82, %cst_31 [1] : vector<24x24xf32> to vector<24xf32>
    %84 = vector.shape_cast %83 : vector<24xf32> to vector<24x1xf32>
    %85 = vector.broadcast %84 : vector<24x1xf32> to vector<24x24xf32>
    %86 = arith.subf %82, %85 : vector<24x24xf32>
    %87 = math.exp %86 : vector<24x24xf32>
    %cst_32 = arith.constant dense<0.000000e+00> : vector<24xf32>
    %88 = vector.multi_reduction <add>, %87, %cst_32 [1] : vector<24x24xf32> to vector<24xf32>
    %89 = vector.shape_cast %88 : vector<24xf32> to vector<24x1xf32>
    %90 = tpu.reciprocal %89 {approx = true} : vector<24x1xf32> -> vector<24x1xf32>
    %91 = vector.broadcast %90 : vector<24x1xf32> to vector<24x24xf32>
    %92 = arith.mulf %87, %91 : vector<24x24xf32>
    %93 = arith.truncf %92 : vector<24x24xf32> to vector<24x24xbf16>
    %cst_33 = arith.constant dense<0.000000e+00> : vector<24x128xf32>
    %94 = tpu.matmul %93, %58, %cst_33 {dimension_numbers = #tpu.dot_dimension_numbers<[1], [0], [0], [1], [0, 0, 1, 1], [], []>} : vector<24x24xbf16>, vector<24x128xbf16>, vector<24x128xf32> -> vector<24x128xf32>
    %95 = vector.broadcast %24 : vector<1x128xf32> to vector<24x128xf32>
    %96 = arith.mulf %94, %95 : vector<24x128xf32>
    %97 = arith.addf %78, %96 : vector<24x128xf32>
    %98 = vector.broadcast %41 : vector<1x128xbf16> to vector<24x128xbf16>
    %99 = arith.mulf %54, %98 : vector<24x128xbf16>
    %cst_34 = arith.constant dense<0.000000e+00> : vector<24x24xf32>
    %100 = tpu.matmul %99, %56, %cst_34 {dimension_numbers = #tpu.dot_dimension_numbers<[1], [1], [0], [0], [0, 0, 1, 0], [], []>} : vector<24x128xbf16>, vector<24x128xbf16>, vector<24x24xf32> -> vector<24x24xf32>
    %101 = arith.addf %100, %52 : vector<24x24xf32>
    %cst_35 = arith.constant dense<0xFF800000> : vector<24xf32>
    %102 = vector.multi_reduction <maximumf>, %101, %cst_35 [1] : vector<24x24xf32> to vector<24xf32>
    %103 = vector.shape_cast %102 : vector<24xf32> to vector<24x1xf32>
    %104 = vector.broadcast %103 : vector<24x1xf32> to vector<24x24xf32>
    %105 = arith.subf %101, %104 : vector<24x24xf32>
    %106 = math.exp %105 : vector<24x24xf32>
    %cst_36 = arith.constant dense<0.000000e+00> : vector<24xf32>
    %107 = vector.multi_reduction <add>, %106, %cst_36 [1] : vector<24x24xf32> to vector<24xf32>
    %108 = vector.shape_cast %107 : vector<24xf32> to vector<24x1xf32>
    %109 = tpu.reciprocal %108 {approx = true} : vector<24x1xf32> -> vector<24x1xf32>
    %110 = vector.broadcast %109 : vector<24x1xf32> to vector<24x24xf32>
    %111 = arith.mulf %106, %110 : vector<24x24xf32>
    %112 = arith.truncf %111 : vector<24x24xf32> to vector<24x24xbf16>
    %cst_37 = arith.constant dense<0.000000e+00> : vector<24x128xf32>
    %113 = tpu.matmul %112, %58, %cst_37 {dimension_numbers = #tpu.dot_dimension_numbers<[1], [0], [0], [1], [0, 0, 1, 1], [], []>} : vector<24x24xbf16>, vector<24x128xbf16>, vector<24x128xf32> -> vector<24x128xf32>
    %114 = vector.broadcast %31 : vector<1x128xf32> to vector<24x128xf32>
    %115 = arith.mulf %113, %114 : vector<24x128xf32>
    %116 = arith.addf %97, %115 : vector<24x128xf32>
    %117 = vector.broadcast %42 : vector<1x128xbf16> to vector<24x128xbf16>
    %118 = arith.mulf %54, %117 : vector<24x128xbf16>
    %cst_38 = arith.constant dense<0.000000e+00> : vector<24x24xf32>
    %119 = tpu.matmul %118, %56, %cst_38 {dimension_numbers = #tpu.dot_dimension_numbers<[1], [1], [0], [0], [0, 0, 1, 0], [], []>} : vector<24x128xbf16>, vector<24x128xbf16>, vector<24x24xf32> -> vector<24x24xf32>
    %120 = arith.addf %119, %52 : vector<24x24xf32>
    %cst_39 = arith.constant dense<0xFF800000> : vector<24xf32>
    %121 = vector.multi_reduction <maximumf>, %120, %cst_39 [1] : vector<24x24xf32> to vector<24xf32>
    %122 = vector.shape_cast %121 : vector<24xf32> to vector<24x1xf32>
    %123 = vector.broadcast %122 : vector<24x1xf32> to vector<24x24xf32>
    %124 = arith.subf %120, %123 : vector<24x24xf32>
    %125 = math.exp %124 : vector<24x24xf32>
    %cst_40 = arith.constant dense<0.000000e+00> : vector<24xf32>
    %126 = vector.multi_reduction <add>, %125, %cst_40 [1] : vector<24x24xf32> to vector<24xf32>
    %127 = vector.shape_cast %126 : vector<24xf32> to vector<24x1xf32>
    %128 = tpu.reciprocal %127 {approx = true} : vector<24x1xf32> -> vector<24x1xf32>
    %129 = vector.broadcast %128 : vector<24x1xf32> to vector<24x24xf32>
    %130 = arith.mulf %125, %129 : vector<24x24xf32>
    %131 = arith.truncf %130 : vector<24x24xf32> to vector<24x24xbf16>
    %cst_41 = arith.constant dense<0.000000e+00> : vector<24x128xf32>
    %132 = tpu.matmul %131, %58, %cst_41 {dimension_numbers = #tpu.dot_dimension_numbers<[1], [0], [0], [1], [0, 0, 1, 1], [], []>} : vector<24x24xbf16>, vector<24x128xbf16>, vector<24x128xf32> -> vector<24x128xf32>
    %133 = vector.broadcast %38 : vector<1x128xf32> to vector<24x128xf32>
    %134 = arith.mulf %132, %133 : vector<24x128xf32>
    %135 = arith.addf %116, %134 : vector<24x128xf32>
    %c0_42 = arith.constant 0 : index
    %c0_43 = arith.constant 0 : index
    %136 = vector.load %arg9[%c0_42, %c0_43] : memref<96x128xf32, #tpu.memory_space<vmem>>, vector<24x128xf32>
    tpu.vector_store %arg9[%c0_42, %c0_43], %135 {strides = array<i32>} : memref<96x128xf32, #tpu.memory_space<vmem>>, vector<24x128xf32>,
    %c24 = arith.constant 24 : index
    %c0_44 = arith.constant 0 : index
    %137 = vector.load %arg8[%c24, %c0_44] : memref<96x384xf32, #tpu.memory_space<vmem>>, vector<24x128xf32>
    %138 = arith.truncf %137 : vector<24x128xf32> to vector<24x128xbf16>
    %c24_45 = arith.constant 24 : index
    %c128_46 = arith.constant 128 : index
    %139 = vector.load %arg8[%c24_45, %c128_46] : memref<96x384xf32, #tpu.memory_space<vmem>>, vector<24x128xf32>
    %140 = arith.truncf %139 : vector<24x128xf32> to vector<24x128xbf16>
    %c24_47 = arith.constant 24 : index
    %c256_48 = arith.constant 256 : index
    %141 = vector.load %arg8[%c24_47, %c256_48] : memref<96x384xf32, #tpu.memory_space<vmem>>, vector<24x128xf32>
    %142 = arith.truncf %141 : vector<24x128xf32> to vector<24x128xbf16>
    %cst_49 = arith.constant 0.000000e+00 : f32
    %143 = vector.broadcast %cst_49 : f32 to vector<24x128xf32>
    %144 = vector.broadcast %39 : vector<1x128xbf16> to vector<24x128xbf16>
    %145 = arith.mulf %138, %144 : vector<24x128xbf16>
    %cst_50 = arith.constant dense<0.000000e+00> : vector<24x24xf32>
    %146 = tpu.matmul %145, %140, %cst_50 {dimension_numbers = #tpu.dot_dimension_numbers<[1], [1], [0], [0], [0, 0, 1, 0], [], []>} : vector<24x128xbf16>, vector<24x128xbf16>, vector<24x24xf32> -> vector<24x24xf32>
    %147 = arith.addf %146, %52 : vector<24x24xf32>
    %cst_51 = arith.constant dense<0xFF800000> : vector<24xf32>
    %148 = vector.multi_reduction <maximumf>, %147, %cst_51 [1] : vector<24x24xf32> to vector<24xf32>
    %149 = vector.shape_cast %148 : vector<24xf32> to vector<24x1xf32>
    %150 = vector.broadcast %149 : vector<24x1xf32> to vector<24x24xf32>
    %151 = arith.subf %147, %150 : vector<24x24xf32>
    %152 = math.exp %151 : vector<24x24xf32>
    %cst_52 = arith.constant dense<0.000000e+00> : vector<24xf32>
    %153 = vector.multi_reduction <add>, %152, %cst_52 [1] : vector<24x24xf32> to vector<24xf32>
    %154 = vector.shape_cast %153 : vector<24xf32> to vector<24x1xf32>
    %155 = tpu.reciprocal %154 {approx = true} : vector<24x1xf32> -> vector<24x1xf32>
    %156 = vector.broadcast %155 : vector<24x1xf32> to vector<24x24xf32>
    %157 = arith.mulf %152, %156 : vector<24x24xf32>
    %158 = arith.truncf %157 : vector<24x24xf32> to vector<24x24xbf16>
    %cst_53 = arith.constant dense<0.000000e+00> : vector<24x128xf32>
    %159 = tpu.matmul %158, %142, %cst_53 {dimension_numbers = #tpu.dot_dimension_numbers<[1], [0], [0], [1], [0, 0, 1, 1], [], []>} : vector<24x24xbf16>, vector<24x128xbf16>, vector<24x128xf32> -> vector<24x128xf32>
    %160 = vector.broadcast %17 : vector<1x128xf32> to vector<24x128xf32>
    %161 = arith.mulf %159, %160 : vector<24x128xf32>
    %162 = arith.addf %143, %161 : vector<24x128xf32>
    %163 = vector.broadcast %40 : vector<1x128xbf16> to vector<24x128xbf16>
    %164 = arith.mulf %138, %163 : vector<24x128xbf16>
    %cst_54 = arith.constant dense<0.000000e+00> : vector<24x24xf32>
    %165 = tpu.matmul %164, %140, %cst_54 {dimension_numbers = #tpu.dot_dimension_numbers<[1], [1], [0], [0], [0, 0, 1, 0], [], []>} : vector<24x128xbf16>, vector<24x128xbf16>, vector<24x24xf32> -> vector<24x24xf32>
    %166 = arith.addf %165, %52 : vector<24x24xf32>
    %cst_55 = arith.constant dense<0xFF800000> : vector<24xf32>
    %167 = vector.multi_reduction <maximumf>, %166, %cst_55 [1] : vector<24x24xf32> to vector<24xf32>
    %168 = vector.shape_cast %167 : vector<24xf32> to vector<24x1xf32>
    %169 = vector.broadcast %168 : vector<24x1xf32> to vector<24x24xf32>
    %170 = arith.subf %166, %169 : vector<24x24xf32>
    %171 = math.exp %170 : vector<24x24xf32>
    %cst_56 = arith.constant dense<0.000000e+00> : vector<24xf32>
    %172 = vector.multi_reduction <add>, %171, %cst_56 [1] : vector<24x24xf32> to vector<24xf32>
    %173 = vector.shape_cast %172 : vector<24xf32> to vector<24x1xf32>
    %174 = tpu.reciprocal %173 {approx = true} : vector<24x1xf32> -> vector<24x1xf32>
    %175 = vector.broadcast %174 : vector<24x1xf32> to vector<24x24xf32>
    %176 = arith.mulf %171, %175 : vector<24x24xf32>
    %177 = arith.truncf %176 : vector<24x24xf32> to vector<24x24xbf16>
    %cst_57 = arith.constant dense<0.000000e+00> : vector<24x128xf32>
    %178 = tpu.matmul %177, %142, %cst_57 {dimension_numbers = #tpu.dot_dimension_numbers<[1], [0], [0], [1], [0, 0, 1, 1], [], []>} : vector<24x24xbf16>, vector<24x128xbf16>, vector<24x128xf32> -> vector<24x128xf32>
    %179 = vector.broadcast %24 : vector<1x128xf32> to vector<24x128xf32>
    %180 = arith.mulf %178, %179 : vector<24x128xf32>
    %181 = arith.addf %162, %180 : vector<24x128xf32>
    %182 = vector.broadcast %41 : vector<1x128xbf16> to vector<24x128xbf16>
    %183 = arith.mulf %138, %182 : vector<24x128xbf16>
    %cst_58 = arith.constant dense<0.000000e+00> : vector<24x24xf32>
    %184 = tpu.matmul %183, %140, %cst_58 {dimension_numbers = #tpu.dot_dimension_numbers<[1], [1], [0], [0], [0, 0, 1, 0], [], []>} : vector<24x128xbf16>, vector<24x128xbf16>, vector<24x24xf32> -> vector<24x24xf32>
    %185 = arith.addf %184, %52 : vector<24x24xf32>
    %cst_59 = arith.constant dense<0xFF800000> : vector<24xf32>
    %186 = vector.multi_reduction <maximumf>, %185, %cst_59 [1] : vector<24x24xf32> to vector<24xf32>
    %187 = vector.shape_cast %186 : vector<24xf32> to vector<24x1xf32>
    %188 = vector.broadcast %187 : vector<24x1xf32> to vector<24x24xf32>
    %189 = arith.subf %185, %188 : vector<24x24xf32>
    %190 = math.exp %189 : vector<24x24xf32>
    %cst_60 = arith.constant dense<0.000000e+00> : vector<24xf32>
    %191 = vector.multi_reduction <add>, %190, %cst_60 [1] : vector<24x24xf32> to vector<24xf32>
    %192 = vector.shape_cast %191 : vector<24xf32> to vector<24x1xf32>
    %193 = tpu.reciprocal %192 {approx = true} : vector<24x1xf32> -> vector<24x1xf32>
    %194 = vector.broadcast %193 : vector<24x1xf32> to vector<24x24xf32>
    %195 = arith.mulf %190, %194 : vector<24x24xf32>
    %196 = arith.truncf %195 : vector<24x24xf32> to vector<24x24xbf16>
    %cst_61 = arith.constant dense<0.000000e+00> : vector<24x128xf32>
    %197 = tpu.matmul %196, %142, %cst_61 {dimension_numbers = #tpu.dot_dimension_numbers<[1], [0], [0], [1], [0, 0, 1, 1], [], []>} : vector<24x24xbf16>, vector<24x128xbf16>, vector<24x128xf32> -> vector<24x128xf32>
    %198 = vector.broadcast %31 : vector<1x128xf32> to vector<24x128xf32>
    %199 = arith.mulf %197, %198 : vector<24x128xf32>
    %200 = arith.addf %181, %199 : vector<24x128xf32>
    %201 = vector.broadcast %42 : vector<1x128xbf16> to vector<24x128xbf16>
    %202 = arith.mulf %138, %201 : vector<24x128xbf16>
    %cst_62 = arith.constant dense<0.000000e+00> : vector<24x24xf32>
    %203 = tpu.matmul %202, %140, %cst_62 {dimension_numbers = #tpu.dot_dimension_numbers<[1], [1], [0], [0], [0, 0, 1, 0], [], []>} : vector<24x128xbf16>, vector<24x128xbf16>, vector<24x24xf32> -> vector<24x24xf32>
    %204 = arith.addf %203, %52 : vector<24x24xf32>
    %cst_63 = arith.constant dense<0xFF800000> : vector<24xf32>
    %205 = vector.multi_reduction <maximumf>, %204, %cst_63 [1] : vector<24x24xf32> to vector<24xf32>
    %206 = vector.shape_cast %205 : vector<24xf32> to vector<24x1xf32>
    %207 = vector.broadcast %206 : vector<24x1xf32> to vector<24x24xf32>
    %208 = arith.subf %204, %207 : vector<24x24xf32>
    %209 = math.exp %208 : vector<24x24xf32>
    %cst_64 = arith.constant dense<0.000000e+00> : vector<24xf32>
    %210 = vector.multi_reduction <add>, %209, %cst_64 [1] : vector<24x24xf32> to vector<24xf32>
    %211 = vector.shape_cast %210 : vector<24xf32> to vector<24x1xf32>
    %212 = tpu.reciprocal %211 {approx = true} : vector<24x1xf32> -> vector<24x1xf32>
    %213 = vector.broadcast %212 : vector<24x1xf32> to vector<24x24xf32>
    %214 = arith.mulf %209, %213 : vector<24x24xf32>
    %215 = arith.truncf %214 : vector<24x24xf32> to vector<24x24xbf16>
    %cst_65 = arith.constant dense<0.000000e+00> : vector<24x128xf32>
    %216 = tpu.matmul %215, %142, %cst_65 {dimension_numbers = #tpu.dot_dimension_numbers<[1], [0], [0], [1], [0, 0, 1, 1], [], []>} : vector<24x24xbf16>, vector<24x128xbf16>, vector<24x128xf32> -> vector<24x128xf32>
    %217 = vector.broadcast %38 : vector<1x128xf32> to vector<24x128xf32>
    %218 = arith.mulf %216, %217 : vector<24x128xf32>
    %219 = arith.addf %200, %218 : vector<24x128xf32>
    %c24_66 = arith.constant 24 : index
    %c0_67 = arith.constant 0 : index
    %220 = vector.load %arg9[%c24_66, %c0_67] : memref<96x128xf32, #tpu.memory_space<vmem>>, vector<24x128xf32>
    tpu.vector_store %arg9[%c24_66, %c0_67], %219 {strides = array<i32>} : memref<96x128xf32, #tpu.memory_space<vmem>>, vector<24x128xf32>,
    %c48 = arith.constant 48 : index
    %c0_68 = arith.constant 0 : index
    %221 = vector.load %arg8[%c48, %c0_68] : memref<96x384xf32, #tpu.memory_space<vmem>>, vector<24x128xf32>
    %222 = arith.truncf %221 : vector<24x128xf32> to vector<24x128xbf16>
    %c48_69 = arith.constant 48 : index
    %c128_70 = arith.constant 128 : index
    %223 = vector.load %arg8[%c48_69, %c128_70] : memref<96x384xf32, #tpu.memory_space<vmem>>, vector<24x128xf32>
    %224 = arith.truncf %223 : vector<24x128xf32> to vector<24x128xbf16>
    %c48_71 = arith.constant 48 : index
    %c256_72 = arith.constant 256 : index
    %225 = vector.load %arg8[%c48_71, %c256_72] : memref<96x384xf32, #tpu.memory_space<vmem>>, vector<24x128xf32>
    %226 = arith.truncf %225 : vector<24x128xf32> to vector<24x128xbf16>
    %cst_73 = arith.constant 0.000000e+00 : f32
    %227 = vector.broadcast %cst_73 : f32 to vector<24x128xf32>
    %228 = vector.broadcast %39 : vector<1x128xbf16> to vector<24x128xbf16>
    %229 = arith.mulf %222, %228 : vector<24x128xbf16>
    %cst_74 = arith.constant dense<0.000000e+00> : vector<24x24xf32>
    %230 = tpu.matmul %229, %224, %cst_74 {dimension_numbers = #tpu.dot_dimension_numbers<[1], [1], [0], [0], [0, 0, 1, 0], [], []>} : vector<24x128xbf16>, vector<24x128xbf16>, vector<24x24xf32> -> vector<24x24xf32>
    %231 = arith.addf %230, %52 : vector<24x24xf32>
    %cst_75 = arith.constant dense<0xFF800000> : vector<24xf32>
    %232 = vector.multi_reduction <maximumf>, %231, %cst_75 [1] : vector<24x24xf32> to vector<24xf32>
    %233 = vector.shape_cast %232 : vector<24xf32> to vector<24x1xf32>
    %234 = vector.broadcast %233 : vector<24x1xf32> to vector<24x24xf32>
    %235 = arith.subf %231, %234 : vector<24x24xf32>
    %236 = math.exp %235 : vector<24x24xf32>
    %cst_76 = arith.constant dense<0.000000e+00> : vector<24xf32>
    %237 = vector.multi_reduction <add>, %236, %cst_76 [1] : vector<24x24xf32> to vector<24xf32>
    %238 = vector.shape_cast %237 : vector<24xf32> to vector<24x1xf32>
    %239 = tpu.reciprocal %238 {approx = true} : vector<24x1xf32> -> vector<24x1xf32>
    %240 = vector.broadcast %239 : vector<24x1xf32> to vector<24x24xf32>
    %241 = arith.mulf %236, %240 : vector<24x24xf32>
    %242 = arith.truncf %241 : vector<24x24xf32> to vector<24x24xbf16>
    %cst_77 = arith.constant dense<0.000000e+00> : vector<24x128xf32>
    %243 = tpu.matmul %242, %226, %cst_77 {dimension_numbers = #tpu.dot_dimension_numbers<[1], [0], [0], [1], [0, 0, 1, 1], [], []>} : vector<24x24xbf16>, vector<24x128xbf16>, vector<24x128xf32> -> vector<24x128xf32>
    %244 = vector.broadcast %17 : vector<1x128xf32> to vector<24x128xf32>
    %245 = arith.mulf %243, %244 : vector<24x128xf32>
    %246 = arith.addf %227, %245 : vector<24x128xf32>
    %247 = vector.broadcast %40 : vector<1x128xbf16> to vector<24x128xbf16>
    %248 = arith.mulf %222, %247 : vector<24x128xbf16>
    %cst_78 = arith.constant dense<0.000000e+00> : vector<24x24xf32>
    %249 = tpu.matmul %248, %224, %cst_78 {dimension_numbers = #tpu.dot_dimension_numbers<[1], [1], [0], [0], [0, 0, 1, 0], [], []>} : vector<24x128xbf16>, vector<24x128xbf16>, vector<24x24xf32> -> vector<24x24xf32>
    %250 = arith.addf %249, %52 : vector<24x24xf32>
    %cst_79 = arith.constant dense<0xFF800000> : vector<24xf32>
    %251 = vector.multi_reduction <maximumf>, %250, %cst_79 [1] : vector<24x24xf32> to vector<24xf32>
    %252 = vector.shape_cast %251 : vector<24xf32> to vector<24x1xf32>
    %253 = vector.broadcast %252 : vector<24x1xf32> to vector<24x24xf32>
    %254 = arith.subf %250, %253 : vector<24x24xf32>
    %255 = math.exp %254 : vector<24x24xf32>
    %cst_80 = arith.constant dense<0.000000e+00> : vector<24xf32>
    %256 = vector.multi_reduction <add>, %255, %cst_80 [1] : vector<24x24xf32> to vector<24xf32>
    %257 = vector.shape_cast %256 : vector<24xf32> to vector<24x1xf32>
    %258 = tpu.reciprocal %257 {approx = true} : vector<24x1xf32> -> vector<24x1xf32>
    %259 = vector.broadcast %258 : vector<24x1xf32> to vector<24x24xf32>
    %260 = arith.mulf %255, %259 : vector<24x24xf32>
    %261 = arith.truncf %260 : vector<24x24xf32> to vector<24x24xbf16>
    %cst_81 = arith.constant dense<0.000000e+00> : vector<24x128xf32>
    %262 = tpu.matmul %261, %226, %cst_81 {dimension_numbers = #tpu.dot_dimension_numbers<[1], [0], [0], [1], [0, 0, 1, 1], [], []>} : vector<24x24xbf16>, vector<24x128xbf16>, vector<24x128xf32> -> vector<24x128xf32>
    %263 = vector.broadcast %24 : vector<1x128xf32> to vector<24x128xf32>
    %264 = arith.mulf %262, %263 : vector<24x128xf32>
    %265 = arith.addf %246, %264 : vector<24x128xf32>
    %266 = vector.broadcast %41 : vector<1x128xbf16> to vector<24x128xbf16>
    %267 = arith.mulf %222, %266 : vector<24x128xbf16>
    %cst_82 = arith.constant dense<0.000000e+00> : vector<24x24xf32>
    %268 = tpu.matmul %267, %224, %cst_82 {dimension_numbers = #tpu.dot_dimension_numbers<[1], [1], [0], [0], [0, 0, 1, 0], [], []>} : vector<24x128xbf16>, vector<24x128xbf16>, vector<24x24xf32> -> vector<24x24xf32>
    %269 = arith.addf %268, %52 : vector<24x24xf32>
    %cst_83 = arith.constant dense<0xFF800000> : vector<24xf32>
    %270 = vector.multi_reduction <maximumf>, %269, %cst_83 [1] : vector<24x24xf32> to vector<24xf32>
    %271 = vector.shape_cast %270 : vector<24xf32> to vector<24x1xf32>
    %272 = vector.broadcast %271 : vector<24x1xf32> to vector<24x24xf32>
    %273 = arith.subf %269, %272 : vector<24x24xf32>
    %274 = math.exp %273 : vector<24x24xf32>
    %cst_84 = arith.constant dense<0.000000e+00> : vector<24xf32>
    %275 = vector.multi_reduction <add>, %274, %cst_84 [1] : vector<24x24xf32> to vector<24xf32>
    %276 = vector.shape_cast %275 : vector<24xf32> to vector<24x1xf32>
    %277 = tpu.reciprocal %276 {approx = true} : vector<24x1xf32> -> vector<24x1xf32>
    %278 = vector.broadcast %277 : vector<24x1xf32> to vector<24x24xf32>
    %279 = arith.mulf %274, %278 : vector<24x24xf32>
    %280 = arith.truncf %279 : vector<24x24xf32> to vector<24x24xbf16>
    %cst_85 = arith.constant dense<0.000000e+00> : vector<24x128xf32>
    %281 = tpu.matmul %280, %226, %cst_85 {dimension_numbers = #tpu.dot_dimension_numbers<[1], [0], [0], [1], [0, 0, 1, 1], [], []>} : vector<24x24xbf16>, vector<24x128xbf16>, vector<24x128xf32> -> vector<24x128xf32>
    %282 = vector.broadcast %31 : vector<1x128xf32> to vector<24x128xf32>
    %283 = arith.mulf %281, %282 : vector<24x128xf32>
    %284 = arith.addf %265, %283 : vector<24x128xf32>
    %285 = vector.broadcast %42 : vector<1x128xbf16> to vector<24x128xbf16>
    %286 = arith.mulf %222, %285 : vector<24x128xbf16>
    %cst_86 = arith.constant dense<0.000000e+00> : vector<24x24xf32>
    %287 = tpu.matmul %286, %224, %cst_86 {dimension_numbers = #tpu.dot_dimension_numbers<[1], [1], [0], [0], [0, 0, 1, 0], [], []>} : vector<24x128xbf16>, vector<24x128xbf16>, vector<24x24xf32> -> vector<24x24xf32>
    %288 = arith.addf %287, %52 : vector<24x24xf32>
    %cst_87 = arith.constant dense<0xFF800000> : vector<24xf32>
    %289 = vector.multi_reduction <maximumf>, %288, %cst_87 [1] : vector<24x24xf32> to vector<24xf32>
    %290 = vector.shape_cast %289 : vector<24xf32> to vector<24x1xf32>
    %291 = vector.broadcast %290 : vector<24x1xf32> to vector<24x24xf32>
    %292 = arith.subf %288, %291 : vector<24x24xf32>
    %293 = math.exp %292 : vector<24x24xf32>
    %cst_88 = arith.constant dense<0.000000e+00> : vector<24xf32>
    %294 = vector.multi_reduction <add>, %293, %cst_88 [1] : vector<24x24xf32> to vector<24xf32>
    %295 = vector.shape_cast %294 : vector<24xf32> to vector<24x1xf32>
    %296 = tpu.reciprocal %295 {approx = true} : vector<24x1xf32> -> vector<24x1xf32>
    %297 = vector.broadcast %296 : vector<24x1xf32> to vector<24x24xf32>
    %298 = arith.mulf %293, %297 : vector<24x24xf32>
    %299 = arith.truncf %298 : vector<24x24xf32> to vector<24x24xbf16>
    %cst_89 = arith.constant dense<0.000000e+00> : vector<24x128xf32>
    %300 = tpu.matmul %299, %226, %cst_89 {dimension_numbers = #tpu.dot_dimension_numbers<[1], [0], [0], [1], [0, 0, 1, 1], [], []>} : vector<24x24xbf16>, vector<24x128xbf16>, vector<24x128xf32> -> vector<24x128xf32>
    %301 = vector.broadcast %38 : vector<1x128xf32> to vector<24x128xf32>
    %302 = arith.mulf %300, %301 : vector<24x128xf32>
    %303 = arith.addf %284, %302 : vector<24x128xf32>
    %c48_90 = arith.constant 48 : index
    %c0_91 = arith.constant 0 : index
    %304 = vector.load %arg9[%c48_90, %c0_91] : memref<96x128xf32, #tpu.memory_space<vmem>>, vector<24x128xf32>
    tpu.vector_store %arg9[%c48_90, %c0_91], %303 {strides = array<i32>} : memref<96x128xf32, #tpu.memory_space<vmem>>, vector<24x128xf32>,
    %c72 = arith.constant 72 : index
    %c0_92 = arith.constant 0 : index
    %305 = vector.load %arg8[%c72, %c0_92] : memref<96x384xf32, #tpu.memory_space<vmem>>, vector<24x128xf32>
    %306 = arith.truncf %305 : vector<24x128xf32> to vector<24x128xbf16>
    %c72_93 = arith.constant 72 : index
    %c128_94 = arith.constant 128 : index
    %307 = vector.load %arg8[%c72_93, %c128_94] : memref<96x384xf32, #tpu.memory_space<vmem>>, vector<24x128xf32>
    %308 = arith.truncf %307 : vector<24x128xf32> to vector<24x128xbf16>
    %c72_95 = arith.constant 72 : index
    %c256_96 = arith.constant 256 : index
    %309 = vector.load %arg8[%c72_95, %c256_96] : memref<96x384xf32, #tpu.memory_space<vmem>>, vector<24x128xf32>
    %310 = arith.truncf %309 : vector<24x128xf32> to vector<24x128xbf16>
    %cst_97 = arith.constant 0.000000e+00 : f32
    %311 = vector.broadcast %cst_97 : f32 to vector<24x128xf32>
    %312 = vector.broadcast %39 : vector<1x128xbf16> to vector<24x128xbf16>
    %313 = arith.mulf %306, %312 : vector<24x128xbf16>
    %cst_98 = arith.constant dense<0.000000e+00> : vector<24x24xf32>
    %314 = tpu.matmul %313, %308, %cst_98 {dimension_numbers = #tpu.dot_dimension_numbers<[1], [1], [0], [0], [0, 0, 1, 0], [], []>} : vector<24x128xbf16>, vector<24x128xbf16>, vector<24x24xf32> -> vector<24x24xf32>
    %315 = arith.addf %314, %52 : vector<24x24xf32>
    %cst_99 = arith.constant dense<0xFF800000> : vector<24xf32>
    %316 = vector.multi_reduction <maximumf>, %315, %cst_99 [1] : vector<24x24xf32> to vector<24xf32>
    %317 = vector.shape_cast %316 : vector<24xf32> to vector<24x1xf32>
    %318 = vector.broadcast %317 : vector<24x1xf32> to vector<24x24xf32>
    %319 = arith.subf %315, %318 : vector<24x24xf32>
    %320 = math.exp %319 : vector<24x24xf32>
    %cst_100 = arith.constant dense<0.000000e+00> : vector<24xf32>
    %321 = vector.multi_reduction <add>, %320, %cst_100 [1] : vector<24x24xf32> to vector<24xf32>
    %322 = vector.shape_cast %321 : vector<24xf32> to vector<24x1xf32>
    %323 = tpu.reciprocal %322 {approx = true} : vector<24x1xf32> -> vector<24x1xf32>
    %324 = vector.broadcast %323 : vector<24x1xf32> to vector<24x24xf32>
    %325 = arith.mulf %320, %324 : vector<24x24xf32>
    %326 = arith.truncf %325 : vector<24x24xf32> to vector<24x24xbf16>
    %cst_101 = arith.constant dense<0.000000e+00> : vector<24x128xf32>
    %327 = tpu.matmul %326, %310, %cst_101 {dimension_numbers = #tpu.dot_dimension_numbers<[1], [0], [0], [1], [0, 0, 1, 1], [], []>} : vector<24x24xbf16>, vector<24x128xbf16>, vector<24x128xf32> -> vector<24x128xf32>
    %328 = vector.broadcast %17 : vector<1x128xf32> to vector<24x128xf32>
    %329 = arith.mulf %327, %328 : vector<24x128xf32>
    %330 = arith.addf %311, %329 : vector<24x128xf32>
    %331 = vector.broadcast %40 : vector<1x128xbf16> to vector<24x128xbf16>
    %332 = arith.mulf %306, %331 : vector<24x128xbf16>
    %cst_102 = arith.constant dense<0.000000e+00> : vector<24x24xf32>
    %333 = tpu.matmul %332, %308, %cst_102 {dimension_numbers = #tpu.dot_dimension_numbers<[1], [1], [0], [0], [0, 0, 1, 0], [], []>} : vector<24x128xbf16>, vector<24x128xbf16>, vector<24x24xf32> -> vector<24x24xf32>
    %334 = arith.addf %333, %52 : vector<24x24xf32>
    %cst_103 = arith.constant dense<0xFF800000> : vector<24xf32>
    %335 = vector.multi_reduction <maximumf>, %334, %cst_103 [1] : vector<24x24xf32> to vector<24xf32>
    %336 = vector.shape_cast %335 : vector<24xf32> to vector<24x1xf32>
    %337 = vector.broadcast %336 : vector<24x1xf32> to vector<24x24xf32>
    %338 = arith.subf %334, %337 : vector<24x24xf32>
    %339 = math.exp %338 : vector<24x24xf32>
    %cst_104 = arith.constant dense<0.000000e+00> : vector<24xf32>
    %340 = vector.multi_reduction <add>, %339, %cst_104 [1] : vector<24x24xf32> to vector<24xf32>
    %341 = vector.shape_cast %340 : vector<24xf32> to vector<24x1xf32>
    %342 = tpu.reciprocal %341 {approx = true} : vector<24x1xf32> -> vector<24x1xf32>
    %343 = vector.broadcast %342 : vector<24x1xf32> to vector<24x24xf32>
    %344 = arith.mulf %339, %343 : vector<24x24xf32>
    %345 = arith.truncf %344 : vector<24x24xf32> to vector<24x24xbf16>
    %cst_105 = arith.constant dense<0.000000e+00> : vector<24x128xf32>
    %346 = tpu.matmul %345, %310, %cst_105 {dimension_numbers = #tpu.dot_dimension_numbers<[1], [0], [0], [1], [0, 0, 1, 1], [], []>} : vector<24x24xbf16>, vector<24x128xbf16>, vector<24x128xf32> -> vector<24x128xf32>
    %347 = vector.broadcast %24 : vector<1x128xf32> to vector<24x128xf32>
    %348 = arith.mulf %346, %347 : vector<24x128xf32>
    %349 = arith.addf %330, %348 : vector<24x128xf32>
    %350 = vector.broadcast %41 : vector<1x128xbf16> to vector<24x128xbf16>
    %351 = arith.mulf %306, %350 : vector<24x128xbf16>
    %cst_106 = arith.constant dense<0.000000e+00> : vector<24x24xf32>
    %352 = tpu.matmul %351, %308, %cst_106 {dimension_numbers = #tpu.dot_dimension_numbers<[1], [1], [0], [0], [0, 0, 1, 0], [], []>} : vector<24x128xbf16>, vector<24x128xbf16>, vector<24x24xf32> -> vector<24x24xf32>
    %353 = arith.addf %352, %52 : vector<24x24xf32>
    %cst_107 = arith.constant dense<0xFF800000> : vector<24xf32>
    %354 = vector.multi_reduction <maximumf>, %353, %cst_107 [1] : vector<24x24xf32> to vector<24xf32>
    %355 = vector.shape_cast %354 : vector<24xf32> to vector<24x1xf32>
    %356 = vector.broadcast %355 : vector<24x1xf32> to vector<24x24xf32>
    %357 = arith.subf %353, %356 : vector<24x24xf32>
    %358 = math.exp %357 : vector<24x24xf32>
    %cst_108 = arith.constant dense<0.000000e+00> : vector<24xf32>
    %359 = vector.multi_reduction <add>, %358, %cst_108 [1] : vector<24x24xf32> to vector<24xf32>
    %360 = vector.shape_cast %359 : vector<24xf32> to vector<24x1xf32>
    %361 = tpu.reciprocal %360 {approx = true} : vector<24x1xf32> -> vector<24x1xf32>
    %362 = vector.broadcast %361 : vector<24x1xf32> to vector<24x24xf32>
    %363 = arith.mulf %358, %362 : vector<24x24xf32>
    %364 = arith.truncf %363 : vector<24x24xf32> to vector<24x24xbf16>
    %cst_109 = arith.constant dense<0.000000e+00> : vector<24x128xf32>
    %365 = tpu.matmul %364, %310, %cst_109 {dimension_numbers = #tpu.dot_dimension_numbers<[1], [0], [0], [1], [0, 0, 1, 1], [], []>} : vector<24x24xbf16>, vector<24x128xbf16>, vector<24x128xf32> -> vector<24x128xf32>
    %366 = vector.broadcast %31 : vector<1x128xf32> to vector<24x128xf32>
    %367 = arith.mulf %365, %366 : vector<24x128xf32>
    %368 = arith.addf %349, %367 : vector<24x128xf32>
    %369 = vector.broadcast %42 : vector<1x128xbf16> to vector<24x128xbf16>
    %370 = arith.mulf %306, %369 : vector<24x128xbf16>
    %cst_110 = arith.constant dense<0.000000e+00> : vector<24x24xf32>
    %371 = tpu.matmul %370, %308, %cst_110 {dimension_numbers = #tpu.dot_dimension_numbers<[1], [1], [0], [0], [0, 0, 1, 0], [], []>} : vector<24x128xbf16>, vector<24x128xbf16>, vector<24x24xf32> -> vector<24x24xf32>
    %372 = arith.addf %371, %52 : vector<24x24xf32>
    %cst_111 = arith.constant dense<0xFF800000> : vector<24xf32>
    %373 = vector.multi_reduction <maximumf>, %372, %cst_111 [1] : vector<24x24xf32> to vector<24xf32>
    %374 = vector.shape_cast %373 : vector<24xf32> to vector<24x1xf32>
    %375 = vector.broadcast %374 : vector<24x1xf32> to vector<24x24xf32>
    %376 = arith.subf %372, %375 : vector<24x24xf32>
    %377 = math.exp %376 : vector<24x24xf32>
    %cst_112 = arith.constant dense<0.000000e+00> : vector<24xf32>
    %378 = vector.multi_reduction <add>, %377, %cst_112 [1] : vector<24x24xf32> to vector<24xf32>
    %379 = vector.shape_cast %378 : vector<24xf32> to vector<24x1xf32>
    %380 = tpu.reciprocal %379 {approx = true} : vector<24x1xf32> -> vector<24x1xf32>
    %381 = vector.broadcast %380 : vector<24x1xf32> to vector<24x24xf32>
    %382 = arith.mulf %377, %381 : vector<24x24xf32>
    %383 = arith.truncf %382 : vector<24x24xf32> to vector<24x24xbf16>
    %cst_113 = arith.constant dense<0.000000e+00> : vector<24x128xf32>
    %384 = tpu.matmul %383, %310, %cst_113 {dimension_numbers = #tpu.dot_dimension_numbers<[1], [0], [0], [1], [0, 0, 1, 1], [], []>} : vector<24x24xbf16>, vector<24x128xbf16>, vector<24x128xf32> -> vector<24x128xf32>
    %385 = vector.broadcast %38 : vector<1x128xf32> to vector<24x128xf32>
    %386 = arith.mulf %384, %385 : vector<24x128xf32>
    %387 = arith.addf %368, %386 : vector<24x128xf32>
    %c72_114 = arith.constant 72 : index
    %c0_115 = arith.constant 0 : index
    %388 = vector.load %arg9[%c72_114, %c0_115] : memref<96x128xf32, #tpu.memory_space<vmem>>, vector<24x128xf32>
    tpu.vector_store %arg9[%c72_114, %c0_115], %387 {strides = array<i32>} : memref<96x128xf32, #tpu.memory_space<vmem>>, vector<24x128xf32>,
    %c0_116 = arith.constant 0 : index
    %c0_117 = arith.constant 0 : index
    %389 = vector.load %arg9[%c0_116, %c0_117] : memref<96x128xf32, #tpu.memory_space<vmem>>, vector<96x128xf32>
    %390 = arith.truncf %389 : vector<96x128xf32> to vector<96x128xbf16>
    %c0_118 = arith.constant 0 : index
    %c0_119 = arith.constant 0 : index
    %391 = vector.load %arg5[%c0_118, %c0_119] : memref<128x128xbf16, #tpu.memory_space<vmem>>, vector<128x128xbf16>
    %cst_120 = arith.constant dense<0.000000e+00> : vector<96x128xf32>
    %392 = tpu.matmul %390, %391, %cst_120 {dimension_numbers = #tpu.dot_dimension_numbers<[1], [0], [0], [1], [0, 0, 1, 1], [], []>} : vector<96x128xbf16>, vector<128x128xbf16>, vector<96x128xf32> -> vector<96x128xf32>
    %c0_121 = arith.constant 0 : index
    %c0_122 = arith.constant 0 : index
    %393 = vector.load %arg6[%c0_121, %c0_122] : memref<1x128xf32, #tpu.memory_space<vmem>>, vector<1x128xf32>
    %394 = vector.broadcast %393 : vector<1x128xf32> to vector<96x128xf32>
    %395 = arith.addf %392, %394 : vector<96x128xf32>
    %c0_123 = arith.constant 0 : index
    %c0_124 = arith.constant 0 : index
    %396 = vector.load %arg7[%c0_123, %c0_124] : memref<96x128xf32, #tpu.memory_space<vmem>>, vector<96x128xf32>
    tpu.vector_store %arg7[%c0_123, %c0_124], %395 {strides = array<i32>} : memref<96x128xf32, #tpu.memory_space<vmem>>, vector<96x128xf32>,
    return
  }
  func.func @transform_0(%arg0: i32) -> (i32, i32) {
    %c0_i32 = arith.constant 0 : i32
    %c0_i32_0 = arith.constant 0 : i32
    return %arg0, %c0_i32 : i32, i32
  }
  func.func @transform_1(%arg0: i32) -> (i32, i32) {
    %c0_i32 = arith.constant 0 : i32
    %c0_i32_0 = arith.constant 0 : i32
    %c0_i32_1 = arith.constant 0 : i32
    return %c0_i32, %c0_i32_0 : i32, i32
  }
  func.func @transform_2(%arg0: i32) -> (i32, i32) {
    %c0_i32 = arith.constant 0 : i32
    %c0_i32_0 = arith.constant 0 : i32
    %c0_i32_1 = arith.constant 0 : i32
    return %c0_i32, %c0_i32_0 : i32, i32
  }
  func.func @transform_3(%arg0: i32) -> (i32, i32) {
    %c0_i32 = arith.constant 0 : i32
    %c0_i32_0 = arith.constant 0 : i32
    %c0_i32_1 = arith.constant 0 : i32
    return %c0_i32, %c0_i32_0 : i32, i32
  }
  func.func @transform_4(%arg0: i32) -> (i32, i32) {
    %c0_i32 = arith.constant 0 : i32
    %c0_i32_0 = arith.constant 0 : i32
    %c0_i32_1 = arith.constant 0 : i32
    return %c0_i32, %c0_i32_0 : i32, i32
  }
  func.func @transform_5(%arg0: i32) -> (i32, i32) {
    %c0_i32 = arith.constant 0 : i32
    %c0_i32_0 = arith.constant 0 : i32
    %c0_i32_1 = arith.constant 0 : i32
    return %c0_i32, %c0_i32_0 : i32, i32
  }
  func.func @transform_6(%arg0: i32) -> (i32, i32) {
    %c0_i32 = arith.constant 0 : i32
    %c0_i32_0 = arith.constant 0 : i32
    return %arg0, %c0_i32 : i32, i32
  }
}

</mosaic_0001>

<llo_original>
// kernel: tpu_custom_call.1
$region0: #{tpu_custom_call.1}
  #allocation0 [shape = 'u32[]', space=smem, size = 0x4, offset = 0x4, fixed_abs, tag = 'smem constant byte address 0x4 - core index']
  #allocation1 [shape = 'u32[144,128]{1,0:T(1,128)}', space=vmem, size = 0x12000, scoped, tag = 'internal scratch']
  #allocation2 [shape = 'f32[96,384]{1,0:T(8,128)}', space=vmem, size = 0x24000, scoped, tag = 'scratch operand']
  #allocation3 [shape = 'f32[96,128]{1,0:T(8,128)}', space=vmem, size = 0xc000, scoped, tag = 'scratch operand']
  %s0 = inlined_call_operand.hbm [shape: bf16[192,128], index: 0, kind: input, shape index: {}]
  %s1 = inlined_call_operand.hbm [shape: bf16[128,128], index: 1, kind: input, shape index: {}]
  %s2 = inlined_call_operand.hbm [shape: bf16[128,128], index: 2, kind: input, shape index: {}]
  %s3 = inlined_call_operand.hbm [shape: bf16[128,128], index: 3, kind: input, shape index: {}]
  %s4 = inlined_call_operand.hbm [shape: bf16[128,128], index: 4, kind: input, shape index: {}]
  %s5 = inlined_call_operand.vmem [shape: f32[1,128], index: 5, kind: input, shape index: {}]
  %s6 = inlined_call_operand.hbm [shape: f32[192,128], index: 6, kind: output, shape index: {}]
  %s7 = sld [smem:[#allocation0]]
  $region77: #{tpu_custom_call.1} parent=0
    _
  %s9 = ssub.s32 1, %s7
  %s10 = scalar_select 0, %s9, %s7
  $region1: #{tpu_custom_call.1} parent=0
    #allocation4 [shape = 'u8[49152]{0}', space=vmem, size = 0xc000, scoped, tag = 'input window, operand 0']
    #allocation5 [shape = 's32[2]{0}', space=sflag, size = 0x8, scoped, tag = 'scoped memory for tpu_custom_call.1']
    #allocation6 [shape = 's32[2]{0}', space=sflag, size = 0x8, scoped, tag = 'scoped memory for tpu_custom_call.1']
    #allocation7 [shape = 'u8[32768]{0}', space=vmem, size = 0x8000, scoped, tag = 'input window, operand 1, single buffered']
    #allocation8 [shape = 's32[1]{0}', space=sflag, size = 0x4, scoped, tag = 'scoped memory for tpu_custom_call.1']
    #allocation9 [shape = 'u8[32768]{0}', space=vmem, size = 0x8000, scoped, tag = 'input window, operand 2, single buffered']
    #allocation10 [shape = 'u8[32768]{0}', space=vmem, size = 0x8000, scoped, tag = 'input window, operand 3, single buffered']
    #allocation11 [shape = 's32[1]{0}', space=sflag, size = 0x4, scoped, tag = 'scoped memory for tpu_custom_call.1']
    #allocation12 [shape = 'u8[32768]{0}', space=vmem, size = 0x8000, scoped, tag = 'input window, operand 4, single buffered']
    #allocation13 [shape = 'u8[98304]{0}', space=vmem, size = 0x18000, scoped, tag = 'output window, operand 0']
    %11 = vsyncpa [#allocation5], 0
    %s12 = scalar_lea.sflag [#allocation5], 1
    %13 = vsyncpa %s12, 0
    %14 = vsyncpa [#allocation8], 0
    %15 = vsyncpa [#allocation11], 0
    %16 = vsyncpa [#allocation6], 0
    %s17 = scalar_lea.sflag [#allocation6], 1
    %18 = vsyncpa %s17, 0
    loop: start=0, step=1, limit=4
    $region2: #{tpu_custom_call.1} parent=1 // loop_pre_header
      _
    $region3: #{tpu_custom_call.1} parent=1 // loop_header
      %s20 = sphi 0, %s24
      %p21 = scmp.ge.s32.totalorder %s20, 4
      %s30 = sphi 0, %s32
      %s33 = sphi 0, %s30
      %s34 = sphi 0, %s33
      %s50 = sphi 0, %s34
      %s54 = sphi 0, %s54
      %s56 = sphi 0, %s54
      %s57 = sphi 0, %s56
      %s71 = sphi 0, %s57
      %s75 = sphi 0, %s75
      %s77 = sphi 0, %s75
      %s78 = sphi 0, %s77
      %s92 = sphi 0, %s78
      %s96 = sphi 0, %s96
      %s98 = sphi 0, %s96
      %s99 = sphi 0, %s98
      %s113 = sphi 0, %s99
      %s117 = sphi 0, %s117
      %s119 = sphi 0, %s117
      %s120 = sphi 0, %s119
      %s134 = sphi 0, %s120
      %s138 = sphi 0, %s138
      %s140 = sphi 0, %s138
      %s141 = sphi 0, %s140
      %s155 = sphi 0, %s141
      %s161 = sphi 0, %s163
      %s164 = sphi 0, %s161
      %s165 = sphi 0, %s164
      %s181 = sphi 0, %s165
    $region4: #{tpu_custom_call.1} parent=1 // loop_header_branch
      %23 = sbr.rel (%p21) target = $region8
    $region5: #{tpu_custom_call.1} parent=1 // loop_body
      %s25 = ssub.s32 %s20, 1
      %s26 = ssub.s32 %s20, 2
      %s27 = sadd.s32 %s20, 1
      %s28 = ssub.s32 %s20, %s27
      %p29 = scmp.eq.s32.totalorder %s28, 0
      %s31 = sadd.s32 %s30, 1
      %s32 = scalar_select %p29, %s30, %s31
      %p35 = pneg %p29
      %p36 = scmp.eq.s32.totalorder %s20, 1
      %p37 = por %p35, %p36
      %p38 = scmp.ne.s32.totalorder %s30, %s33
      %p39 = scmp.eq.s32.totalorder %s20, 0
      %p40 = por %p38, %p39
      %p41 = scmp.ne.s32.totalorder %s30, %s33
      %p42 = scmp.eq.s32.totalorder %s25, 1
      %p43 = por %p41, %p42
      %p44 = scmp.ne.s32.totalorder %s33, %s34
      %p45 = scmp.eq.s32.totalorder %s25, 0
      %p46 = por %p44, %p45
      %p47 = scmp.ne.s32.totalorder %s33, %s34
      %p48 = scmp.eq.s32.totalorder %s26, 1
      %p49 = por %p47, %p48
      %p51 = scmp.ne.s32.totalorder %s34, %s50
      %p52 = scmp.eq.s32.totalorder %s26, 0
      %p53 = por %p51, %p52
      %s55 = sadd.s32 %s54, 1
      %p58 = scmp.eq.s32.totalorder %s20, 1
      %p59 = scmp.ne.s32.totalorder %s54, %s56
      %p60 = scmp.eq.s32.totalorder %s20, 0
      %p61 = por %p59, %p60
      %p62 = scmp.ne.s32.totalorder %s54, %s56
      %p63 = scmp.eq.s32.totalorder %s25, 1
      %p64 = por %p62, %p63
      %p65 = scmp.ne.s32.totalorder %s56, %s57
      %p66 = scmp.eq.s32.totalorder %s25, 0
      %p67 = por %p65, %p66
      %p68 = scmp.ne.s32.totalorder %s56, %s57
      %p69 = scmp.eq.s32.totalorder %s26, 1
      %p70 = por %p68, %p69
      %p72 = scmp.ne.s32.totalorder %s57, %s71
      %p73 = scmp.eq.s32.totalorder %s26, 0
      %p74 = por %p72, %p73
      %s76 = sadd.s32 %s75, 1
      %p79 = scmp.eq.s32.totalorder %s20, 1
      %p80 = scmp.ne.s32.totalorder %s75, %s77
      %p81 = scmp.eq.s32.totalorder %s20, 0
      %p82 = por %p80, %p81
      %p83 = scmp.ne.s32.totalorder %s75, %s77
      %p84 = scmp.eq.s32.totalorder %s25, 1
      %p85 = por %p83, %p84
      %p86 = scmp.ne.s32.totalorder %s77, %s78
      %p87 = scmp.eq.s32.totalorder %s25, 0
      %p88 = por %p86, %p87
      %p89 = scmp.ne.s32.totalorder %s77, %s78
      %p90 = scmp.eq.s32.totalorder %s26, 1
      %p91 = por %p89, %p90
      %p93 = scmp.ne.s32.totalorder %s78, %s92
      %p94 = scmp.eq.s32.totalorder %s26, 0
      %p95 = por %p93, %p94
      %s97 = sadd.s32 %s96, 1
      %p100 = scmp.eq.s32.totalorder %s20, 1
      %p101 = scmp.ne.s32.totalorder %s96, %s98
      %p102 = scmp.eq.s32.totalorder %s20, 0
      %p103 = por %p101, %p102
      %p104 = scmp.ne.s32.totalorder %s96, %s98
      %p105 = scmp.eq.s32.totalorder %s25, 1
      %p106 = por %p104, %p105
      %p107 = scmp.ne.s32.totalorder %s98, %s99
      %p108 = scmp.eq.s32.totalorder %s25, 0
      %p109 = por %p107, %p108
      %p110 = scmp.ne.s32.totalorder %s98, %s99
      %p111 = scmp.eq.s32.totalorder %s26, 1
      %p112 = por %p110, %p111
      %p114 = scmp.ne.s32.totalorder %s99, %s113
      %p115 = scmp.eq.s32.totalorder %s26, 0
      %p116 = por %p114, %p115
      %s118 = sadd.s32 %s117, 1
      %p121 = scmp.eq.s32.totalorder %s20, 1
      %p122 = scmp.ne.s32.totalorder %s117, %s119
      %p123 = scmp.eq.s32.totalorder %s20, 0
      %p124 = por %p122, %p123
      %p125 = scmp.ne.s32.totalorder %s117, %s119
      %p126 = scmp.eq.s32.totalorder %s25, 1
      %p127 = por %p125, %p126
      %p128 = scmp.ne.s32.totalorder %s119, %s120
      %p129 = scmp.eq.s32.totalorder %s25, 0
      %p130 = por %p128, %p129
      %p131 = scmp.ne.s32.totalorder %s119, %s120
      %p132 = scmp.eq.s32.totalorder %s26, 1
      %p133 = por %p131, %p132
      %p135 = scmp.ne.s32.totalorder %s120, %s134
      %p136 = scmp.eq.s32.totalorder %s26, 0
      %p137 = por %p135, %p136
      %s139 = sadd.s32 %s138, 1
      %p142 = scmp.eq.s32.totalorder %s20, 1
      %p143 = scmp.ne.s32.totalorder %s138, %s140
      %p144 = scmp.eq.s32.totalorder %s20, 0
      %p145 = por %p143, %p144
      %p146 = scmp.ne.s32.totalorder %s138, %s140
      %p147 = scmp.eq.s32.totalorder %s25, 1
      %p148 = por %p146, %p147
      %p149 = scmp.ne.s32.totalorder %s140, %s141
      %p150 = scmp.eq.s32.totalorder %s25, 0
      %p151 = por %p149, %p150
      %p152 = scmp.ne.s32.totalorder %s140, %s141
      %p153 = scmp.eq.s32.totalorder %s26, 1
      %p154 = por %p152, %p153
      %p156 = scmp.ne.s32.totalorder %s141, %s155
      %p157 = scmp.eq.s32.totalorder %s26, 0
      %p158 = por %p156, %p157
      %s159 = ssub.s32 %s20, %s27
      %p160 = scmp.eq.s32.totalorder %s159, 0
      %s162 = sadd.s32 %s161, 1
      %s163 = scalar_select %p160, %s161, %s162
      %p166 = pneg %p160
      %p167 = scmp.eq.s32.totalorder %s20, 1
      %p168 = por %p166, %p167
      %p169 = scmp.ne.s32.totalorder %s161, %s164
      %p170 = scmp.eq.s32.totalorder %s20, 0
      %p171 = por %p169, %p170
      %p172 = scmp.ne.s32.totalorder %s161, %s164
      %p173 = scmp.eq.s32.totalorder %s25, 1
      %p174 = por %p172, %p173
      %p175 = scmp.ne.s32.totalorder %s164, %s165
      %p176 = scmp.eq.s32.totalorder %s25, 0
      %p177 = por %p175, %p176
      %p178 = scmp.ne.s32.totalorder %s164, %s165
      %p179 = scmp.eq.s32.totalorder %s26, 1
      %p180 = por %p178, %p179
      %p182 = scmp.ne.s32.totalorder %s165, %s181
      %p183 = scmp.eq.s32.totalorder %s26, 0
      %p184 = por %p182, %p183
      %p185 = scmp.le.s32.totalorder 1, %s20
      %p186 = scmp.lt.s32.totalorder %s20, 3
      %p187 = pnand %p185, %p186
      %p188 = pneg %p187
      // Predicated region
      $region9: #{tpu_custom_call.1} parent=5 // pred_check
        _
      $region10: #{tpu_custom_call.1} parent=5 // pred_check_branch
        %190 = sbr.rel (%p187) target = $region12
      $region11: #{tpu_custom_call.1} parent=5 // pred_region
        %s191 = ssub.s32 %s20, 1
        // Predicated region
        $region13: #{tpu_custom_call.1} parent=11 // pred_check
          %p192 = pneg %p67
        $region14: #{tpu_custom_call.1} parent=11 // pred_check_branch
          %194 = sbr.rel (%p192) target = $region16
        $region15: #{tpu_custom_call.1} parent=11 // pred_region
          %s196 = ssub.s32 1024, 1024
          %197 = vsyncadd [#allocation8], %s196
          %s198 = sshll.u32 [#allocation7], 4
          %s199 = int_to_ptr.vmem [resolvable:$true] %s198
          %204 = dma.hbm_to_vmem [thread:$0]  %s1, 1024, %s199, [#allocation8], 64, 64, 4
        $region16: #{tpu_custom_call.1} parent=11 // pred_fallthru
          _
        // Predicated region
        $region17: #{tpu_custom_call.1} parent=11 // pred_check
          %p205 = pneg %p88
        $region18: #{tpu_custom_call.1} parent=11 // pred_check_branch
          %207 = sbr.rel (%p205) target = $region20
        $region19: #{tpu_custom_call.1} parent=11 // pred_region
          %s209 = ssub.s32 1024, 1024
          %210 = vsyncadd [#allocation8], %s209
          %s211 = sshll.u32 [#allocation9], 4
          %s212 = int_to_ptr.vmem [resolvable:$true] %s211
          %217 = dma.hbm_to_vmem [thread:$0]  %s2, 1024, %s212, [#allocation8], 64, 64, 4
        $region20: #{tpu_custom_call.1} parent=11 // pred_fallthru
          _
        // Predicated region
        $region21: #{tpu_custom_call.1} parent=11 // pred_check
          %p218 = pneg %p109
        $region22: #{tpu_custom_call.1} parent=11 // pred_check_branch
          %220 = sbr.rel (%p218) target = $region24
        $region23: #{tpu_custom_call.1} parent=11 // pred_region
          %s222 = ssub.s32 1024, 1024
          %223 = vsyncadd [#allocation11], %s222
          %s224 = sshll.u32 [#allocation10], 4
          %s225 = int_to_ptr.vmem [resolvable:$true] %s224
          %230 = dma.hbm_to_vmem [thread:$0]  %s3, 1024, %s225, [#allocation11], 64, 64, 4
        $region24: #{tpu_custom_call.1} parent=11 // pred_fallthru
          _
        // Predicated region
        $region25: #{tpu_custom_call.1} parent=11 // pred_check
          %p231 = pneg %p130
        $region26: #{tpu_custom_call.1} parent=11 // pred_check_branch
          %233 = sbr.rel (%p231) target = $region28
        $region27: #{tpu_custom_call.1} parent=11 // pred_region
          %s235 = ssub.s32 1024, 1024
          %236 = vsyncadd [#allocation11], %s235
          %s237 = sshll.u32 [#allocation12], 4
          %s238 = int_to_ptr.vmem [resolvable:$true] %s237
          %243 = dma.hbm_to_vmem [thread:$0]  %s4, 1024, %s238, [#allocation11], 64, 64, 4
        $region28: #{tpu_custom_call.1} parent=11 // pred_fallthru
          _
        // Predicated region
        $region29: #{tpu_custom_call.1} parent=11 // pred_check
          %p244 = pneg %p151
        $region30: #{tpu_custom_call.1} parent=11 // pred_check_branch
          %246 = sbr.rel (%p244) target = $region32
        $region31: #{tpu_custom_call.1} parent=11 // pred_region
          _
        $region32: #{tpu_custom_call.1} parent=11 // pred_fallthru
          _
      $region12: #{tpu_custom_call.1} parent=5 // pred_fallthru
        _
      %p247 = scmp.lt.s32.totalorder %s20, 2
      // Predicated region
      $region33: #{tpu_custom_call.1} parent=5 // pred_check
        %p248 = pneg %p247
      $region34: #{tpu_custom_call.1} parent=5 // pred_check_branch
        %250 = sbr.rel (%p248) target = $region36
      $region35: #{tpu_custom_call.1} parent=5 // pred_region
        // Predicated region
        $region37: #{tpu_custom_call.1} parent=35 // pred_check
          %p251 = pneg %p40
        $region38: #{tpu_custom_call.1} parent=35 // pred_check_branch
          %253 = sbr.rel (%p251) target = $region40
        $region39: #{tpu_custom_call.1} parent=35 // pred_region
          %s254 = sand.u32 %s30, 1
          %s255 = scalar_lea.sflag [#allocation5], %s254
          %s256 = sand.u32 %s30, 1
          %s257 = smul.addr %s256, 48
          %s258 = scalar_lea.vmem [#allocation4], %s257
          %s259 = smul.u32 12, %s20
          %s261 = ssub.s32 768, 768
          %262 = vsyncadd %s255, %s261
          %s263 = smul.addr %s259, 64
          %s264 = scalar_lea.hbm %s0, %s263
          %s265 = sshll.u32 %s258, 4
          %s266 = int_to_ptr.vmem [resolvable:$true] %s265
          %271 = dma.hbm_to_vmem [thread:$0]  %s264, 768, %s266, %s255, 64, 64, 4
        $region40: #{tpu_custom_call.1} parent=35 // pred_fallthru
          _
      $region36: #{tpu_custom_call.1} parent=5 // pred_fallthru
        _
      %p272 = scmp.le.s32.totalorder 1, %s20
      %p273 = scmp.lt.s32.totalorder %s20, 3
      %p274 = pnand %p272, %p273
      %p275 = pneg %p274
      // Predicated region
      $region41: #{tpu_custom_call.1} parent=5 // pred_check
        _
      $region42: #{tpu_custom_call.1} parent=5 // pred_check_branch
        %277 = sbr.rel (%p274) target = $region44
      $region43: #{tpu_custom_call.1} parent=5 // pred_region
        %s278 = ssub.s32 %s20, 1
        %s279 = sand.u32 %s33, 1
        %s280 = scalar_lea.sflag [#allocation5], %s279
        %s281 = sand.u32 %s33, 1
        %s282 = smul.addr %s281, 48
        %s283 = scalar_lea.vmem [#allocation4], %s282
        // Predicated region
        $region45: #{tpu_custom_call.1} parent=43 // pred_check
          %p284 = pneg %p46
        $region46: #{tpu_custom_call.1} parent=43 // pred_check_branch
          %286 = sbr.rel (%p284) target = $region48
        $region47: #{tpu_custom_call.1} parent=43 // pred_region
          %287 = dma.done %s280, 768
        $region48: #{tpu_custom_call.1} parent=43 // pred_fallthru
          _
        // Predicated region
        $region49: #{tpu_custom_call.1} parent=43 // pred_check
          %p288 = pneg %p67
        $region50: #{tpu_custom_call.1} parent=43 // pred_check_branch
          %290 = sbr.rel (%p288) target = $region52
        $region51: #{tpu_custom_call.1} parent=43 // pred_region
          %291 = dma.done [#allocation8], 1024
        $region52: #{tpu_custom_call.1} parent=43 // pred_fallthru
          _
        // Predicated region
        $region53: #{tpu_custom_call.1} parent=43 // pred_check
          %p292 = pneg %p88
        $region54: #{tpu_custom_call.1} parent=43 // pred_check_branch
          %294 = sbr.rel (%p292) target = $region56
        $region55: #{tpu_custom_call.1} parent=43 // pred_region
          %295 = dma.done [#allocation8], 1024
        $region56: #{tpu_custom_call.1} parent=43 // pred_fallthru
          _
        // Predicated region
        $region57: #{tpu_custom_call.1} parent=43 // pred_check
          %p296 = pneg %p109
        $region58: #{tpu_custom_call.1} parent=43 // pred_check_branch
          %298 = sbr.rel (%p296) target = $region60
        $region59: #{tpu_custom_call.1} parent=43 // pred_region
          %299 = dma.done [#allocation11], 1024
        $region60: #{tpu_custom_call.1} parent=43 // pred_fallthru
          _
        // Predicated region
        $region61: #{tpu_custom_call.1} parent=43 // pred_check
          %p300 = pneg %p130
        $region62: #{tpu_custom_call.1} parent=43 // pred_check_branch
          %302 = sbr.rel (%p300) target = $region64
        $region63: #{tpu_custom_call.1} parent=43 // pred_region
          %303 = dma.done [#allocation11], 1024
        $region64: #{tpu_custom_call.1} parent=43 // pred_fallthru
          _
        %s304 = sand.u32 %s33, 1
        %s305 = scalar_lea.sflag [#allocation5], %s304
        %s306 = sand.u32 %s33, 1
        %s307 = smul.addr %s306, 48
        %s308 = scalar_lea.vmem [#allocation4], %s307
        %p309 = pneg %p46
        %p310 = pneg %p43
        %p311 = pneg %p67
        %p312 = pneg %p64
        %p313 = pneg %p88
        %p314 = pneg %p85
        %p315 = pneg %p109
        %p316 = pneg %p106
        %p317 = pneg %p130
        %p318 = pneg %p127
        %p319 = pneg %p151
        %p320 = pneg %p148
        %p321 = pneg %p177
        %p322 = pneg %p174
        %s323 = sand.u32 %s164, 1
        %s324 = scalar_lea.sflag [#allocation6], %s323
        %s325 = sand.u32 %s164, 1
        %s326 = smul.addr %s325, 96
        %s327 = scalar_lea.vmem [#allocation13], %s326
        %s328 = smul.u32 12, %s25
        %s329 = smul.u32 12, %s25
        %v331 = vld [vmem:[%s283] sm:$0xf]
        %v332 = vld [vmem:[%s283 + $0x4] sm:$0xf]
        %v333 = vld [vmem:[%s283 + $0x8] sm:$0xf]
        %v334 = vld [vmem:[%s283 + $0xc] sm:$0xf]
        %v335 = vld [vmem:[%s283 + $0x10] sm:$0xf]
        %v336 = vld [vmem:[%s283 + $0x14] sm:$0xf]
        %v337 = vld [vmem:[%s283 + $0x18] sm:$0xf]
        %v338 = vld [vmem:[%s283 + $0x1c] sm:$0xf]
        %v339 = vld [vmem:[%s283 + $0x20] sm:$0xf]
        %v340 = vld [vmem:[%s283 + $0x24] sm:$0xf]
        %v341 = vld [vmem:[%s283 + $0x28] sm:$0xf]
        %v342 = vld [vmem:[%s283 + $0x2c] sm:$0xf]
        %v343 = vld [vmem:[#allocation7] sm:$0xf]
        %v344 = vld [vmem:[#allocation7 + $0x4] sm:$0xf]
        %v345 = vld [vmem:[#allocation7 + $0x8] sm:$0xf]
        %v346 = vld [vmem:[#allocation7 + $0xc] sm:$0xf]
        %v347 = vld [vmem:[#allocation7 + $0x10] sm:$0xf]
        %v348 = vld [vmem:[#allocation7 + $0x14] sm:$0xf]
        %v349 = vld [vmem:[#allocation7 + $0x18] sm:$0xf]
        %v350 = vld [vmem:[#allocation7 + $0x1c] sm:$0xf]
        %v351 = vld [vmem:[#allocation7 + $0x20] sm:$0xf]
        %v352 = vld [vmem:[#allocation7 + $0x24] sm:$0xf]
        %v353 = vld [vmem:[#allocation7 + $0x28] sm:$0xf]
        %v354 = vld [vmem:[#allocation7 + $0x2c] sm:$0xf]
        %v355 = vld [vmem:[#allocation7 + $0x30] sm:$0xf]
        %v356 = vld [vmem:[#allocation7 + $0x34] sm:$0xf]
        %v357 = vld [vmem:[#allocation7 + $0x38] sm:$0xf]
        %v358 = vld [vmem:[#allocation7 + $0x3c] sm:$0xf]
        %v371 = vunpack.c.l.b16 %v331
        %v372 = vunpack.c.l.b16 %v332
        %v373 = vunpack.c.l.b16 %v333
        %v374 = vunpack.c.l.b16 %v334
        %v375 = vunpack.c.l.b16 %v335
        %v376 = vunpack.c.l.b16 %v336
        %v377 = vunpack.c.l.b16 %v337
        %v378 = vunpack.c.l.b16 %v338
        %v379 = vunpack.c.l.b16 %v339
        %v380 = vunpack.c.l.b16 %v340
        %v381 = vunpack.c.l.b16 %v341
        %v382 = vunpack.c.l.b16 %v342
        %v383 = vpack.c.b16 %v372, %v371
        %v384 = vpack.c.b16 %v374, %v373
        %v385 = vpack.c.b16 %v376, %v375
        %v386 = vpack.c.b16 %v378, %v377
        %v387 = vpack.c.b16 %v380, %v379
        %v388 = vpack.c.b16 %v382, %v381
        %v411 = vunpack.c.l.b16 %v343
        %v412 = vunpack.c.l.b16 %v344
        %v413 = vunpack.c.l.b16 %v345
        %v414 = vunpack.c.l.b16 %v346
        %v415 = vunpack.c.l.b16 %v347
        %v416 = vunpack.c.l.b16 %v348
        %v417 = vunpack.c.l.b16 %v349
        %v418 = vunpack.c.l.b16 %v350
        %v419 = vunpack.c.l.b16 %v351
        %v420 = vunpack.c.l.b16 %v352
        %v421 = vunpack.c.l.b16 %v353
        %v422 = vunpack.c.l.b16 %v354
        %v423 = vunpack.c.l.b16 %v355
        %v424 = vunpack.c.l.b16 %v356
        %v425 = vunpack.c.l.b16 %v357
        %v426 = vunpack.c.l.b16 %v358
        %v427 = vpack.c.b16 %v412, %v411
        %v428 = vpack.c.b16 %v414, %v413
        %v429 = vpack.c.b16 %v416, %v415
        %v430 = vpack.c.b16 %v418, %v417
        %v431 = vpack.c.b16 %v420, %v419
        %v432 = vpack.c.b16 %v422, %v421
        %v433 = vpack.c.b16 %v424, %v423
        %v434 = vpack.c.b16 %v426, %v425
        %443 = vmatprep.subr.bf16.mxu0 0
        %444 = vmatpush1.bf16.msra.mxu0 %v434
        %445 = vmatprep.subr.bf16.mxu0 0
        %446 = vmatpush1.bf16.msra.mxu0 %v433
        %447 = vmatprep.subr.bf16.mxu0 0
        %448 = vmatpush1.bf16.msra.mxu0 %v432
        %449 = vmatprep.subr.bf16.mxu0 0
        %450 = vmatpush1.bf16.msra.mxu0 %v431
        %451 = vmatprep.subr.bf16.mxu0 0
        %452 = vmatpush1.bf16.msra.mxu0 %v430
        %453 = vmatprep.subr.bf16.mxu0 0
        %454 = vmatpush1.bf16.msra.mxu0 %v429
        %455 = vmatprep.subr.bf16.mxu0 0
        %456 = vmatpush1.bf16.msra.mxu0 %v428
        %457 = vmatprep.subr.bf16.mxu0 0
        %458 = vmatpush1.bf16.msra.mxu0 %v427
        %459 = vmatprep.subr.bf16.mxu0 0
        %460 = vmatpush2.bf16.msra.mxu0 0
        %461 = vmatprep.subr.bf16.mxu0 0
        %462 = vmatpush2.bf16.msra.mxu0 0
        %463 = vmatprep.subr.bf16.mxu0 0
        %464 = vmatpush2.bf16.msra.mxu0 0
        %465 = vmatprep.subr.bf16.mxu0 0
        %466 = vmatpush2.bf16.msra.mxu0 0
        %467 = vmatprep.subr.bf16.mxu0 0
        %468 = vmatpush2.bf16.msra.mxu0 0
        %469 = vmatprep.subr.bf16.mxu0 0
        %470 = vmatpush2.bf16.msra.mxu0 0
        %471 = vmatprep.subr.bf16.mxu0 0
        %472 = vmatpush2.bf16.msra.mxu0 0
        %473 = vmatprep.subr.bf16.mxu0 0
        %474 = vmatpush2.bf16.msra.mxu0 0
        %475 = vmatprep.mubr.bf16.mxu0 0
        %476 = vmatmul.mubr.bf16.gmra.mxu0 %v383
        %v477 = vpop.f32.mrf.mxu0
        %v478 = vadd.f32 0.0, %v477
        %v479 = vpop.f32.mrf.mxu0
        %v480 = vpop.f32.mrf.mxu0
        %v481 = vadd.f32 0.0, %v480
        %v482 = vpop.f32.mrf.mxu0
        %483 = vmatprep.mubr.bf16.mxu0 0
        %484 = vmatmul.mubr.bf16.gmra.mxu0 %v384
        %v485 = vpop.f32.mrf.mxu0
        %v486 = vadd.f32 0.0, %v485
        %v487 = vpop.f32.mrf.mxu0
        %v488 = vpop.f32.mrf.mxu0
        %v489 = vadd.f32 0.0, %v488
        %v490 = vpop.f32.mrf.mxu0
        %491 = vmatprep.mubr.bf16.mxu0 0
        %492 = vmatmul.mubr.bf16.gmra.mxu0 %v385
        %v493 = vpop.f32.mrf.mxu0
        %v494 = vadd.f32 0.0, %v493
        %v495 = vpop.f32.mrf.mxu0
        %v496 = vpop.f32.mrf.mxu0
        %v497 = vadd.f32 0.0, %v496
        %v498 = vpop.f32.mrf.mxu0
        %499 = vmatprep.mubr.bf16.mxu0 0
        %500 = vmatmul.mubr.bf16.gmra.mxu0 %v386
        %v501 = vpop.f32.mrf.mxu0
        %v502 = vadd.f32 0.0, %v501
        %v503 = vpop.f32.mrf.mxu0
        %v504 = vpop.f32.mrf.mxu0
        %v505 = vadd.f32 0.0, %v504
        %v506 = vpop.f32.mrf.mxu0
        %507 = vmatprep.mubr.bf16.mxu0 0
        %508 = vmatmul.mubr.bf16.gmra.mxu0 %v387
        %v509 = vpop.f32.mrf.mxu0
        %v510 = vadd.f32 0.0, %v509
        %v511 = vpop.f32.mrf.mxu0
        %v512 = vpop.f32.mrf.mxu0
        %v513 = vadd.f32 0.0, %v512
        %v514 = vpop.f32.mrf.mxu0
        %515 = vmatprep.mubr.bf16.mxu0 0
        %516 = vmatmul.mubr.bf16.gmra.mxu0 %v388
        %v517 = vpop.f32.mrf.mxu0
        %v518 = vadd.f32 0.0, %v517
        %v519 = vpop.f32.mrf.mxu0
        %v520 = vpop.f32.mrf.mxu0
        %v521 = vadd.f32 0.0, %v520
        %v522 = vpop.f32.mrf.mxu0
        %523 = vdwg.mxu0
        %524 = vst [vmem:[#allocation2] sm:$0xff] %v478
        %525 = vst [vmem:[#allocation2 + $0x18] sm:$0xff] %v481
        %526 = vst [vmem:[#allocation2 + $0x30] sm:$0xff] %v486
        %527 = vst [vmem:[#allocation2 + $0x48] sm:$0xff] %v489
        %528 = vst [vmem:[#allocation2 + $0x60] sm:$0xff] %v494
        %529 = vst [vmem:[#allocation2 + $0x78] sm:$0xff] %v497
        %530 = vst [vmem:[#allocation2 + $0x90] sm:$0xff] %v502
        %531 = vst [vmem:[#allocation2 + $0xa8] sm:$0xff] %v505
        %532 = vst [vmem:[#allocation2 + $0xc0] sm:$0xff] %v510
        %533 = vst [vmem:[#allocation2 + $0xd8] sm:$0xff] %v513
        %534 = vst [vmem:[#allocation2 + $0xf0] sm:$0xff] %v518
        %535 = vst [vmem:[#allocation2 + $0x108] sm:$0xff] %v521
        %v536 = vld [vmem:[#allocation9] sm:$0xf]
        %v537 = vld [vmem:[#allocation9 + $0x4] sm:$0xf]
        %v538 = vld [vmem:[#allocation9 + $0x8] sm:$0xf]
        %v539 = vld [vmem:[#allocation9 + $0xc] sm:$0xf]
        %v540 = vld [vmem:[#allocation9 + $0x10] sm:$0xf]
        %v541 = vld [vmem:[#allocation9 + $0x14] sm:$0xf]
        %v542 = vld [vmem:[#allocation9 + $0x18] sm:$0xf]
        %v543 = vld [vmem:[#allocation9 + $0x1c] sm:$0xf]
        %v544 = vld [vmem:[#allocation9 + $0x20] sm:$0xf]
        %v545 = vld [vmem:[#allocation9 + $0x24] sm:$0xf]
        %v546 = vld [vmem:[#allocation9 + $0x28] sm:$0xf]
        %v547 = vld [vmem:[#allocation9 + $0x2c] sm:$0xf]
        %v548 = vld [vmem:[#allocation9 + $0x30] sm:$0xf]
        %v549 = vld [vmem:[#allocation9 + $0x34] sm:$0xf]
        %v550 = vld [vmem:[#allocation9 + $0x38] sm:$0xf]
        %v551 = vld [vmem:[#allocation9 + $0x3c] sm:$0xf]
        %v568 = vunpack.c.l.b16 %v536
        %v569 = vunpack.c.l.b16 %v537
        %v570 = vunpack.c.l.b16 %v538
        %v571 = vunpack.c.l.b16 %v539
        %v572 = vunpack.c.l.b16 %v540
        %v573 = vunpack.c.l.b16 %v541
        %v574 = vunpack.c.l.b16 %v542
        %v575 = vunpack.c.l.b16 %v543
        %v576 = vunpack.c.l.b16 %v544
        %v577 = vunpack.c.l.b16 %v545
        %v578 = vunpack.c.l.b16 %v546
        %v579 = vunpack.c.l.b16 %v547
        %v580 = vunpack.c.l.b16 %v548
        %v581 = vunpack.c.l.b16 %v549
        %v582 = vunpack.c.l.b16 %v550
        %v583 = vunpack.c.l.b16 %v551
        %v584 = vpack.c.b16 %v569, %v568
        %v585 = vpack.c.b16 %v571, %v570
        %v586 = vpack.c.b16 %v573, %v572
        %v587 = vpack.c.b16 %v575, %v574
        %v588 = vpack.c.b16 %v577, %v576
        %v589 = vpack.c.b16 %v579, %v578
        %v590 = vpack.c.b16 %v581, %v580
        %v591 = vpack.c.b16 %v583, %v582
        %600 = vmatprep.subr.bf16.mxu0 0
        %601 = vmatpush1.bf16.msra.mxu0 %v591
        %602 = vmatprep.subr.bf16.mxu0 0
        %603 = vmatpush1.bf16.msra.mxu0 %v590
        %604 = vmatprep.subr.bf16.mxu0 0
        %605 = vmatpush1.bf16.msra.mxu0 %v589
        %606 = vmatprep.subr.bf16.mxu0 0
        %607 = vmatpush1.bf16.msra.mxu0 %v588
        %608 = vmatprep.subr.bf16.mxu0 0
        %609 = vmatpush1.bf16.msra.mxu0 %v587
        %610 = vmatprep.subr.bf16.mxu0 0
        %611 = vmatpush1.bf16.msra.mxu0 %v586
        %612 = vmatprep.subr.bf16.mxu0 0
        %613 = vmatpush1.bf16.msra.mxu0 %v585
        %614 = vmatprep.subr.bf16.mxu0 0
        %615 = vmatpush1.bf16.msra.mxu0 %v584
        %616 = vmatprep.subr.bf16.mxu0 0
        %617 = vmatpush2.bf16.msra.mxu0 0
        %618 = vmatprep.subr.bf16.mxu0 0
        %619 = vmatpush2.bf16.msra.mxu0 0
        %620 = vmatprep.subr.bf16.mxu0 0
        %621 = vmatpush2.bf16.msra.mxu0 0
        %622 = vmatprep.subr.bf16.mxu0 0
        %623 = vmatpush2.bf16.msra.mxu0 0
        %624 = vmatprep.subr.bf16.mxu0 0
        %625 = vmatpush2.bf16.msra.mxu0 0
        %626 = vmatprep.subr.bf16.mxu0 0
        %627 = vmatpush2.bf16.msra.mxu0 0
        %628 = vmatprep.subr.bf16.mxu0 0
        %629 = vmatpush2.bf16.msra.mxu0 0
        %630 = vmatprep.subr.bf16.mxu0 0
        %631 = vmatpush2.bf16.msra.mxu0 0
        %632 = vmatprep.mubr.bf16.mxu0 0
        %633 = vmatmul.mubr.bf16.gmra.mxu0 %v383
        %v634 = vpop.f32.mrf.mxu0
        %v635 = vadd.f32 0.0, %v634
        %v636 = vpop.f32.mrf.mxu0
        %v637 = vpop.f32.mrf.mxu0
        %v638 = vadd.f32 0.0, %v637
        %v639 = vpop.f32.mrf.mxu0
        %640 = vmatprep.mubr.bf16.mxu0 0
        %641 = vmatmul.mubr.bf16.gmra.mxu0 %v384
        %v642 = vpop.f32.mrf.mxu0
        %v643 = vadd.f32 0.0, %v642
        %v644 = vpop.f32.mrf.mxu0
        %v645 = vpop.f32.mrf.mxu0
        %v646 = vadd.f32 0.0, %v645
        %v647 = vpop.f32.mrf.mxu0
        %648 = vmatprep.mubr.bf16.mxu0 0
        %649 = vmatmul.mubr.bf16.gmra.mxu0 %v385
        %v650 = vpop.f32.mrf.mxu0
        %v651 = vadd.f32 0.0, %v650
        %v652 = vpop.f32.mrf.mxu0
        %v653 = vpop.f32.mrf.mxu0
        %v654 = vadd.f32 0.0, %v653
        %v655 = vpop.f32.mrf.mxu0
        %656 = vmatprep.mubr.bf16.mxu0 0
        %657 = vmatmul.mubr.bf16.gmra.mxu0 %v386
        %v658 = vpop.f32.mrf.mxu0
        %v659 = vadd.f32 0.0, %v658
        %v660 = vpop.f32.mrf.mxu0
        %v661 = vpop.f32.mrf.mxu0
        %v662 = vadd.f32 0.0, %v661
        %v663 = vpop.f32.mrf.mxu0
        %664 = vmatprep.mubr.bf16.mxu0 0
        %665 = vmatmul.mubr.bf16.gmra.mxu0 %v387
        %v666 = vpop.f32.mrf.mxu0
        %v667 = vadd.f32 0.0, %v666
        %v668 = vpop.f32.mrf.mxu0
        %v669 = vpop.f32.mrf.mxu0
        %v670 = vadd.f32 0.0, %v669
        %v671 = vpop.f32.mrf.mxu0
        %672 = vmatprep.mubr.bf16.mxu0 0
        %673 = vmatmul.mubr.bf16.gmra.mxu0 %v388
        %v674 = vpop.f32.mrf.mxu0
        %v675 = vadd.f32 0.0, %v674
        %v676 = vpop.f32.mrf.mxu0
        %v677 = vpop.f32.mrf.mxu0
        %v678 = vadd.f32 0.0, %v677
        %v679 = vpop.f32.mrf.mxu0
        %680 = vdwg.mxu0
        %681 = vst [vmem:[#allocation2 + $0x8] sm:$0xff] %v635
        %682 = vst [vmem:[#allocation2 + $0x20] sm:$0xff] %v638
        %683 = vst [vmem:[#allocation2 + $0x38] sm:$0xff] %v643
        %684 = vst [vmem:[#allocation2 + $0x50] sm:$0xff] %v646
        %685 = vst [vmem:[#allocation2 + $0x68] sm:$0xff] %v651
        %686 = vst [vmem:[#allocation2 + $0x80] sm:$0xff] %v654
        %687 = vst [vmem:[#allocation2 + $0x98] sm:$0xff] %v659
        %688 = vst [vmem:[#allocation2 + $0xb0] sm:$0xff] %v662
        %689 = vst [vmem:[#allocation2 + $0xc8] sm:$0xff] %v667
        %690 = vst [vmem:[#allocation2 + $0xe0] sm:$0xff] %v670
        %691 = vst [vmem:[#allocation2 + $0xf8] sm:$0xff] %v675
        %692 = vst [vmem:[#allocation2 + $0x110] sm:$0xff] %v678
        %v693 = vld [vmem:[#allocation10] sm:$0xf]
        %v694 = vld [vmem:[#allocation10 + $0x4] sm:$0xf]
        %v695 = vld [vmem:[#allocation10 + $0x8] sm:$0xf]
        %v696 = vld [vmem:[#allocation10 + $0xc] sm:$0xf]
        %v697 = vld [vmem:[#allocation10 + $0x10] sm:$0xf]
        %v698 = vld [vmem:[#allocation10 + $0x14] sm:$0xf]
        %v699 = vld [vmem:[#allocation10 + $0x18] sm:$0xf]
        %v700 = vld [vmem:[#allocation10 + $0x1c] sm:$0xf]
        %v701 = vld [vmem:[#allocation10 + $0x20] sm:$0xf]
        %v702 = vld [vmem:[#allocation10 + $0x24] sm:$0xf]
        %v703 = vld [vmem:[#allocation10 + $0x28] sm:$0xf]
        %v704 = vld [vmem:[#allocation10 + $0x2c] sm:$0xf]
        %v705 = vld [vmem:[#allocation10 + $0x30] sm:$0xf]
        %v706 = vld [vmem:[#allocation10 + $0x34] sm:$0xf]
        %v707 = vld [vmem:[#allocation10 + $0x38] sm:$0xf]
        %v708 = vld [vmem:[#allocation10 + $0x3c] sm:$0xf]
        %v725 = vunpack.c.l.b16 %v693
        %v726 = vunpack.c.l.b16 %v694
        %v727 = vunpack.c.l.b16 %v695
        %v728 = vunpack.c.l.b16 %v696
        %v729 = vunpack.c.l.b16 %v697
        %v730 = vunpack.c.l.b16 %v698
        %v731 = vunpack.c.l.b16 %v699
        %v732 = vunpack.c.l.b16 %v700
        %v733 = vunpack.c.l.b16 %v701
        %v734 = vunpack.c.l.b16 %v702
        %v735 = vunpack.c.l.b16 %v703
        %v736 = vunpack.c.l.b16 %v704
        %v737 = vunpack.c.l.b16 %v705
        %v738 = vunpack.c.l.b16 %v706
        %v739 = vunpack.c.l.b16 %v707
        %v740 = vunpack.c.l.b16 %v708
        %v741 = vpack.c.b16 %v726, %v725
        %v742 = vpack.c.b16 %v728, %v727
        %v743 = vpack.c.b16 %v730, %v729
        %v744 = vpack.c.b16 %v732, %v731
        %v745 = vpack.c.b16 %v734, %v733
        %v746 = vpack.c.b16 %v736, %v735
        %v747 = vpack.c.b16 %v738, %v737
        %v748 = vpack.c.b16 %v740, %v739
        %757 = vmatprep.subr.bf16.mxu0 0
        %758 = vmatpush1.bf16.msra.mxu0 %v748
        %759 = vmatprep.subr.bf16.mxu0 0
        %760 = vmatpush1.bf16.msra.mxu0 %v747
        %761 = vmatprep.subr.bf16.mxu0 0
        %762 = vmatpush1.bf16.msra.mxu0 %v746
        %763 = vmatprep.subr.bf16.mxu0 0
        %764 = vmatpush1.bf16.msra.mxu0 %v745
        %765 = vmatprep.subr.bf16.mxu0 0
        %766 = vmatpush1.bf16.msra.mxu0 %v744
        %767 = vmatprep.subr.bf16.mxu0 0
        %768 = vmatpush1.bf16.msra.mxu0 %v743
        %769 = vmatprep.subr.bf16.mxu0 0
        %770 = vmatpush1.bf16.msra.mxu0 %v742
        %771 = vmatprep.subr.bf16.mxu0 0
        %772 = vmatpush1.bf16.msra.mxu0 %v741
        %773 = vmatprep.subr.bf16.mxu0 0
        %774 = vmatpush2.bf16.msra.mxu0 0
        %775 = vmatprep.subr.bf16.mxu0 0
        %776 = vmatpush2.bf16.msra.mxu0 0
        %777 = vmatprep.subr.bf16.mxu0 0
        %778 = vmatpush2.bf16.msra.mxu0 0
        %779 = vmatprep.subr.bf16.mxu0 0
        %780 = vmatpush2.bf16.msra.mxu0 0
        %781 = vmatprep.subr.bf16.mxu0 0
        %782 = vmatpush2.bf16.msra.mxu0 0
        %783 = vmatprep.subr.bf16.mxu0 0
        %784 = vmatpush2.bf16.msra.mxu0 0
        %785 = vmatprep.subr.bf16.mxu0 0
        %786 = vmatpush2.bf16.msra.mxu0 0
        %787 = vmatprep.subr.bf16.mxu0 0
        %788 = vmatpush2.bf16.msra.mxu0 0
        %789 = vmatprep.mubr.bf16.mxu0 0
        %790 = vmatmul.mubr.bf16.gmra.mxu0 %v383
        %v791 = vpop.f32.mrf.mxu0
        %v792 = vadd.f32 0.0, %v791
        %v793 = vpop.f32.mrf.mxu0
        %v794 = vpop.f32.mrf.mxu0
        %v795 = vadd.f32 0.0, %v794
        %v796 = vpop.f32.mrf.mxu0
        %797 = vmatprep.mubr.bf16.mxu0 0
        %798 = vmatmul.mubr.bf16.gmra.mxu0 %v384
        %v799 = vpop.f32.mrf.mxu0
        %v800 = vadd.f32 0.0, %v799
        %v801 = vpop.f32.mrf.mxu0
        %v802 = vpop.f32.mrf.mxu0
        %v803 = vadd.f32 0.0, %v802
        %v804 = vpop.f32.mrf.mxu0
        %805 = vmatprep.mubr.bf16.mxu0 0
        %806 = vmatmul.mubr.bf16.gmra.mxu0 %v385
        %v807 = vpop.f32.mrf.mxu0
        %v808 = vadd.f32 0.0, %v807
        %v809 = vpop.f32.mrf.mxu0
        %v810 = vpop.f32.mrf.mxu0
        %v811 = vadd.f32 0.0, %v810
        %v812 = vpop.f32.mrf.mxu0
        %813 = vmatprep.mubr.bf16.mxu0 0
        %814 = vmatmul.mubr.bf16.gmra.mxu0 %v386
        %v815 = vpop.f32.mrf.mxu0
        %v816 = vadd.f32 0.0, %v815
        %v817 = vpop.f32.mrf.mxu0
        %v818 = vpop.f32.mrf.mxu0
        %v819 = vadd.f32 0.0, %v818
        %v820 = vpop.f32.mrf.mxu0
        %821 = vmatprep.mubr.bf16.mxu0 0
        %822 = vmatmul.mubr.bf16.gmra.mxu0 %v387
        %v823 = vpop.f32.mrf.mxu0
        %v824 = vadd.f32 0.0, %v823
        %v825 = vpop.f32.mrf.mxu0
        %v826 = vpop.f32.mrf.mxu0
        %v827 = vadd.f32 0.0, %v826
        %v828 = vpop.f32.mrf.mxu0
        %829 = vmatprep.mubr.bf16.mxu0 0
        %830 = vmatmul.mubr.bf16.gmra.mxu0 %v388
        %v831 = vpop.f32.mrf.mxu0
        %v832 = vadd.f32 0.0, %v831
        %v833 = vpop.f32.mrf.mxu0
        %v834 = vpop.f32.mrf.mxu0
        %v835 = vadd.f32 0.0, %v834
        %v836 = vpop.f32.mrf.mxu0
        %837 = vdwg.mxu0
        %838 = vst [vmem:[#allocation2 + $0x10] sm:$0xff] %v792
        %839 = vst [vmem:[#allocation2 + $0x28] sm:$0xff] %v795
        %840 = vst [vmem:[#allocation2 + $0x40] sm:$0xff] %v800
        %841 = vst [vmem:[#allocation2 + $0x58] sm:$0xff] %v803
        %842 = vst [vmem:[#allocation2 + $0x70] sm:$0xff] %v808
        %843 = vst [vmem:[#allocation2 + $0x88] sm:$0xff] %v811
        %844 = vst [vmem:[#allocation2 + $0xa0] sm:$0xff] %v816
        %845 = vst [vmem:[#allocation2 + $0xb8] sm:$0xff] %v819
        %846 = vst [vmem:[#allocation2 + $0xd0] sm:$0xff] %v824
        %847 = vst [vmem:[#allocation2 + $0xe8] sm:$0xff] %v827
        %848 = vst [vmem:[#allocation2 + $0x100] sm:$0xff] %v832
        %849 = vst [vmem:[#allocation2 + $0x118] sm:$0xff] %v835
        %v850 = vlaneseq
        %v851 = vand.u32 %v850, 127
        %vm852 = vcmp.ge.s32.totalorder %v851, 0
        %vm853 = vcmp.lt.s32.totalorder %v851, 32
        %vm854 = vmand %vm852, %vm853
        %v855 = vsel %vm854, 1, 0
        %v856 = vcvt.s32.f32 %v855
        %vm857 = vcmp.ge.s32.totalorder %v851, 32
        %vm858 = vcmp.lt.s32.totalorder %v851, 64
        %vm859 = vmand %vm857, %vm858
        %v860 = vsel %vm859, 1, 0
        %v861 = vcvt.s32.f32 %v860
        %vm862 = vcmp.ge.s32.totalorder %v851, 64
        %vm863 = vcmp.lt.s32.totalorder %v851, 96
        %vm864 = vmand %vm862, %vm863
        %v865 = vsel %vm864, 1, 0
        %v866 = vcvt.s32.f32 %v865
        %vm867 = vcmp.ge.s32.totalorder %v851, 96
        %vm868 = vcmp.lt.s32.totalorder %v851, 128
        %vm869 = vmand %vm867, %vm868
        %v870 = vsel %vm869, 1, 0
        %v871 = vcvt.s32.f32 %v870
        %v872 = vpack.c.bf16 %v856, %v856
        %v873 = vpack.c.bf16 %v861, %v861
        %v874 = vpack.c.bf16 %v866, %v866
        %v875 = vpack.c.bf16 %v871, %v871
        %v876 = vlaneseq
        %v877 = vshrl.u32 %v876, 7
        %v878 = vadd.s32 %v877, 8
        %v879 = vadd.s32 %v877, 16
        %vm880 = vcmp.lt.s32.totalorder %v877, 8
        %vm881 = vcmp.lt.s32.totalorder %v878, 8
        %vm882 = vcmp.lt.s32.totalorder %v879, 8
        %vm883 = vcmp.ge.s32.totalorder %v851, 8
        %vm884 = vmand %vm880, %vm883
        %vm885 = vmand %vm881, %vm883
        %vm886 = vmand %vm882, %vm883
        %v887 = vsel %vm884, -1e+30, 0.0
        %v888 = vsel %vm885, -1e+30, 0.0
        %v889 = vsel %vm886, -1e+30, 0.0
        %v890 = vld [vmem:[#allocation2] sm:$0xff]
        %v891 = vld [vmem:[#allocation2 + $0x18] sm:$0xff]
        %v892 = vld [vmem:[#allocation2 + $0x30] sm:$0xff]
        %v893 = vpack.c.bf16 %v891, %v890
        %v894 = vpack.c.bf16 %v892, %v892
        %v895 = vld [vmem:[#allocation2 + $0x8] sm:$0xff]
        %v896 = vld [vmem:[#allocation2 + $0x20] sm:$0xff]
        %v897 = vld [vmem:[#allocation2 + $0x38] sm:$0xff]
        %v898 = vpack.c.bf16 %v896, %v895
        %v899 = vpack.c.bf16 %v897, %v897
        %v900 = vld [vmem:[#allocation2 + $0x10] sm:$0xff]
        %v901 = vld [vmem:[#allocation2 + $0x28] sm:$0xff]
        %v902 = vld [vmem:[#allocation2 + $0x40] sm:$0xff]
        %v903 = vpack.c.bf16 %v901, %v900
        %v904 = vpack.c.bf16 %v902, %v902
        %v905 = vmul.bf16 %v893, %v872
        %v906 = vmul.bf16 %v894, %v872
        %907 = vmatprep.subr.bf16.mxu0 0
        %908 = vmatpush1.bf16.xpose.msra.mxu0 0
        %909 = vmatprep.subr.bf16.mxu0 0
        %910 = vmatpush1.bf16.xpose.msra.mxu0 0
        %911 = vmatprep.subr.bf16.mxu0 0
        %912 = vmatpush1.bf16.xpose.msra.mxu0 0
        %913 = vmatprep.subr.bf16.mxu0 0
        %914 = vmatpush1.bf16.xpose.msra.mxu0 0
        %915 = vmatprep.subr.bf16.mxu0 0
        %916 = vmatpush1.bf16.xpose.msra.mxu0 0
        %917 = vmatprep.subr.bf16.mxu0 0
        %918 = vmatpush1.bf16.xpose.msra.mxu0 0
        %919 = vmatprep.subr.bf16.mxu0 0
        %920 = vmatpush1.bf16.xpose.msra.mxu0 %v899
        %921 = vmatprep.subr.bf16.mxu0 0
        %922 = vmatpush1.bf16.xpose.msra.mxu0 %v898
        %923 = vmatprep.subr.bf16.mxu0 0
        %924 = vmatpush2.bf16.xpose.msra.mxu0 0
        %925 = vmatprep.subr.bf16.mxu0 0
        %926 = vmatpush2.bf16.xpose.msra.mxu0 0
        %927 = vmatprep.subr.bf16.mxu0 0
        %928 = vmatpush2.bf16.xpose.msra.mxu0 0
        %929 = vmatprep.subr.bf16.mxu0 0
        %930 = vmatpush2.bf16.xpose.msra.mxu0 0
        %931 = vmatprep.subr.bf16.mxu0 0
        %932 = vmatpush2.bf16.xpose.msra.mxu0 0
        %933 = vmatprep.subr.bf16.mxu0 0
        %934 = vmatpush2.bf16.xpose.msra.mxu0 0
        %935 = vmatprep.subr.bf16.mxu0 0
        %936 = vmatpush2.bf16.xpose.msra.mxu0 0
        %937 = vmatprep.subr.bf16.mxu0 0
        %938 = vmatpush2.bf16.xpose.msra.mxu0 0
        %939 = vmatprep.mubr.bf16.mxu0 0
        %940 = vmatmul.mubr.bf16.gmra.mxu0 %v905
        %v941 = vpop.f32.mrf.mxu0
        %v942 = vadd.f32 %v887, %v941
        %v943 = vpop.f32.mrf.mxu0
        %v944 = vpop.f32.mrf.mxu0
        %v945 = vadd.f32 %v888, %v944
        %v946 = vpop.f32.mrf.mxu0
        %947 = vmatprep.mubr.bf16.mxu0 0
        %948 = vmatmul.mubr.bf16.gmra.mxu0 %v906
        %v949 = vpop.f32.mrf.mxu0
        %v950 = vadd.f32 %v889, %v949
        %v951 = vpop.f32.mrf.mxu0
        %v952 = vpop.f32.mrf.mxu0
        %v953 = vpop.f32.mrf.mxu0
        %954 = vdwg.mxu0
        %vm955 = vcmask 195584
        %v956 = vsel %vm955, %v942, -inf
        %957 = vmax.xlane.f32.xlu0 %v956
        %v958 = vpop.xlane.xlu0 %957
        %v959 = vsel %vm955, %v945, -inf
        %960 = vmax.xlane.f32.xlu0 %v959
        %v961 = vpop.xlane.xlu0 %960
        %v962 = vsel %vm955, %v950, -inf
        %963 = vmax.xlane.f32.xlu0 %v962
        %v964 = vpop.xlane.xlu0 %963
        %v965 = vsub.f32 %v942, %v958
        %v966 = vsub.f32 %v945, %v961
        %v967 = vsub.f32 %v950, %v964
        %v968 = vmul.f32 %v965, 1.442695
        %v969 = vpow.pop %v968
        %v970 = vmul.f32 %v966, 1.442695
        %v971 = vpow.pop %v970
        %v972 = vmul.f32 %v967, 1.442695
        %v973 = vpow.pop %v972
        %v974 = vsel %vm955, %v969, 0.0
        %975 = vadd.xlane.f32.xlu0 %v974
        %v976 = vpop.xlane.xlu0 %975
        %v977 = vsel %vm955, %v971, 0.0
        %978 = vadd.xlane.f32.xlu0 %v977
        %v979 = vpop.xlane.xlu0 %978
        %v980 = vsel %vm955, %v973, 0.0
        %981 = vadd.xlane.f32.xlu0 %v980
        %v982 = vpop.xlane.xlu0 %981
        %v983 = vrcp.pop %v976
        %v984 = vrcp.pop %v979
        %v985 = vrcp.pop %v982
        %v986 = vmul.f32 %v969, %v983
        %v987 = vmul.f32 %v971, %v984
        %v988 = vmul.f32 %v973, %v985
        %v989 = vpack.c.bf16 %v987, %v986
        %v990 = vpack.c.bf16 %v988, %v988
        %v992 = vsel %vm955, %v989, 0
        %v995 = vsel %vm955, %v990, 0
        %vm997 = vcmask 1043456
        %v999 = vsel %vm997, %v904, 0
        %1001 = vmatprep.subr.bf16.mxu0 0
        %1002 = vmatpush1.bf16.msra.mxu0 0
        %1003 = vmatprep.subr.bf16.mxu0 0
        %1004 = vmatpush1.bf16.msra.mxu0 0
        %1005 = vmatprep.subr.bf16.mxu0 0
        %1006 = vmatpush1.bf16.msra.mxu0 0
        %1007 = vmatprep.subr.bf16.mxu0 0
        %1008 = vmatpush1.bf16.msra.mxu0 0
        %1009 = vmatprep.subr.bf16.mxu0 0
        %1010 = vmatpush1.bf16.msra.mxu0 0
        %1011 = vmatprep.subr.bf16.mxu0 0
        %1012 = vmatpush1.bf16.msra.mxu0 0
        %1013 = vmatprep.subr.bf16.mxu0 0
        %1014 = vmatpush1.bf16.msra.mxu0 %v999
        %1015 = vmatprep.subr.bf16.mxu0 0
        %1016 = vmatpush1.bf16.msra.mxu0 %v903
        %1017 = vmatprep.subr.bf16.mxu0 0
        %1018 = vmatpush2.bf16.msra.mxu0 0
        %1019 = vmatprep.subr.bf16.mxu0 0
        %1020 = vmatpush2.bf16.msra.mxu0 0
        %1021 = vmatprep.subr.bf16.mxu0 0
        %1022 = vmatpush2.bf16.msra.mxu0 0
        %1023 = vmatprep.subr.bf16.mxu0 0
        %1024 = vmatpush2.bf16.msra.mxu0 0
        %1025 = vmatprep.subr.bf16.mxu0 0
        %1026 = vmatpush2.bf16.msra.mxu0 0
        %1027 = vmatprep.subr.bf16.mxu0 0
        %1028 = vmatpush2.bf16.msra.mxu0 0
        %1029 = vmatprep.subr.bf16.mxu0 0
        %1030 = vmatpush2.bf16.msra.mxu0 0
        %1031 = vmatprep.subr.bf16.mxu0 0
        %1032 = vmatpush2.bf16.msra.mxu0 0
        %1033 = vmatprep.mubr.bf16.mxu0 0
        %1034 = vmatmul.mubr.bf16.gmra.mxu0 %v992
        %v1035 = vpop.f32.mrf.mxu0
        %v1036 = vadd.f32 0.0, %v1035
        %v1037 = vpop.f32.mrf.mxu0
        %v1038 = vpop.f32.mrf.mxu0
        %v1039 = vadd.f32 0.0, %v1038
        %v1040 = vpop.f32.mrf.mxu0
        %1041 = vmatprep.mubr.bf16.mxu0 0
        %1042 = vmatmul.mubr.bf16.gmra.mxu0 %v995
        %v1043 = vpop.f32.mrf.mxu0
        %v1044 = vadd.f32 0.0, %v1043
        %v1045 = vpop.f32.mrf.mxu0
        %v1046 = vpop.f32.mrf.mxu0
        %v1047 = vpop.f32.mrf.mxu0
        %1048 = vdwg.mxu0
        %v1049 = vmul.f32 %v1036, %v856
        %v1050 = vmul.f32 %v1039, %v856
        %v1051 = vmul.f32 %v1044, %v856
        %v1052 = vadd.f32 %v1049, 0.0
        %v1053 = vadd.f32 %v1050, 0.0
        %v1054 = vadd.f32 %v1051, 0.0
        %v1055 = vmul.bf16 %v893, %v873
        %v1056 = vmul.bf16 %v894, %v873
        %1057 = vmatprep.subr.bf16.mxu0 0
        %1058 = vmatpush1.bf16.xpose.msra.mxu0 0
        %1059 = vmatprep.subr.bf16.mxu0 0
        %1060 = vmatpush1.bf16.xpose.msra.mxu0 0
        %1061 = vmatprep.subr.bf16.mxu0 0
        %1062 = vmatpush1.bf16.xpose.msra.mxu0 0
        %1063 = vmatprep.subr.bf16.mxu0 0
        %1064 = vmatpush1.bf16.xpose.msra.mxu0 0
        %1065 = vmatprep.subr.bf16.mxu0 0
        %1066 = vmatpush1.bf16.xpose.msra.mxu0 0
        %1067 = vmatprep.subr.bf16.mxu0 0
        %1068 = vmatpush1.bf16.xpose.msra.mxu0 0
        %1069 = vmatprep.subr.bf16.mxu0 0
        %1070 = vmatpush1.bf16.xpose.msra.mxu0 %v899
        %1071 = vmatprep.subr.bf16.mxu0 0
        %1072 = vmatpush1.bf16.xpose.msra.mxu0 %v898
        %1073 = vmatprep.subr.bf16.mxu0 0
        %1074 = vmatpush2.bf16.xpose.msra.mxu0 0
        %1075 = vmatprep.subr.bf16.mxu0 0
        %1076 = vmatpush2.bf16.xpose.msra.mxu0 0
        %1077 = vmatprep.subr.bf16.mxu0 0
        %1078 = vmatpush2.bf16.xpose.msra.mxu0 0
        %1079 = vmatprep.subr.bf16.mxu0 0
        %1080 = vmatpush2.bf16.xpose.msra.mxu0 0
        %1081 = vmatprep.subr.bf16.mxu0 0
        %1082 = vmatpush2.bf16.xpose.msra.mxu0 0
        %1083 = vmatprep.subr.bf16.mxu0 0
        %1084 = vmatpush2.bf16.xpose.msra.mxu0 0
        %1085 = vmatprep.subr.bf16.mxu0 0
        %1086 = vmatpush2.bf16.xpose.msra.mxu0 0
        %1087 = vmatprep.subr.bf16.mxu0 0
        %1088 = vmatpush2.bf16.xpose.msra.mxu0 0
        %1089 = vmatprep.mubr.bf16.mxu0 0
        %1090 = vmatmul.mubr.bf16.gmra.mxu0 %v1055
        %v1091 = vpop.f32.mrf.mxu0
        %v1092 = vadd.f32 %v887, %v1091
        %v1093 = vpop.f32.mrf.mxu0
        %v1094 = vpop.f32.mrf.mxu0
        %v1095 = vadd.f32 %v888, %v1094
        %v1096 = vpop.f32.mrf.mxu0
        %1097 = vmatprep.mubr.bf16.mxu0 0
        %1098 = vmatmul.mubr.bf16.gmra.mxu0 %v1056
        %v1099 = vpop.f32.mrf.mxu0
        %v1100 = vadd.f32 %v889, %v1099
        %v1101 = vpop.f32.mrf.mxu0
        %v1102 = vpop.f32.mrf.mxu0
        %v1103 = vpop.f32.mrf.mxu0
        %1104 = vdwg.mxu0
        %v1105 = vsel %vm955, %v1092, -inf
        %1106 = vmax.xlane.f32.xlu0 %v1105
        %v1107 = vpop.xlane.xlu0 %1106
        %v1108 = vsel %vm955, %v1095, -inf
        %1109 = vmax.xlane.f32.xlu0 %v1108
        %v1110 = vpop.xlane.xlu0 %1109
        %v1111 = vsel %vm955, %v1100, -inf
        %1112 = vmax.xlane.f32.xlu0 %v1111
        %v1113 = vpop.xlane.xlu0 %1112
        %v1114 = vsub.f32 %v1092, %v1107
        %v1115 = vsub.f32 %v1095, %v1110
        %v1116 = vsub.f32 %v1100, %v1113
        %v1117 = vmul.f32 %v1114, 1.442695
        %v1118 = vpow.pop %v1117
        %v1119 = vmul.f32 %v1115, 1.442695
        %v1120 = vpow.pop %v1119
        %v1121 = vmul.f32 %v1116, 1.442695
        %v1122 = vpow.pop %v1121
        %v1123 = vsel %vm955, %v1118, 0.0
        %1124 = vadd.xlane.f32.xlu0 %v1123
        %v1125 = vpop.xlane.xlu0 %1124
        %v1126 = vsel %vm955, %v1120, 0.0
        %1127 = vadd.xlane.f32.xlu0 %v1126
        %v1128 = vpop.xlane.xlu0 %1127
        %v1129 = vsel %vm955, %v1122, 0.0
        %1130 = vadd.xlane.f32.xlu0 %v1129
        %v1131 = vpop.xlane.xlu0 %1130
        %v1132 = vrcp.pop %v1125
        %v1133 = vrcp.pop %v1128
        %v1134 = vrcp.pop %v1131
        %v1135 = vmul.f32 %v1118, %v1132
        %v1136 = vmul.f32 %v1120, %v1133
        %v1137 = vmul.f32 %v1122, %v1134
        %v1138 = vpack.c.bf16 %v1136, %v1135
        %v1139 = vpack.c.bf16 %v1137, %v1137
        %v1141 = vsel %vm955, %v1138, 0
        %v1144 = vsel %vm955, %v1139, 0
        %1146 = vmatprep.subr.bf16.mxu0 0
        %1147 = vmatpush1.bf16.msra.mxu0 0
        %1148 = vmatprep.subr.bf16.mxu0 0
        %1149 = vmatpush1.bf16.msra.mxu0 0
        %1150 = vmatprep.subr.bf16.mxu0 0
        %1151 = vmatpush1.bf16.msra.mxu0 0
        %1152 = vmatprep.subr.bf16.mxu0 0
        %1153 = vmatpush1.bf16.msra.mxu0 0
        %1154 = vmatprep.subr.bf16.mxu0 0
        %1155 = vmatpush1.bf16.msra.mxu0 0
        %1156 = vmatprep.subr.bf16.mxu0 0
        %1157 = vmatpush1.bf16.msra.mxu0 0
        %1158 = vmatprep.subr.bf16.mxu0 0
        %1159 = vmatpush1.bf16.msra.mxu0 %v999
        %1160 = vmatprep.subr.bf16.mxu0 0
        %1161 = vmatpush1.bf16.msra.mxu0 %v903
        %1162 = vmatprep.subr.bf16.mxu0 0
        %1163 = vmatpush2.bf16.msra.mxu0 0
        %1164 = vmatprep.subr.bf16.mxu0 0
        %1165 = vmatpush2.bf16.msra.mxu0 0
        %1166 = vmatprep.subr.bf16.mxu0 0
        %1167 = vmatpush2.bf16.msra.mxu0 0
        %1168 = vmatprep.subr.bf16.mxu0 0
        %1169 = vmatpush2.bf16.msra.mxu0 0
        %1170 = vmatprep.subr.bf16.mxu0 0
        %1171 = vmatpush2.bf16.msra.mxu0 0
        %1172 = vmatprep.subr.bf16.mxu0 0
        %1173 = vmatpush2.bf16.msra.mxu0 0
        %1174 = vmatprep.subr.bf16.mxu0 0
        %1175 = vmatpush2.bf16.msra.mxu0 0
        %1176 = vmatprep.subr.bf16.mxu0 0
        %1177 = vmatpush2.bf16.msra.mxu0 0
        %1178 = vmatprep.mubr.bf16.mxu0 0
        %1179 = vmatmul.mubr.bf16.gmra.mxu0 %v1141
        %v1180 = vpop.f32.mrf.mxu0
        %v1181 = vadd.f32 0.0, %v1180
        %v1182 = vpop.f32.mrf.mxu0
        %v1183 = vpop.f32.mrf.mxu0
        %v1184 = vadd.f32 0.0, %v1183
        %v1185 = vpop.f32.mrf.mxu0
        %1186 = vmatprep.mubr.bf16.mxu0 0
        %1187 = vmatmul.mubr.bf16.gmra.mxu0 %v1144
        %v1188 = vpop.f32.mrf.mxu0
        %v1189 = vadd.f32 0.0, %v1188
        %v1190 = vpop.f32.mrf.mxu0
        %v1191 = vpop.f32.mrf.mxu0
        %v1192 = vpop.f32.mrf.mxu0
        %1193 = vdwg.mxu0
        %v1194 = vmul.f32 %v1181, %v861
        %v1195 = vmul.f32 %v1184, %v861
        %v1196 = vmul.f32 %v1189, %v861
        %v1197 = vadd.f32 %v1052, %v1194
        %v1198 = vadd.f32 %v1053, %v1195
        %v1199 = vadd.f32 %v1054, %v1196
        %v1200 = vmul.bf16 %v893, %v874
        %v1201 = vmul.bf16 %v894, %v874
        %1202 = vmatprep.subr.bf16.mxu0 0
        %1203 = vmatpush1.bf16.xpose.msra.mxu0 0
        %1204 = vmatprep.subr.bf16.mxu0 0
        %1205 = vmatpush1.bf16.xpose.msra.mxu0 0
        %1206 = vmatprep.subr.bf16.mxu0 0
        %1207 = vmatpush1.bf16.xpose.msra.mxu0 0
        %1208 = vmatprep.subr.bf16.mxu0 0
        %1209 = vmatpush1.bf16.xpose.msra.mxu0 0
        %1210 = vmatprep.subr.bf16.mxu0 0
        %1211 = vmatpush1.bf16.xpose.msra.mxu0 0
        %1212 = vmatprep.subr.bf16.mxu0 0
        %1213 = vmatpush1.bf16.xpose.msra.mxu0 0
        %1214 = vmatprep.subr.bf16.mxu0 0
        %1215 = vmatpush1.bf16.xpose.msra.mxu0 %v899
        %1216 = vmatprep.subr.bf16.mxu0 0
        %1217 = vmatpush1.bf16.xpose.msra.mxu0 %v898
        %1218 = vmatprep.subr.bf16.mxu0 0
        %1219 = vmatpush2.bf16.xpose.msra.mxu0 0
        %1220 = vmatprep.subr.bf16.mxu0 0
        %1221 = vmatpush2.bf16.xpose.msra.mxu0 0
        %1222 = vmatprep.subr.bf16.mxu0 0
        %1223 = vmatpush2.bf16.xpose.msra.mxu0 0
        %1224 = vmatprep.subr.bf16.mxu0 0
        %1225 = vmatpush2.bf16.xpose.msra.mxu0 0
        %1226 = vmatprep.subr.bf16.mxu0 0
        %1227 = vmatpush2.bf16.xpose.msra.mxu0 0
        %1228 = vmatprep.subr.bf16.mxu0 0
        %1229 = vmatpush2.bf16.xpose.msra.mxu0 0
        %1230 = vmatprep.subr.bf16.mxu0 0
        %1231 = vmatpush2.bf16.xpose.msra.mxu0 0
        %1232 = vmatprep.subr.bf16.mxu0 0
        %1233 = vmatpush2.bf16.xpose.msra.mxu0 0
        %1234 = vmatprep.mubr.bf16.mxu0 0
        %1235 = vmatmul.mubr.bf16.gmra.mxu0 %v1200
        %v1236 = vpop.f32.mrf.mxu0
        %v1237 = vadd.f32 %v887, %v1236
        %v1238 = vpop.f32.mrf.mxu0
        %v1239 = vpop.f32.mrf.mxu0
        %v1240 = vadd.f32 %v888, %v1239
        %v1241 = vpop.f32.mrf.mxu0
        %1242 = vmatprep.mubr.bf16.mxu0 0
        %1243 = vmatmul.mubr.bf16.gmra.mxu0 %v1201
        %v1244 = vpop.f32.mrf.mxu0
        %v1245 = vadd.f32 %v889, %v1244
        %v1246 = vpop.f32.mrf.mxu0
        %v1247 = vpop.f32.mrf.mxu0
        %v1248 = vpop.f32.mrf.mxu0
        %1249 = vdwg.mxu0
        %v1250 = vsel %vm955, %v1237, -inf
        %1251 = vmax.xlane.f32.xlu0 %v1250
        %v1252 = vpop.xlane.xlu0 %1251
        %v1253 = vsel %vm955, %v1240, -inf
        %1254 = vmax.xlane.f32.xlu0 %v1253
        %v1255 = vpop.xlane.xlu0 %1254
        %v1256 = vsel %vm955, %v1245, -inf
        %1257 = vmax.xlane.f32.xlu0 %v1256
        %v1258 = vpop.xlane.xlu0 %1257
        %v1259 = vsub.f32 %v1237, %v1252
        %v1260 = vsub.f32 %v1240, %v1255
        %v1261 = vsub.f32 %v1245, %v1258
        %v1262 = vmul.f32 %v1259, 1.442695
        %v1263 = vpow.pop %v1262
        %v1264 = vmul.f32 %v1260, 1.442695
        %v1265 = vpow.pop %v1264
        %v1266 = vmul.f32 %v1261, 1.442695
        %v1267 = vpow.pop %v1266
        %v1268 = vsel %vm955, %v1263, 0.0
        %1269 = vadd.xlane.f32.xlu0 %v1268
        %v1270 = vpop.xlane.xlu0 %1269
        %v1271 = vsel %vm955, %v1265, 0.0
        %1272 = vadd.xlane.f32.xlu0 %v1271
        %v1273 = vpop.xlane.xlu0 %1272
        %v1274 = vsel %vm955, %v1267, 0.0
        %1275 = vadd.xlane.f32.xlu0 %v1274
        %v1276 = vpop.xlane.xlu0 %1275
        %v1277 = vrcp.pop %v1270
        %v1278 = vrcp.pop %v1273
        %v1279 = vrcp.pop %v1276
        %v1280 = vmul.f32 %v1263, %v1277
        %v1281 = vmul.f32 %v1265, %v1278
        %v1282 = vmul.f32 %v1267, %v1279
        %v1283 = vpack.c.bf16 %v1281, %v1280
        %v1284 = vpack.c.bf16 %v1282, %v1282
        %v1286 = vsel %vm955, %v1283, 0
        %v1289 = vsel %vm955, %v1284, 0
        %1291 = vmatprep.subr.bf16.mxu0 0
        %1292 = vmatpush1.bf16.msra.mxu0 0
        %1293 = vmatprep.subr.bf16.mxu0 0
        %1294 = vmatpush1.bf16.msra.mxu0 0
        %1295 = vmatprep.subr.bf16.mxu0 0
        %1296 = vmatpush1.bf16.msra.mxu0 0
        %1297 = vmatprep.subr.bf16.mxu0 0
        %1298 = vmatpush1.bf16.msra.mxu0 0
        %1299 = vmatprep.subr.bf16.mxu0 0
        %1300 = vmatpush1.bf16.msra.mxu0 0
        %1301 = vmatprep.subr.bf16.mxu0 0
        %1302 = vmatpush1.bf16.msra.mxu0 0
        %1303 = vmatprep.subr.bf16.mxu0 0
        %1304 = vmatpush1.bf16.msra.mxu0 %v999
        %1305 = vmatprep.subr.bf16.mxu0 0
        %1306 = vmatpush1.bf16.msra.mxu0 %v903
        %1307 = vmatprep.subr.bf16.mxu0 0
        %1308 = vmatpush2.bf16.msra.mxu0 0
        %1309 = vmatprep.subr.bf16.mxu0 0
        %1310 = vmatpush2.bf16.msra.mxu0 0
        %1311 = vmatprep.subr.bf16.mxu0 0
        %1312 = vmatpush2.bf16.msra.mxu0 0
        %1313 = vmatprep.subr.bf16.mxu0 0
        %1314 = vmatpush2.bf16.msra.mxu0 0
        %1315 = vmatprep.subr.bf16.mxu0 0
        %1316 = vmatpush2.bf16.msra.mxu0 0
        %1317 = vmatprep.subr.bf16.mxu0 0
        %1318 = vmatpush2.bf16.msra.mxu0 0
        %1319 = vmatprep.subr.bf16.mxu0 0
        %1320 = vmatpush2.bf16.msra.mxu0 0
        %1321 = vmatprep.subr.bf16.mxu0 0
        %1322 = vmatpush2.bf16.msra.mxu0 0
        %1323 = vmatprep.mubr.bf16.mxu0 0
        %1324 = vmatmul.mubr.bf16.gmra.mxu0 %v1286
        %v1325 = vpop.f32.mrf.mxu0
        %v1326 = vadd.f32 0.0, %v1325
        %v1327 = vpop.f32.mrf.mxu0
        %v1328 = vpop.f32.mrf.mxu0
        %v1329 = vadd.f32 0.0, %v1328
        %v1330 = vpop.f32.mrf.mxu0
        %1331 = vmatprep.mubr.bf16.mxu0 0
        %1332 = vmatmul.mubr.bf16.gmra.mxu0 %v1289
        %v1333 = vpop.f32.mrf.mxu0
        %v1334 = vadd.f32 0.0, %v1333
        %v1335 = vpop.f32.mrf.mxu0
        %v1336 = vpop.f32.mrf.mxu0
        %v1337 = vpop.f32.mrf.mxu0
        %1338 = vdwg.mxu0
        %v1339 = vmul.f32 %v1326, %v866
        %v1340 = vmul.f32 %v1329, %v866
        %v1341 = vmul.f32 %v1334, %v866
        %v1342 = vadd.f32 %v1197, %v1339
        %v1343 = vadd.f32 %v1198, %v1340
        %v1344 = vadd.f32 %v1199, %v1341
        %v1345 = vmul.bf16 %v893, %v875
        %v1346 = vmul.bf16 %v894, %v875
        %1347 = vmatprep.subr.bf16.mxu0 0
        %1348 = vmatpush1.bf16.xpose.msra.mxu0 0
        %1349 = vmatprep.subr.bf16.mxu0 0
        %1350 = vmatpush1.bf16.xpose.msra.mxu0 0
        %1351 = vmatprep.subr.bf16.mxu0 0
        %1352 = vmatpush1.bf16.xpose.msra.mxu0 0
        %1353 = vmatprep.subr.bf16.mxu0 0
        %1354 = vmatpush1.bf16.xpose.msra.mxu0 0
        %1355 = vmatprep.subr.bf16.mxu0 0
        %1356 = vmatpush1.bf16.xpose.msra.mxu0 0
        %1357 = vmatprep.subr.bf16.mxu0 0
        %1358 = vmatpush1.bf16.xpose.msra.mxu0 0
        %1359 = vmatprep.subr.bf16.mxu0 0
        %1360 = vmatpush1.bf16.xpose.msra.mxu0 %v899
        %1361 = vmatprep.subr.bf16.mxu0 0
        %1362 = vmatpush1.bf16.xpose.msra.mxu0 %v898
        %1363 = vmatprep.subr.bf16.mxu0 0
        %1364 = vmatpush2.bf16.xpose.msra.mxu0 0
        %1365 = vmatprep.subr.bf16.mxu0 0
        %1366 = vmatpush2.bf16.xpose.msra.mxu0 0
        %1367 = vmatprep.subr.bf16.mxu0 0
        %1368 = vmatpush2.bf16.xpose.msra.mxu0 0
        %1369 = vmatprep.subr.bf16.mxu0 0
        %1370 = vmatpush2.bf16.xpose.msra.mxu0 0
        %1371 = vmatprep.subr.bf16.mxu0 0
        %1372 = vmatpush2.bf16.xpose.msra.mxu0 0
        %1373 = vmatprep.subr.bf16.mxu0 0
        %1374 = vmatpush2.bf16.xpose.msra.mxu0 0
        %1375 = vmatprep.subr.bf16.mxu0 0
        %1376 = vmatpush2.bf16.xpose.msra.mxu0 0
        %1377 = vmatprep.subr.bf16.mxu0 0
        %1378 = vmatpush2.bf16.xpose.msra.mxu0 0
        %1379 = vmatprep.mubr.bf16.mxu0 0
        %1380 = vmatmul.mubr.bf16.gmra.mxu0 %v1345
        %v1381 = vpop.f32.mrf.mxu0
        %v1382 = vadd.f32 %v887, %v1381
        %v1383 = vpop.f32.mrf.mxu0
        %v1384 = vpop.f32.mrf.mxu0
        %v1385 = vadd.f32 %v888, %v1384
        %v1386 = vpop.f32.mrf.mxu0
        %1387 = vmatprep.mubr.bf16.mxu0 0
        %1388 = vmatmul.mubr.bf16.gmra.mxu0 %v1346
        %v1389 = vpop.f32.mrf.mxu0
        %v1390 = vadd.f32 %v889, %v1389
        %v1391 = vpop.f32.mrf.mxu0
        %v1392 = vpop.f32.mrf.mxu0
        %v1393 = vpop.f32.mrf.mxu0
        %1394 = vdwg.mxu0
        %v1395 = vsel %vm955, %v1382, -inf
        %1396 = vmax.xlane.f32.xlu0 %v1395
        %v1397 = vpop.xlane.xlu0 %1396
        %v1398 = vsel %vm955, %v1385, -inf
        %1399 = vmax.xlane.f32.xlu0 %v1398
        %v1400 = vpop.xlane.xlu0 %1399
        %v1401 = vsel %vm955, %v1390, -inf
        %1402 = vmax.xlane.f32.xlu0 %v1401
        %v1403 = vpop.xlane.xlu0 %1402
        %v1404 = vsub.f32 %v1382, %v1397
        %v1405 = vsub.f32 %v1385, %v1400
        %v1406 = vsub.f32 %v1390, %v1403
        %v1407 = vmul.f32 %v1404, 1.442695
        %v1408 = vpow.pop %v1407
        %v1409 = vmul.f32 %v1405, 1.442695
        %v1410 = vpow.pop %v1409
        %v1411 = vmul.f32 %v1406, 1.442695
        %v1412 = vpow.pop %v1411
        %v1413 = vsel %vm955, %v1408, 0.0
        %1414 = vadd.xlane.f32.xlu0 %v1413
        %v1415 = vpop.xlane.xlu0 %1414
        %v1416 = vsel %vm955, %v1410, 0.0
        %1417 = vadd.xlane.f32.xlu0 %v1416
        %v1418 = vpop.xlane.xlu0 %1417
        %v1419 = vsel %vm955, %v1412, 0.0
        %1420 = vadd.xlane.f32.xlu0 %v1419
        %v1421 = vpop.xlane.xlu0 %1420
        %v1422 = vrcp.pop %v1415
        %v1423 = vrcp.pop %v1418
        %v1424 = vrcp.pop %v1421
        %v1425 = vmul.f32 %v1408, %v1422
        %v1426 = vmul.f32 %v1410, %v1423
        %v1427 = vmul.f32 %v1412, %v1424
        %v1428 = vpack.c.bf16 %v1426, %v1425
        %v1429 = vpack.c.bf16 %v1427, %v1427
        %v1431 = vsel %vm955, %v1428, 0
        %v1434 = vsel %vm955, %v1429, 0
        %1436 = vmatprep.subr.bf16.mxu0 0
        %1437 = vmatpush1.bf16.msra.mxu0 0
        %1438 = vmatprep.subr.bf16.mxu0 0
        %1439 = vmatpush1.bf16.msra.mxu0 0
        %1440 = vmatprep.subr.bf16.mxu0 0
        %1441 = vmatpush1.bf16.msra.mxu0 0
        %1442 = vmatprep.subr.bf16.mxu0 0
        %1443 = vmatpush1.bf16.msra.mxu0 0
        %1444 = vmatprep.subr.bf16.mxu0 0
        %1445 = vmatpush1.bf16.msra.mxu0 0
        %1446 = vmatprep.subr.bf16.mxu0 0
        %1447 = vmatpush1.bf16.msra.mxu0 0
        %1448 = vmatprep.subr.bf16.mxu0 0
        %1449 = vmatpush1.bf16.msra.mxu0 %v999
        %1450 = vmatprep.subr.bf16.mxu0 0
        %1451 = vmatpush1.bf16.msra.mxu0 %v903
        %1452 = vmatprep.subr.bf16.mxu0 0
        %1453 = vmatpush2.bf16.msra.mxu0 0
        %1454 = vmatprep.subr.bf16.mxu0 0
        %1455 = vmatpush2.bf16.msra.mxu0 0
        %1456 = vmatprep.subr.bf16.mxu0 0
        %1457 = vmatpush2.bf16.msra.mxu0 0
        %1458 = vmatprep.subr.bf16.mxu0 0
        %1459 = vmatpush2.bf16.msra.mxu0 0
        %1460 = vmatprep.subr.bf16.mxu0 0
        %1461 = vmatpush2.bf16.msra.mxu0 0
        %1462 = vmatprep.subr.bf16.mxu0 0
        %1463 = vmatpush2.bf16.msra.mxu0 0
        %1464 = vmatprep.subr.bf16.mxu0 0
        %1465 = vmatpush2.bf16.msra.mxu0 0
        %1466 = vmatprep.subr.bf16.mxu0 0
        %1467 = vmatpush2.bf16.msra.mxu0 0
        %1468 = vmatprep.mubr.bf16.mxu0 0
        %1469 = vmatmul.mubr.bf16.gmra.mxu0 %v1431
        %v1470 = vpop.f32.mrf.mxu0
        %v1471 = vadd.f32 0.0, %v1470
        %v1472 = vpop.f32.mrf.mxu0
        %v1473 = vpop.f32.mrf.mxu0
        %v1474 = vadd.f32 0.0, %v1473
        %v1475 = vpop.f32.mrf.mxu0
        %1476 = vmatprep.mubr.bf16.mxu0 0
        %1477 = vmatmul.mubr.bf16.gmra.mxu0 %v1434
        %v1478 = vpop.f32.mrf.mxu0
        %v1479 = vadd.f32 0.0, %v1478
        %v1480 = vpop.f32.mrf.mxu0
        %v1481 = vpop.f32.mrf.mxu0
        %v1482 = vpop.f32.mrf.mxu0
        %1483 = vdwg.mxu0
        %v1484 = vmul.f32 %v1471, %v871
        %v1485 = vmul.f32 %v1474, %v871
        %v1486 = vmul.f32 %v1479, %v871
        %v1487 = vadd.f32 %v1342, %v1484
        %v1488 = vadd.f32 %v1343, %v1485
        %v1489 = vadd.f32 %v1344, %v1486
        %1490 = vst [vmem:[#allocation3] sm:$0xff] %v1487
        %1491 = vst [vmem:[#allocation3 + $0x8] sm:$0xff] %v1488
        %1492 = vst [vmem:[#allocation3 + $0x10] sm:$0xff] %v1489
        %v1493 = vld [vmem:[#allocation2 + $0x48] sm:$0xff]
        %v1494 = vld [vmem:[#allocation2 + $0x60] sm:$0xff]
        %v1495 = vld [vmem:[#allocation2 + $0x78] sm:$0xff]
        %v1496 = vpack.c.bf16 %v1494, %v1493
        %v1497 = vpack.c.bf16 %v1495, %v1495
        %v1498 = vld [vmem:[#allocation2 + $0x50] sm:$0xff]
        %v1499 = vld [vmem:[#allocation2 + $0x68] sm:$0xff]
        %v1500 = vld [vmem:[#allocation2 + $0x80] sm:$0xff]
        %v1501 = vpack.c.bf16 %v1499, %v1498
        %v1502 = vpack.c.bf16 %v1500, %v1500
        %v1503 = vld [vmem:[#allocation2 + $0x58] sm:$0xff]
        %v1504 = vld [vmem:[#allocation2 + $0x70] sm:$0xff]
        %v1505 = vld [vmem:[#allocation2 + $0x88] sm:$0xff]
        %v1506 = vpack.c.bf16 %v1504, %v1503
        %v1507 = vpack.c.bf16 %v1505, %v1505
        %v1508 = vmul.bf16 %v1496, %v872
        %v1509 = vmul.bf16 %v1497, %v872
        %1510 = vmatprep.subr.bf16.mxu0 0
        %1511 = vmatpush1.bf16.xpose.msra.mxu0 0
        %1512 = vmatprep.subr.bf16.mxu0 0
        %1513 = vmatpush1.bf16.xpose.msra.mxu0 0
        %1514 = vmatprep.subr.bf16.mxu0 0
        %1515 = vmatpush1.bf16.xpose.msra.mxu0 0
        %1516 = vmatprep.subr.bf16.mxu0 0
        %1517 = vmatpush1.bf16.xpose.msra.mxu0 0
        %1518 = vmatprep.subr.bf16.mxu0 0
        %1519 = vmatpush1.bf16.xpose.msra.mxu0 0
        %1520 = vmatprep.subr.bf16.mxu0 0
        %1521 = vmatpush1.bf16.xpose.msra.mxu0 0
        %1522 = vmatprep.subr.bf16.mxu0 0
        %1523 = vmatpush1.bf16.xpose.msra.mxu0 %v1502
        %1524 = vmatprep.subr.bf16.mxu0 0
        %1525 = vmatpush1.bf16.xpose.msra.mxu0 %v1501
        %1526 = vmatprep.subr.bf16.mxu0 0
        %1527 = vmatpush2.bf16.xpose.msra.mxu0 0
        %1528 = vmatprep.subr.bf16.mxu0 0
        %1529 = vmatpush2.bf16.xpose.msra.mxu0 0
        %1530 = vmatprep.subr.bf16.mxu0 0
        %1531 = vmatpush2.bf16.xpose.msra.mxu0 0
        %1532 = vmatprep.subr.bf16.mxu0 0
        %1533 = vmatpush2.bf16.xpose.msra.mxu0 0
        %1534 = vmatprep.subr.bf16.mxu0 0
        %1535 = vmatpush2.bf16.xpose.msra.mxu0 0
        %1536 = vmatprep.subr.bf16.mxu0 0
        %1537 = vmatpush2.bf16.xpose.msra.mxu0 0
        %1538 = vmatprep.subr.bf16.mxu0 0
        %1539 = vmatpush2.bf16.xpose.msra.mxu0 0
        %1540 = vmatprep.subr.bf16.mxu0 0
        %1541 = vmatpush2.bf16.xpose.msra.mxu0 0
        %1542 = vmatprep.mubr.bf16.mxu0 0
        %1543 = vmatmul.mubr.bf16.gmra.mxu0 %v1508
        %v1544 = vpop.f32.mrf.mxu0
        %v1545 = vadd.f32 %v887, %v1544
        %v1546 = vpop.f32.mrf.mxu0
        %v1547 = vpop.f32.mrf.mxu0
        %v1548 = vadd.f32 %v888, %v1547
        %v1549 = vpop.f32.mrf.mxu0
        %1550 = vmatprep.mubr.bf16.mxu0 0
        %1551 = vmatmul.mubr.bf16.gmra.mxu0 %v1509
        %v1552 = vpop.f32.mrf.mxu0
        %v1553 = vadd.f32 %v889, %v1552
        %v1554 = vpop.f32.mrf.mxu0
        %v1555 = vpop.f32.mrf.mxu0
        %v1556 = vpop.f32.mrf.mxu0
        %1557 = vdwg.mxu0
        %v1558 = vsel %vm955, %v1545, -inf
        %1559 = vmax.xlane.f32.xlu0 %v1558
        %v1560 = vpop.xlane.xlu0 %1559
        %v1561 = vsel %vm955, %v1548, -inf
        %1562 = vmax.xlane.f32.xlu0 %v1561
        %v1563 = vpop.xlane.xlu0 %1562
        %v1564 = vsel %vm955, %v1553, -inf
        %1565 = vmax.xlane.f32.xlu0 %v1564
        %v1566 = vpop.xlane.xlu0 %1565
        %v1567 = vsub.f32 %v1545, %v1560
        %v1568 = vsub.f32 %v1548, %v1563
        %v1569 = vsub.f32 %v1553, %v1566
        %v1570 = vmul.f32 %v1567, 1.442695
        %v1571 = vpow.pop %v1570
        %v1572 = vmul.f32 %v1568, 1.442695
        %v1573 = vpow.pop %v1572
        %v1574 = vmul.f32 %v1569, 1.442695
        %v1575 = vpow.pop %v1574
        %v1576 = vsel %vm955, %v1571, 0.0
        %1577 = vadd.xlane.f32.xlu0 %v1576
        %v1578 = vpop.xlane.xlu0 %1577
        %v1579 = vsel %vm955, %v1573, 0.0
        %1580 = vadd.xlane.f32.xlu0 %v1579
        %v1581 = vpop.xlane.xlu0 %1580
        %v1582 = vsel %vm955, %v1575, 0.0
        %1583 = vadd.xlane.f32.xlu0 %v1582
        %v1584 = vpop.xlane.xlu0 %1583
        %v1585 = vrcp.pop %v1578
        %v1586 = vrcp.pop %v1581
        %v1587 = vrcp.pop %v1584
        %v1588 = vmul.f32 %v1571, %v1585
        %v1589 = vmul.f32 %v1573, %v1586
        %v1590 = vmul.f32 %v1575, %v1587
        %v1591 = vpack.c.bf16 %v1589, %v1588
        %v1592 = vpack.c.bf16 %v1590, %v1590
        %v1594 = vsel %vm955, %v1591, 0
        %v1597 = vsel %vm955, %v1592, 0
        %v1600 = vsel %vm997, %v1507, 0
        %1602 = vmatprep.subr.bf16.mxu0 0
        %1603 = vmatpush1.bf16.msra.mxu0 0
        %1604 = vmatprep.subr.bf16.mxu0 0
        %1605 = vmatpush1.bf16.msra.mxu0 0
        %1606 = vmatprep.subr.bf16.mxu0 0
        %1607 = vmatpush1.bf16.msra.mxu0 0
        %1608 = vmatprep.subr.bf16.mxu0 0
        %1609 = vmatpush1.bf16.msra.mxu0 0
        %1610 = vmatprep.subr.bf16.mxu0 0
        %1611 = vmatpush1.bf16.msra.mxu0 0
        %1612 = vmatprep.subr.bf16.mxu0 0
        %1613 = vmatpush1.bf16.msra.mxu0 0
        %1614 = vmatprep.subr.bf16.mxu0 0
        %1615 = vmatpush1.bf16.msra.mxu0 %v1600
        %1616 = vmatprep.subr.bf16.mxu0 0
        %1617 = vmatpush1.bf16.msra.mxu0 %v1506
        %1618 = vmatprep.subr.bf16.mxu0 0
        %1619 = vmatpush2.bf16.msra.mxu0 0
        %1620 = vmatprep.subr.bf16.mxu0 0
        %1621 = vmatpush2.bf16.msra.mxu0 0
        %1622 = vmatprep.subr.bf16.mxu0 0
        %1623 = vmatpush2.bf16.msra.mxu0 0
        %1624 = vmatprep.subr.bf16.mxu0 0
        %1625 = vmatpush2.bf16.msra.mxu0 0
        %1626 = vmatprep.subr.bf16.mxu0 0
        %1627 = vmatpush2.bf16.msra.mxu0 0
        %1628 = vmatprep.subr.bf16.mxu0 0
        %1629 = vmatpush2.bf16.msra.mxu0 0
        %1630 = vmatprep.subr.bf16.mxu0 0
        %1631 = vmatpush2.bf16.msra.mxu0 0
        %1632 = vmatprep.subr.bf16.mxu0 0
        %1633 = vmatpush2.bf16.msra.mxu0 0
        %1634 = vmatprep.mubr.bf16.mxu0 0
        %1635 = vmatmul.mubr.bf16.gmra.mxu0 %v1594
        %v1636 = vpop.f32.mrf.mxu0
        %v1637 = vadd.f32 0.0, %v1636
        %v1638 = vpop.f32.mrf.mxu0
        %v1639 = vpop.f32.mrf.mxu0
        %v1640 = vadd.f32 0.0, %v1639
        %v1641 = vpop.f32.mrf.mxu0
        %1642 = vmatprep.mubr.bf16.mxu0 0
        %1643 = vmatmul.mubr.bf16.gmra.mxu0 %v1597
        %v1644 = vpop.f32.mrf.mxu0
        %v1645 = vadd.f32 0.0, %v1644
        %v1646 = vpop.f32.mrf.mxu0
        %v1647 = vpop.f32.mrf.mxu0
        %v1648 = vpop.f32.mrf.mxu0
        %1649 = vdwg.mxu0
        %v1650 = vmul.f32 %v1637, %v856
        %v1651 = vmul.f32 %v1640, %v856
        %v1652 = vmul.f32 %v1645, %v856
        %v1653 = vadd.f32 %v1650, 0.0
        %v1654 = vadd.f32 %v1651, 0.0
        %v1655 = vadd.f32 %v1652, 0.0
        %v1656 = vmul.bf16 %v1496, %v873
        %v1657 = vmul.bf16 %v1497, %v873
        %1658 = vmatprep.subr.bf16.mxu0 0
        %1659 = vmatpush1.bf16.xpose.msra.mxu0 0
        %1660 = vmatprep.subr.bf16.mxu0 0
        %1661 = vmatpush1.bf16.xpose.msra.mxu0 0
        %1662 = vmatprep.subr.bf16.mxu0 0
        %1663 = vmatpush1.bf16.xpose.msra.mxu0 0
        %1664 = vmatprep.subr.bf16.mxu0 0
        %1665 = vmatpush1.bf16.xpose.msra.mxu0 0
        %1666 = vmatprep.subr.bf16.mxu0 0
        %1667 = vmatpush1.bf16.xpose.msra.mxu0 0
        %1668 = vmatprep.subr.bf16.mxu0 0
        %1669 = vmatpush1.bf16.xpose.msra.mxu0 0
        %1670 = vmatprep.subr.bf16.mxu0 0
        %1671 = vmatpush1.bf16.xpose.msra.mxu0 %v1502
        %1672 = vmatprep.subr.bf16.mxu0 0
        %1673 = vmatpush1.bf16.xpose.msra.mxu0 %v1501
        %1674 = vmatprep.subr.bf16.mxu0 0
        %1675 = vmatpush2.bf16.xpose.msra.mxu0 0
        %1676 = vmatprep.subr.bf16.mxu0 0
        %1677 = vmatpush2.bf16.xpose.msra.mxu0 0
        %1678 = vmatprep.subr.bf16.mxu0 0
        %1679 = vmatpush2.bf16.xpose.msra.mxu0 0
        %1680 = vmatprep.subr.bf16.mxu0 0
        %1681 = vmatpush2.bf16.xpose.msra.mxu0 0
        %1682 = vmatprep.subr.bf16.mxu0 0
        %1683 = vmatpush2.bf16.xpose.msra.mxu0 0
        %1684 = vmatprep.subr.bf16.mxu0 0
        %1685 = vmatpush2.bf16.xpose.msra.mxu0 0
        %1686 = vmatprep.subr.bf16.mxu0 0
        %1687 = vmatpush2.bf16.xpose.msra.mxu0 0
        %1688 = vmatprep.subr.bf16.mxu0 0
        %1689 = vmatpush2.bf16.xpose.msra.mxu0 0
        %1690 = vmatprep.mubr.bf16.mxu0 0
        %1691 = vmatmul.mubr.bf16.gmra.mxu0 %v1656
        %v1692 = vpop.f32.mrf.mxu0
        %v1693 = vadd.f32 %v887, %v1692
        %v1694 = vpop.f32.mrf.mxu0
        %v1695 = vpop.f32.mrf.mxu0
        %v1696 = vadd.f32 %v888, %v1695
        %v1697 = vpop.f32.mrf.mxu0
        %1698 = vmatprep.mubr.bf16.mxu0 0
        %1699 = vmatmul.mubr.bf16.gmra.mxu0 %v1657
        %v1700 = vpop.f32.mrf.mxu0
        %v1701 = vadd.f32 %v889, %v1700
        %v1702 = vpop.f32.mrf.mxu0
        %v1703 = vpop.f32.mrf.mxu0
        %v1704 = vpop.f32.mrf.mxu0
        %1705 = vdwg.mxu0
        %v1706 = vsel %vm955, %v1693, -inf
        %1707 = vmax.xlane.f32.xlu0 %v1706
        %v1708 = vpop.xlane.xlu0 %1707
        %v1709 = vsel %vm955, %v1696, -inf
        %1710 = vmax.xlane.f32.xlu0 %v1709
        %v1711 = vpop.xlane.xlu0 %1710
        %v1712 = vsel %vm955, %v1701, -inf
        %1713 = vmax.xlane.f32.xlu0 %v1712
        %v1714 = vpop.xlane.xlu0 %1713
        %v1715 = vsub.f32 %v1693, %v1708
        %v1716 = vsub.f32 %v1696, %v1711
        %v1717 = vsub.f32 %v1701, %v1714
        %v1718 = vmul.f32 %v1715, 1.442695
        %v1719 = vpow.pop %v1718
        %v1720 = vmul.f32 %v1716, 1.442695
        %v1721 = vpow.pop %v1720
        %v1722 = vmul.f32 %v1717, 1.442695
        %v1723 = vpow.pop %v1722
        %v1724 = vsel %vm955, %v1719, 0.0
        %1725 = vadd.xlane.f32.xlu0 %v1724
        %v1726 = vpop.xlane.xlu0 %1725
        %v1727 = vsel %vm955, %v1721, 0.0
        %1728 = vadd.xlane.f32.xlu0 %v1727
        %v1729 = vpop.xlane.xlu0 %1728
        %v1730 = vsel %vm955, %v1723, 0.0
        %1731 = vadd.xlane.f32.xlu0 %v1730
        %v1732 = vpop.xlane.xlu0 %1731
        %v1733 = vrcp.pop %v1726
        %v1734 = vrcp.pop %v1729
        %v1735 = vrcp.pop %v1732
        %v1736 = vmul.f32 %v1719, %v1733
        %v1737 = vmul.f32 %v1721, %v1734
        %v1738 = vmul.f32 %v1723, %v1735
        %v1739 = vpack.c.bf16 %v1737, %v1736
        %v1740 = vpack.c.bf16 %v1738, %v1738
        %v1742 = vsel %vm955, %v1739, 0
        %v1745 = vsel %vm955, %v1740, 0
        %1747 = vmatprep.subr.bf16.mxu0 0
        %1748 = vmatpush1.bf16.msra.mxu0 0
        %1749 = vmatprep.subr.bf16.mxu0 0
        %1750 = vmatpush1.bf16.msra.mxu0 0
        %1751 = vmatprep.subr.bf16.mxu0 0
        %1752 = vmatpush1.bf16.msra.mxu0 0
        %1753 = vmatprep.subr.bf16.mxu0 0
        %1754 = vmatpush1.bf16.msra.mxu0 0
        %1755 = vmatprep.subr.bf16.mxu0 0
        %1756 = vmatpush1.bf16.msra.mxu0 0
        %1757 = vmatprep.subr.bf16.mxu0 0
        %1758 = vmatpush1.bf16.msra.mxu0 0
        %1759 = vmatprep.subr.bf16.mxu0 0
        %1760 = vmatpush1.bf16.msra.mxu0 %v1600
        %1761 = vmatprep.subr.bf16.mxu0 0
        %1762 = vmatpush1.bf16.msra.mxu0 %v1506
        %1763 = vmatprep.subr.bf16.mxu0 0
        %1764 = vmatpush2.bf16.msra.mxu0 0
        %1765 = vmatprep.subr.bf16.mxu0 0
        %1766 = vmatpush2.bf16.msra.mxu0 0
        %1767 = vmatprep.subr.bf16.mxu0 0
        %1768 = vmatpush2.bf16.msra.mxu0 0
        %1769 = vmatprep.subr.bf16.mxu0 0
        %1770 = vmatpush2.bf16.msra.mxu0 0
        %1771 = vmatprep.subr.bf16.mxu0 0
        %1772 = vmatpush2.bf16.msra.mxu0 0
        %1773 = vmatprep.subr.bf16.mxu0 0
        %1774 = vmatpush2.bf16.msra.mxu0 0
        %1775 = vmatprep.subr.bf16.mxu0 0
        %1776 = vmatpush2.bf16.msra.mxu0 0
        %1777 = vmatprep.subr.bf16.mxu0 0
        %1778 = vmatpush2.bf16.msra.mxu0 0
        %1779 = vmatprep.mubr.bf16.mxu0 0
        %1780 = vmatmul.mubr.bf16.gmra.mxu0 %v1742
        %v1781 = vpop.f32.mrf.mxu0
        %v1782 = vadd.f32 0.0, %v1781
        %v1783 = vpop.f32.mrf.mxu0
        %v1784 = vpop.f32.mrf.mxu0
        %v1785 = vadd.f32 0.0, %v1784
        %v1786 = vpop.f32.mrf.mxu0
        %1787 = vmatprep.mubr.bf16.mxu0 0
        %1788 = vmatmul.mubr.bf16.gmra.mxu0 %v1745
        %v1789 = vpop.f32.mrf.mxu0
        %v1790 = vadd.f32 0.0, %v1789
        %v1791 = vpop.f32.mrf.mxu0
        %v1792 = vpop.f32.mrf.mxu0
        %v1793 = vpop.f32.mrf.mxu0
        %1794 = vdwg.mxu0
        %v1795 = vmul.f32 %v1782, %v861
        %v1796 = vmul.f32 %v1785, %v861
        %v1797 = vmul.f32 %v1790, %v861
        %v1798 = vadd.f32 %v1653, %v1795
        %v1799 = vadd.f32 %v1654, %v1796
        %v1800 = vadd.f32 %v1655, %v1797
        %v1801 = vmul.bf16 %v1496, %v874
        %v1802 = vmul.bf16 %v1497, %v874
        %1803 = vmatprep.subr.bf16.mxu0 0
        %1804 = vmatpush1.bf16.xpose.msra.mxu0 0
        %1805 = vmatprep.subr.bf16.mxu0 0
        %1806 = vmatpush1.bf16.xpose.msra.mxu0 0
        %1807 = vmatprep.subr.bf16.mxu0 0
        %1808 = vmatpush1.bf16.xpose.msra.mxu0 0
        %1809 = vmatprep.subr.bf16.mxu0 0
        %1810 = vmatpush1.bf16.xpose.msra.mxu0 0
        %1811 = vmatprep.subr.bf16.mxu0 0
        %1812 = vmatpush1.bf16.xpose.msra.mxu0 0
        %1813 = vmatprep.subr.bf16.mxu0 0
        %1814 = vmatpush1.bf16.xpose.msra.mxu0 0
        %1815 = vmatprep.subr.bf16.mxu0 0
        %1816 = vmatpush1.bf16.xpose.msra.mxu0 %v1502
        %1817 = vmatprep.subr.bf16.mxu0 0
        %1818 = vmatpush1.bf16.xpose.msra.mxu0 %v1501
        %1819 = vmatprep.subr.bf16.mxu0 0
        %1820 = vmatpush2.bf16.xpose.msra.mxu0 0
        %1821 = vmatprep.subr.bf16.mxu0 0
        %1822 = vmatpush2.bf16.xpose.msra.mxu0 0
        %1823 = vmatprep.subr.bf16.mxu0 0
        %1824 = vmatpush2.bf16.xpose.msra.mxu0 0
        %1825 = vmatprep.subr.bf16.mxu0 0
        %1826 = vmatpush2.bf16.xpose.msra.mxu0 0
        %1827 = vmatprep.subr.bf16.mxu0 0
        %1828 = vmatpush2.bf16.xpose.msra.mxu0 0
        %1829 = vmatprep.subr.bf16.mxu0 0
        %1830 = vmatpush2.bf16.xpose.msra.mxu0 0
        %1831 = vmatprep.subr.bf16.mxu0 0
        %1832 = vmatpush2.bf16.xpose.msra.mxu0 0
        %1833 = vmatprep.subr.bf16.mxu0 0
        %1834 = vmatpush2.bf16.xpose.msra.mxu0 0
        %1835 = vmatprep.mubr.bf16.mxu0 0
        %1836 = vmatmul.mubr.bf16.gmra.mxu0 %v1801
        %v1837 = vpop.f32.mrf.mxu0
        %v1838 = vadd.f32 %v887, %v1837
        %v1839 = vpop.f32.mrf.mxu0
        %v1840 = vpop.f32.mrf.mxu0
        %v1841 = vadd.f32 %v888, %v1840
        %v1842 = vpop.f32.mrf.mxu0
        %1843 = vmatprep.mubr.bf16.mxu0 0
        %1844 = vmatmul.mubr.bf16.gmra.mxu0 %v1802
        %v1845 = vpop.f32.mrf.mxu0
        %v1846 = vadd.f32 %v889, %v1845
        %v1847 = vpop.f32.mrf.mxu0
        %v1848 = vpop.f32.mrf.mxu0
        %v1849 = vpop.f32.mrf.mxu0
        %1850 = vdwg.mxu0
        %v1851 = vsel %vm955, %v1838, -inf
        %1852 = vmax.xlane.f32.xlu0 %v1851
        %v1853 = vpop.xlane.xlu0 %1852
        %v1854 = vsel %vm955, %v1841, -inf
        %1855 = vmax.xlane.f32.xlu0 %v1854
        %v1856 = vpop.xlane.xlu0 %1855
        %v1857 = vsel %vm955, %v1846, -inf
        %1858 = vmax.xlane.f32.xlu0 %v1857
        %v1859 = vpop.xlane.xlu0 %1858
        %v1860 = vsub.f32 %v1838, %v1853
        %v1861 = vsub.f32 %v1841, %v1856
        %v1862 = vsub.f32 %v1846, %v1859
        %v1863 = vmul.f32 %v1860, 1.442695
        %v1864 = vpow.pop %v1863
        %v1865 = vmul.f32 %v1861, 1.442695
        %v1866 = vpow.pop %v1865
        %v1867 = vmul.f32 %v1862, 1.442695
        %v1868 = vpow.pop %v1867
        %v1869 = vsel %vm955, %v1864, 0.0
        %1870 = vadd.xlane.f32.xlu0 %v1869
        %v1871 = vpop.xlane.xlu0 %1870
        %v1872 = vsel %vm955, %v1866, 0.0
        %1873 = vadd.xlane.f32.xlu0 %v1872
        %v1874 = vpop.xlane.xlu0 %1873
        %v1875 = vsel %vm955, %v1868, 0.0
        %1876 = vadd.xlane.f32.xlu0 %v1875
        %v1877 = vpop.xlane.xlu0 %1876
        %v1878 = vrcp.pop %v1871
        %v1879 = vrcp.pop %v1874
        %v1880 = vrcp.pop %v1877
        %v1881 = vmul.f32 %v1864, %v1878
        %v1882 = vmul.f32 %v1866, %v1879
        %v1883 = vmul.f32 %v1868, %v1880
        %v1884 = vpack.c.bf16 %v1882, %v1881
        %v1885 = vpack.c.bf16 %v1883, %v1883
        %v1887 = vsel %vm955, %v1884, 0
        %v1890 = vsel %vm955, %v1885, 0
        %1892 = vmatprep.subr.bf16.mxu0 0
        %1893 = vmatpush1.bf16.msra.mxu0 0
        %1894 = vmatprep.subr.bf16.mxu0 0
        %1895 = vmatpush1.bf16.msra.mxu0 0
        %1896 = vmatprep.subr.bf16.mxu0 0
        %1897 = vmatpush1.bf16.msra.mxu0 0
        %1898 = vmatprep.subr.bf16.mxu0 0
        %1899 = vmatpush1.bf16.msra.mxu0 0
        %1900 = vmatprep.subr.bf16.mxu0 0
        %1901 = vmatpush1.bf16.msra.mxu0 0
        %1902 = vmatprep.subr.bf16.mxu0 0
        %1903 = vmatpush1.bf16.msra.mxu0 0
        %1904 = vmatprep.subr.bf16.mxu0 0
        %1905 = vmatpush1.bf16.msra.mxu0 %v1600
        %1906 = vmatprep.subr.bf16.mxu0 0
        %1907 = vmatpush1.bf16.msra.mxu0 %v1506
        %1908 = vmatprep.subr.bf16.mxu0 0
        %1909 = vmatpush2.bf16.msra.mxu0 0
        %1910 = vmatprep.subr.bf16.mxu0 0
        %1911 = vmatpush2.bf16.msra.mxu0 0
        %1912 = vmatprep.subr.bf16.mxu0 0
        %1913 = vmatpush2.bf16.msra.mxu0 0
        %1914 = vmatprep.subr.bf16.mxu0 0
        %1915 = vmatpush2.bf16.msra.mxu0 0
        %1916 = vmatprep.subr.bf16.mxu0 0
        %1917 = vmatpush2.bf16.msra.mxu0 0
        %1918 = vmatprep.subr.bf16.mxu0 0
        %1919 = vmatpush2.bf16.msra.mxu0 0
        %1920 = vmatprep.subr.bf16.mxu0 0
        %1921 = vmatpush2.bf16.msra.mxu0 0
        %1922 = vmatprep.subr.bf16.mxu0 0
        %1923 = vmatpush2.bf16.msra.mxu0 0
        %1924 = vmatprep.mubr.bf16.mxu0 0
        %1925 = vmatmul.mubr.bf16.gmra.mxu0 %v1887
        %v1926 = vpop.f32.mrf.mxu0
        %v1927 = vadd.f32 0.0, %v1926
        %v1928 = vpop.f32.mrf.mxu0
        %v1929 = vpop.f32.mrf.mxu0
        %v1930 = vadd.f32 0.0, %v1929
        %v1931 = vpop.f32.mrf.mxu0
        %1932 = vmatprep.mubr.bf16.mxu0 0
        %1933 = vmatmul.mubr.bf16.gmra.mxu0 %v1890
        %v1934 = vpop.f32.mrf.mxu0
        %v1935 = vadd.f32 0.0, %v1934
        %v1936 = vpop.f32.mrf.mxu0
        %v1937 = vpop.f32.mrf.mxu0
        %v1938 = vpop.f32.mrf.mxu0
        %1939 = vdwg.mxu0
        %v1940 = vmul.f32 %v1927, %v866
        %v1941 = vmul.f32 %v1930, %v866
        %v1942 = vmul.f32 %v1935, %v866
        %v1943 = vadd.f32 %v1798, %v1940
        %v1944 = vadd.f32 %v1799, %v1941
        %v1945 = vadd.f32 %v1800, %v1942
        %v1946 = vmul.bf16 %v1496, %v875
        %v1947 = vmul.bf16 %v1497, %v875
        %1948 = vmatprep.subr.bf16.mxu0 0
        %1949 = vmatpush1.bf16.xpose.msra.mxu0 0
        %1950 = vmatprep.subr.bf16.mxu0 0
        %1951 = vmatpush1.bf16.xpose.msra.mxu0 0
        %1952 = vmatprep.subr.bf16.mxu0 0
        %1953 = vmatpush1.bf16.xpose.msra.mxu0 0
        %1954 = vmatprep.subr.bf16.mxu0 0
        %1955 = vmatpush1.bf16.xpose.msra.mxu0 0
        %1956 = vmatprep.subr.bf16.mxu0 0
        %1957 = vmatpush1.bf16.xpose.msra.mxu0 0
        %1958 = vmatprep.subr.bf16.mxu0 0
        %1959 = vmatpush1.bf16.xpose.msra.mxu0 0
        %1960 = vmatprep.subr.bf16.mxu0 0
        %1961 = vmatpush1.bf16.xpose.msra.mxu0 %v1502
        %1962 = vmatprep.subr.bf16.mxu0 0
        %1963 = vmatpush1.bf16.xpose.msra.mxu0 %v1501
        %1964 = vmatprep.subr.bf16.mxu0 0
        %1965 = vmatpush2.bf16.xpose.msra.mxu0 0
        %1966 = vmatprep.subr.bf16.mxu0 0
        %1967 = vmatpush2.bf16.xpose.msra.mxu0 0
        %1968 = vmatprep.subr.bf16.mxu0 0
        %1969 = vmatpush2.bf16.xpose.msra.mxu0 0
        %1970 = vmatprep.subr.bf16.mxu0 0
        %1971 = vmatpush2.bf16.xpose.msra.mxu0 0
        %1972 = vmatprep.subr.bf16.mxu0 0
        %1973 = vmatpush2.bf16.xpose.msra.mxu0 0
        %1974 = vmatprep.subr.bf16.mxu0 0
        %1975 = vmatpush2.bf16.xpose.msra.mxu0 0
        %1976 = vmatprep.subr.bf16.mxu0 0
        %1977 = vmatpush2.bf16.xpose.msra.mxu0 0
        %1978 = vmatprep.subr.bf16.mxu0 0
        %1979 = vmatpush2.bf16.xpose.msra.mxu0 0
        %1980 = vmatprep.mubr.bf16.mxu0 0
        %1981 = vmatmul.mubr.bf16.gmra.mxu0 %v1946
        %v1982 = vpop.f32.mrf.mxu0
        %v1983 = vadd.f32 %v887, %v1982
        %v1984 = vpop.f32.mrf.mxu0
        %v1985 = vpop.f32.mrf.mxu0
        %v1986 = vadd.f32 %v888, %v1985
        %v1987 = vpop.f32.mrf.mxu0
        %1988 = vmatprep.mubr.bf16.mxu0 0
        %1989 = vmatmul.mubr.bf16.gmra.mxu0 %v1947
        %v1990 = vpop.f32.mrf.mxu0
        %v1991 = vadd.f32 %v889, %v1990
        %v1992 = vpop.f32.mrf.mxu0
        %v1993 = vpop.f32.mrf.mxu0
        %v1994 = vpop.f32.mrf.mxu0
        %1995 = vdwg.mxu0
        %v1996 = vsel %vm955, %v1983, -inf
        %1997 = vmax.xlane.f32.xlu0 %v1996
        %v1998 = vpop.xlane.xlu0 %1997
        %v1999 = vsel %vm955, %v1986, -inf
        %2000 = vmax.xlane.f32.xlu0 %v1999
        %v2001 = vpop.xlane.xlu0 %2000
        %v2002 = vsel %vm955, %v1991, -inf
        %2003 = vmax.xlane.f32.xlu0 %v2002
        %v2004 = vpop.xlane.xlu0 %2003
        %v2005 = vsub.f32 %v1983, %v1998
        %v2006 = vsub.f32 %v1986, %v2001
        %v2007 = vsub.f32 %v1991, %v2004
        %v2008 = vmul.f32 %v2005, 1.442695
        %v2009 = vpow.pop %v2008
        %v2010 = vmul.f32 %v2006, 1.442695
        %v2011 = vpow.pop %v2010
        %v2012 = vmul.f32 %v2007, 1.442695
        %v2013 = vpow.pop %v2012
        %v2014 = vsel %vm955, %v2009, 0.0
        %2015 = vadd.xlane.f32.xlu0 %v2014
        %v2016 = vpop.xlane.xlu0 %2015
        %v2017 = vsel %vm955, %v2011, 0.0
        %2018 = vadd.xlane.f32.xlu0 %v2017
        %v2019 = vpop.xlane.xlu0 %2018
        %v2020 = vsel %vm955, %v2013, 0.0
        %2021 = vadd.xlane.f32.xlu0 %v2020
        %v2022 = vpop.xlane.xlu0 %2021
        %v2023 = vrcp.pop %v2016
        %v2024 = vrcp.pop %v2019
        %v2025 = vrcp.pop %v2022
        %v2026 = vmul.f32 %v2009, %v2023
        %v2027 = vmul.f32 %v2011, %v2024
        %v2028 = vmul.f32 %v2013, %v2025
        %v2029 = vpack.c.bf16 %v2027, %v2026
        %v2030 = vpack.c.bf16 %v2028, %v2028
        %v2032 = vsel %vm955, %v2029, 0
        %v2035 = vsel %vm955, %v2030, 0
        %2037 = vmatprep.subr.bf16.mxu0 0
        %2038 = vmatpush1.bf16.msra.mxu0 0
        %2039 = vmatprep.subr.bf16.mxu0 0
        %2040 = vmatpush1.bf16.msra.mxu0 0
        %2041 = vmatprep.subr.bf16.mxu0 0
        %2042 = vmatpush1.bf16.msra.mxu0 0
        %2043 = vmatprep.subr.bf16.mxu0 0
        %2044 = vmatpush1.bf16.msra.mxu0 0
        %2045 = vmatprep.subr.bf16.mxu0 0
        %2046 = vmatpush1.bf16.msra.mxu0 0
        %2047 = vmatprep.subr.bf16.mxu0 0
        %2048 = vmatpush1.bf16.msra.mxu0 0
        %2049 = vmatprep.subr.bf16.mxu0 0
        %2050 = vmatpush1.bf16.msra.mxu0 %v1600
        %2051 = vmatprep.subr.bf16.mxu0 0
        %2052 = vmatpush1.bf16.msra.mxu0 %v1506
        %2053 = vmatprep.subr.bf16.mxu0 0
        %2054 = vmatpush2.bf16.msra.mxu0 0
        %2055 = vmatprep.subr.bf16.mxu0 0
        %2056 = vmatpush2.bf16.msra.mxu0 0
        %2057 = vmatprep.subr.bf16.mxu0 0
        %2058 = vmatpush2.bf16.msra.mxu0 0
        %2059 = vmatprep.subr.bf16.mxu0 0
        %2060 = vmatpush2.bf16.msra.mxu0 0
        %2061 = vmatprep.subr.bf16.mxu0 0
        %2062 = vmatpush2.bf16.msra.mxu0 0
        %2063 = vmatprep.subr.bf16.mxu0 0
        %2064 = vmatpush2.bf16.msra.mxu0 0
        %2065 = vmatprep.subr.bf16.mxu0 0
        %2066 = vmatpush2.bf16.msra.mxu0 0
        %2067 = vmatprep.subr.bf16.mxu0 0
        %2068 = vmatpush2.bf16.msra.mxu0 0
        %2069 = vmatprep.mubr.bf16.mxu0 0
        %2070 = vmatmul.mubr.bf16.gmra.mxu0 %v2032
        %v2071 = vpop.f32.mrf.mxu0
        %v2072 = vadd.f32 0.0, %v2071
        %v2073 = vpop.f32.mrf.mxu0
        %v2074 = vpop.f32.mrf.mxu0
        %v2075 = vadd.f32 0.0, %v2074
        %v2076 = vpop.f32.mrf.mxu0
        %2077 = vmatprep.mubr.bf16.mxu0 0
        %2078 = vmatmul.mubr.bf16.gmra.mxu0 %v2035
        %v2079 = vpop.f32.mrf.mxu0
        %v2080 = vadd.f32 0.0, %v2079
        %v2081 = vpop.f32.mrf.mxu0
        %v2082 = vpop.f32.mrf.mxu0
        %v2083 = vpop.f32.mrf.mxu0
        %2084 = vdwg.mxu0
        %v2085 = vmul.f32 %v2072, %v871
        %v2086 = vmul.f32 %v2075, %v871
        %v2087 = vmul.f32 %v2080, %v871
        %v2088 = vadd.f32 %v1943, %v2085
        %v2089 = vadd.f32 %v1944, %v2086
        %v2090 = vadd.f32 %v1945, %v2087
        %2091 = vst [vmem:[#allocation3 + $0x18] sm:$0xff] %v2088
        %2092 = vst [vmem:[#allocation3 + $0x20] sm:$0xff] %v2089
        %2093 = vst [vmem:[#allocation3 + $0x28] sm:$0xff] %v2090
        %v2094 = vld [vmem:[#allocation2 + $0x90] sm:$0xff]
        %v2095 = vld [vmem:[#allocation2 + $0xa8] sm:$0xff]
        %v2096 = vld [vmem:[#allocation2 + $0xc0] sm:$0xff]
        %v2097 = vpack.c.bf16 %v2095, %v2094
        %v2098 = vpack.c.bf16 %v2096, %v2096
        %v2099 = vld [vmem:[#allocation2 + $0x98] sm:$0xff]
        %v2100 = vld [vmem:[#allocation2 + $0xb0] sm:$0xff]
        %v2101 = vld [vmem:[#allocation2 + $0xc8] sm:$0xff]
        %v2102 = vpack.c.bf16 %v2100, %v2099
        %v2103 = vpack.c.bf16 %v2101, %v2101
        %v2104 = vld [vmem:[#allocation2 + $0xa0] sm:$0xff]
        %v2105 = vld [vmem:[#allocation2 + $0xb8] sm:$0xff]
        %v2106 = vld [vmem:[#allocation2 + $0xd0] sm:$0xff]
        %v2107 = vpack.c.bf16 %v2105, %v2104
        %v2108 = vpack.c.bf16 %v2106, %v2106
        %v2109 = vmul.bf16 %v2097, %v872
        %v2110 = vmul.bf16 %v2098, %v872
        %2111 = vmatprep.subr.bf16.mxu0 0
        %2112 = vmatpush1.bf16.xpose.msra.mxu0 0
        %2113 = vmatprep.subr.bf16.mxu0 0
        %2114 = vmatpush1.bf16.xpose.msra.mxu0 0
        %2115 = vmatprep.subr.bf16.mxu0 0
        %2116 = vmatpush1.bf16.xpose.msra.mxu0 0
        %2117 = vmatprep.subr.bf16.mxu0 0
        %2118 = vmatpush1.bf16.xpose.msra.mxu0 0
        %2119 = vmatprep.subr.bf16.mxu0 0
        %2120 = vmatpush1.bf16.xpose.msra.mxu0 0
        %2121 = vmatprep.subr.bf16.mxu0 0
        %2122 = vmatpush1.bf16.xpose.msra.mxu0 0
        %2123 = vmatprep.subr.bf16.mxu0 0
        %2124 = vmatpush1.bf16.xpose.msra.mxu0 %v2103
        %2125 = vmatprep.subr.bf16.mxu0 0
        %2126 = vmatpush1.bf16.xpose.msra.mxu0 %v2102
        %2127 = vmatprep.subr.bf16.mxu0 0
        %2128 = vmatpush2.bf16.xpose.msra.mxu0 0
        %2129 = vmatprep.subr.bf16.mxu0 0
        %2130 = vmatpush2.bf16.xpose.msra.mxu0 0
        %2131 = vmatprep.subr.bf16.mxu0 0
        %2132 = vmatpush2.bf16.xpose.msra.mxu0 0
        %2133 = vmatprep.subr.bf16.mxu0 0
        %2134 = vmatpush2.bf16.xpose.msra.mxu0 0
        %2135 = vmatprep.subr.bf16.mxu0 0
        %2136 = vmatpush2.bf16.xpose.msra.mxu0 0
        %2137 = vmatprep.subr.bf16.mxu0 0
        %2138 = vmatpush2.bf16.xpose.msra.mxu0 0
        %2139 = vmatprep.subr.bf16.mxu0 0
        %2140 = vmatpush2.bf16.xpose.msra.mxu0 0
        %2141 = vmatprep.subr.bf16.mxu0 0
        %2142 = vmatpush2.bf16.xpose.msra.mxu0 0
        %2143 = vmatprep.mubr.bf16.mxu0 0
        %2144 = vmatmul.mubr.bf16.gmra.mxu0 %v2109
        %v2145 = vpop.f32.mrf.mxu0
        %v2146 = vadd.f32 %v887, %v2145
        %v2147 = vpop.f32.mrf.mxu0
        %v2148 = vpop.f32.mrf.mxu0
        %v2149 = vadd.f32 %v888, %v2148
        %v2150 = vpop.f32.mrf.mxu0
        %2151 = vmatprep.mubr.bf16.mxu0 0
        %2152 = vmatmul.mubr.bf16.gmra.mxu0 %v2110
        %v2153 = vpop.f32.mrf.mxu0
        %v2154 = vadd.f32 %v889, %v2153
        %v2155 = vpop.f32.mrf.mxu0
        %v2156 = vpop.f32.mrf.mxu0
        %v2157 = vpop.f32.mrf.mxu0
        %2158 = vdwg.mxu0
        %v2159 = vsel %vm955, %v2146, -inf
        %2160 = vmax.xlane.f32.xlu0 %v2159
        %v2161 = vpop.xlane.xlu0 %2160
        %v2162 = vsel %vm955, %v2149, -inf
        %2163 = vmax.xlane.f32.xlu0 %v2162
        %v2164 = vpop.xlane.xlu0 %2163
        %v2165 = vsel %vm955, %v2154, -inf
        %2166 = vmax.xlane.f32.xlu0 %v2165
        %v2167 = vpop.xlane.xlu0 %2166
        %v2168 = vsub.f32 %v2146, %v2161
        %v2169 = vsub.f32 %v2149, %v2164
        %v2170 = vsub.f32 %v2154, %v2167
        %v2171 = vmul.f32 %v2168, 1.442695
        %v2172 = vpow.pop %v2171
        %v2173 = vmul.f32 %v2169, 1.442695
        %v2174 = vpow.pop %v2173
        %v2175 = vmul.f32 %v2170, 1.442695
        %v2176 = vpow.pop %v2175
        %v2177 = vsel %vm955, %v2172, 0.0
        %2178 = vadd.xlane.f32.xlu0 %v2177
        %v2179 = vpop.xlane.xlu0 %2178
        %v2180 = vsel %vm955, %v2174, 0.0
        %2181 = vadd.xlane.f32.xlu0 %v2180
        %v2182 = vpop.xlane.xlu0 %2181
        %v2183 = vsel %vm955, %v2176, 0.0
        %2184 = vadd.xlane.f32.xlu0 %v2183
        %v2185 = vpop.xlane.xlu0 %2184
        %v2186 = vrcp.pop %v2179
        %v2187 = vrcp.pop %v2182
        %v2188 = vrcp.pop %v2185
        %v2189 = vmul.f32 %v2172, %v2186
        %v2190 = vmul.f32 %v2174, %v2187
        %v2191 = vmul.f32 %v2176, %v2188
        %v2192 = vpack.c.bf16 %v2190, %v2189
        %v2193 = vpack.c.bf16 %v2191, %v2191
        %v2195 = vsel %vm955, %v2192, 0
        %v2198 = vsel %vm955, %v2193, 0
        %v2201 = vsel %vm997, %v2108, 0
        %2203 = vmatprep.subr.bf16.mxu0 0
        %2204 = vmatpush1.bf16.msra.mxu0 0
        %2205 = vmatprep.subr.bf16.mxu0 0
        %2206 = vmatpush1.bf16.msra.mxu0 0
        %2207 = vmatprep.subr.bf16.mxu0 0
        %2208 = vmatpush1.bf16.msra.mxu0 0
        %2209 = vmatprep.subr.bf16.mxu0 0
        %2210 = vmatpush1.bf16.msra.mxu0 0
        %2211 = vmatprep.subr.bf16.mxu0 0
        %2212 = vmatpush1.bf16.msra.mxu0 0
        %2213 = vmatprep.subr.bf16.mxu0 0
        %2214 = vmatpush1.bf16.msra.mxu0 0
        %2215 = vmatprep.subr.bf16.mxu0 0
        %2216 = vmatpush1.bf16.msra.mxu0 %v2201
        %2217 = vmatprep.subr.bf16.mxu0 0
        %2218 = vmatpush1.bf16.msra.mxu0 %v2107
        %2219 = vmatprep.subr.bf16.mxu0 0
        %2220 = vmatpush2.bf16.msra.mxu0 0
        %2221 = vmatprep.subr.bf16.mxu0 0
        %2222 = vmatpush2.bf16.msra.mxu0 0
        %2223 = vmatprep.subr.bf16.mxu0 0
        %2224 = vmatpush2.bf16.msra.mxu0 0
        %2225 = vmatprep.subr.bf16.mxu0 0
        %2226 = vmatpush2.bf16.msra.mxu0 0
        %2227 = vmatprep.subr.bf16.mxu0 0
        %2228 = vmatpush2.bf16.msra.mxu0 0
        %2229 = vmatprep.subr.bf16.mxu0 0
        %2230 = vmatpush2.bf16.msra.mxu0 0
        %2231 = vmatprep.subr.bf16.mxu0 0
        %2232 = vmatpush2.bf16.msra.mxu0 0
        %2233 = vmatprep.subr.bf16.mxu0 0
        %2234 = vmatpush2.bf16.msra.mxu0 0
        %2235 = vmatprep.mubr.bf16.mxu0 0
        %2236 = vmatmul.mubr.bf16.gmra.mxu0 %v2195
        %v2237 = vpop.f32.mrf.mxu0
        %v2238 = vadd.f32 0.0, %v2237
        %v2239 = vpop.f32.mrf.mxu0
        %v2240 = vpop.f32.mrf.mxu0
        %v2241 = vadd.f32 0.0, %v2240
        %v2242 = vpop.f32.mrf.mxu0
        %2243 = vmatprep.mubr.bf16.mxu0 0
        %2244 = vmatmul.mubr.bf16.gmra.mxu0 %v2198
        %v2245 = vpop.f32.mrf.mxu0
        %v2246 = vadd.f32 0.0, %v2245
        %v2247 = vpop.f32.mrf.mxu0
        %v2248 = vpop.f32.mrf.mxu0
        %v2249 = vpop.f32.mrf.mxu0
        %2250 = vdwg.mxu0
        %v2251 = vmul.f32 %v2238, %v856
        %v2252 = vmul.f32 %v2241, %v856
        %v2253 = vmul.f32 %v2246, %v856
        %v2254 = vadd.f32 %v2251, 0.0
        %v2255 = vadd.f32 %v2252, 0.0
        %v2256 = vadd.f32 %v2253, 0.0
        %v2257 = vmul.bf16 %v2097, %v873
        %v2258 = vmul.bf16 %v2098, %v873
        %2259 = vmatprep.subr.bf16.mxu0 0
        %2260 = vmatpush1.bf16.xpose.msra.mxu0 0
        %2261 = vmatprep.subr.bf16.mxu0 0
        %2262 = vmatpush1.bf16.xpose.msra.mxu0 0
        %2263 = vmatprep.subr.bf16.mxu0 0
        %2264 = vmatpush1.bf16.xpose.msra.mxu0 0
        %2265 = vmatprep.subr.bf16.mxu0 0
        %2266 = vmatpush1.bf16.xpose.msra.mxu0 0
        %2267 = vmatprep.subr.bf16.mxu0 0
        %2268 = vmatpush1.bf16.xpose.msra.mxu0 0
        %2269 = vmatprep.subr.bf16.mxu0 0
        %2270 = vmatpush1.bf16.xpose.msra.mxu0 0
        %2271 = vmatprep.subr.bf16.mxu0 0
        %2272 = vmatpush1.bf16.xpose.msra.mxu0 %v2103
        %2273 = vmatprep.subr.bf16.mxu0 0
        %2274 = vmatpush1.bf16.xpose.msra.mxu0 %v2102
        %2275 = vmatprep.subr.bf16.mxu0 0
        %2276 = vmatpush2.bf16.xpose.msra.mxu0 0
        %2277 = vmatprep.subr.bf16.mxu0 0
        %2278 = vmatpush2.bf16.xpose.msra.mxu0 0
        %2279 = vmatprep.subr.bf16.mxu0 0
        %2280 = vmatpush2.bf16.xpose.msra.mxu0 0
        %2281 = vmatprep.subr.bf16.mxu0 0
        %2282 = vmatpush2.bf16.xpose.msra.mxu0 0
        %2283 = vmatprep.subr.bf16.mxu0 0
        %2284 = vmatpush2.bf16.xpose.msra.mxu0 0
        %2285 = vmatprep.subr.bf16.mxu0 0
        %2286 = vmatpush2.bf16.xpose.msra.mxu0 0
        %2287 = vmatprep.subr.bf16.mxu0 0
        %2288 = vmatpush2.bf16.xpose.msra.mxu0 0
        %2289 = vmatprep.subr.bf16.mxu0 0
        %2290 = vmatpush2.bf16.xpose.msra.mxu0 0
        %2291 = vmatprep.mubr.bf16.mxu0 0
        %2292 = vmatmul.mubr.bf16.gmra.mxu0 %v2257
        %v2293 = vpop.f32.mrf.mxu0
        %v2294 = vadd.f32 %v887, %v2293
        %v2295 = vpop.f32.mrf.mxu0
        %v2296 = vpop.f32.mrf.mxu0
        %v2297 = vadd.f32 %v888, %v2296
        %v2298 = vpop.f32.mrf.mxu0
        %2299 = vmatprep.mubr.bf16.mxu0 0
        %2300 = vmatmul.mubr.bf16.gmra.mxu0 %v2258
        %v2301 = vpop.f32.mrf.mxu0
        %v2302 = vadd.f32 %v889, %v2301
        %v2303 = vpop.f32.mrf.mxu0
        %v2304 = vpop.f32.mrf.mxu0
        %v2305 = vpop.f32.mrf.mxu0
        %2306 = vdwg.mxu0
        %v2307 = vsel %vm955, %v2294, -inf
        %2308 = vmax.xlane.f32.xlu0 %v2307
        %v2309 = vpop.xlane.xlu0 %2308
        %v2310 = vsel %vm955, %v2297, -inf
        %2311 = vmax.xlane.f32.xlu0 %v2310
        %v2312 = vpop.xlane.xlu0 %2311
        %v2313 = vsel %vm955, %v2302, -inf
        %2314 = vmax.xlane.f32.xlu0 %v2313
        %v2315 = vpop.xlane.xlu0 %2314
        %v2316 = vsub.f32 %v2294, %v2309
        %v2317 = vsub.f32 %v2297, %v2312
        %v2318 = vsub.f32 %v2302, %v2315
        %v2319 = vmul.f32 %v2316, 1.442695
        %v2320 = vpow.pop %v2319
        %v2321 = vmul.f32 %v2317, 1.442695
        %v2322 = vpow.pop %v2321
        %v2323 = vmul.f32 %v2318, 1.442695
        %v2324 = vpow.pop %v2323
        %v2325 = vsel %vm955, %v2320, 0.0
        %2326 = vadd.xlane.f32.xlu0 %v2325
        %v2327 = vpop.xlane.xlu0 %2326
        %v2328 = vsel %vm955, %v2322, 0.0
        %2329 = vadd.xlane.f32.xlu0 %v2328
        %v2330 = vpop.xlane.xlu0 %2329
        %v2331 = vsel %vm955, %v2324, 0.0
        %2332 = vadd.xlane.f32.xlu0 %v2331
        %v2333 = vpop.xlane.xlu0 %2332
        %v2334 = vrcp.pop %v2327
        %v2335 = vrcp.pop %v2330
        %v2336 = vrcp.pop %v2333
        %v2337 = vmul.f32 %v2320, %v2334
        %v2338 = vmul.f32 %v2322, %v2335
        %v2339 = vmul.f32 %v2324, %v2336
        %v2340 = vpack.c.bf16 %v2338, %v2337
        %v2341 = vpack.c.bf16 %v2339, %v2339
        %v2343 = vsel %vm955, %v2340, 0
        %v2346 = vsel %vm955, %v2341, 0
        %2348 = vmatprep.subr.bf16.mxu0 0
        %2349 = vmatpush1.bf16.msra.mxu0 0
        %2350 = vmatprep.subr.bf16.mxu0 0
        %2351 = vmatpush1.bf16.msra.mxu0 0
        %2352 = vmatprep.subr.bf16.mxu0 0
        %2353 = vmatpush1.bf16.msra.mxu0 0
        %2354 = vmatprep.subr.bf16.mxu0 0
        %2355 = vmatpush1.bf16.msra.mxu0 0
        %2356 = vmatprep.subr.bf16.mxu0 0
        %2357 = vmatpush1.bf16.msra.mxu0 0
        %2358 = vmatprep.subr.bf16.mxu0 0
        %2359 = vmatpush1.bf16.msra.mxu0 0
        %2360 = vmatprep.subr.bf16.mxu0 0
        %2361 = vmatpush1.bf16.msra.mxu0 %v2201
        %2362 = vmatprep.subr.bf16.mxu0 0
        %2363 = vmatpush1.bf16.msra.mxu0 %v2107
        %2364 = vmatprep.subr.bf16.mxu0 0
        %2365 = vmatpush2.bf16.msra.mxu0 0
        %2366 = vmatprep.subr.bf16.mxu0 0
        %2367 = vmatpush2.bf16.msra.mxu0 0
        %2368 = vmatprep.subr.bf16.mxu0 0
        %2369 = vmatpush2.bf16.msra.mxu0 0
        %2370 = vmatprep.subr.bf16.mxu0 0
        %2371 = vmatpush2.bf16.msra.mxu0 0
        %2372 = vmatprep.subr.bf16.mxu0 0
        %2373 = vmatpush2.bf16.msra.mxu0 0
        %2374 = vmatprep.subr.bf16.mxu0 0
        %2375 = vmatpush2.bf16.msra.mxu0 0
        %2376 = vmatprep.subr.bf16.mxu0 0
        %2377 = vmatpush2.bf16.msra.mxu0 0
        %2378 = vmatprep.subr.bf16.mxu0 0
        %2379 = vmatpush2.bf16.msra.mxu0 0
        %2380 = vmatprep.mubr.bf16.mxu0 0
        %2381 = vmatmul.mubr.bf16.gmra.mxu0 %v2343
        %v2382 = vpop.f32.mrf.mxu0
        %v2383 = vadd.f32 0.0, %v2382
        %v2384 = vpop.f32.mrf.mxu0
        %v2385 = vpop.f32.mrf.mxu0
        %v2386 = vadd.f32 0.0, %v2385
        %v2387 = vpop.f32.mrf.mxu0
        %2388 = vmatprep.mubr.bf16.mxu0 0
        %2389 = vmatmul.mubr.bf16.gmra.mxu0 %v2346
        %v2390 = vpop.f32.mrf.mxu0
        %v2391 = vadd.f32 0.0, %v2390
        %v2392 = vpop.f32.mrf.mxu0
        %v2393 = vpop.f32.mrf.mxu0
        %v2394 = vpop.f32.mrf.mxu0
        %2395 = vdwg.mxu0
        %v2396 = vmul.f32 %v2383, %v861
        %v2397 = vmul.f32 %v2386, %v861
        %v2398 = vmul.f32 %v2391, %v861
        %v2399 = vadd.f32 %v2254, %v2396
        %v2400 = vadd.f32 %v2255, %v2397
        %v2401 = vadd.f32 %v2256, %v2398
        %v2402 = vmul.bf16 %v2097, %v874
        %v2403 = vmul.bf16 %v2098, %v874
        %2404 = vmatprep.subr.bf16.mxu0 0
        %2405 = vmatpush1.bf16.xpose.msra.mxu0 0
        %2406 = vmatprep.subr.bf16.mxu0 0
        %2407 = vmatpush1.bf16.xpose.msra.mxu0 0
        %2408 = vmatprep.subr.bf16.mxu0 0
        %2409 = vmatpush1.bf16.xpose.msra.mxu0 0
        %2410 = vmatprep.subr.bf16.mxu0 0
        %2411 = vmatpush1.bf16.xpose.msra.mxu0 0
        %2412 = vmatprep.subr.bf16.mxu0 0
        %2413 = vmatpush1.bf16.xpose.msra.mxu0 0
        %2414 = vmatprep.subr.bf16.mxu0 0
        %2415 = vmatpush1.bf16.xpose.msra.mxu0 0
        %2416 = vmatprep.subr.bf16.mxu0 0
        %2417 = vmatpush1.bf16.xpose.msra.mxu0 %v2103
        %2418 = vmatprep.subr.bf16.mxu0 0
        %2419 = vmatpush1.bf16.xpose.msra.mxu0 %v2102
        %2420 = vmatprep.subr.bf16.mxu0 0
        %2421 = vmatpush2.bf16.xpose.msra.mxu0 0
        %2422 = vmatprep.subr.bf16.mxu0 0
        %2423 = vmatpush2.bf16.xpose.msra.mxu0 0
        %2424 = vmatprep.subr.bf16.mxu0 0
        %2425 = vmatpush2.bf16.xpose.msra.mxu0 0
        %2426 = vmatprep.subr.bf16.mxu0 0
        %2427 = vmatpush2.bf16.xpose.msra.mxu0 0
        %2428 = vmatprep.subr.bf16.mxu0 0
        %2429 = vmatpush2.bf16.xpose.msra.mxu0 0
        %2430 = vmatprep.subr.bf16.mxu0 0
        %2431 = vmatpush2.bf16.xpose.msra.mxu0 0
        %2432 = vmatprep.subr.bf16.mxu0 0
        %2433 = vmatpush2.bf16.xpose.msra.mxu0 0
        %2434 = vmatprep.subr.bf16.mxu0 0
        %2435 = vmatpush2.bf16.xpose.msra.mxu0 0
        %2436 = vmatprep.mubr.bf16.mxu0 0
        %2437 = vmatmul.mubr.bf16.gmra.mxu0 %v2402
        %v2438 = vpop.f32.mrf.mxu0
        %v2439 = vadd.f32 %v887, %v2438
        %v2440 = vpop.f32.mrf.mxu0
        %v2441 = vpop.f32.mrf.mxu0
        %v2442 = vadd.f32 %v888, %v2441
        %v2443 = vpop.f32.mrf.mxu0
        %2444 = vmatprep.mubr.bf16.mxu0 0
        %2445 = vmatmul.mubr.bf16.gmra.mxu0 %v2403
        %v2446 = vpop.f32.mrf.mxu0
        %v2447 = vadd.f32 %v889, %v2446
        %v2448 = vpop.f32.mrf.mxu0
        %v2449 = vpop.f32.mrf.mxu0
        %v2450 = vpop.f32.mrf.mxu0
        %2451 = vdwg.mxu0
        %v2452 = vsel %vm955, %v2439, -inf
        %2453 = vmax.xlane.f32.xlu0 %v2452
        %v2454 = vpop.xlane.xlu0 %2453
        %v2455 = vsel %vm955, %v2442, -inf
        %2456 = vmax.xlane.f32.xlu0 %v2455
        %v2457 = vpop.xlane.xlu0 %2456
        %v2458 = vsel %vm955, %v2447, -inf
        %2459 = vmax.xlane.f32.xlu0 %v2458
        %v2460 = vpop.xlane.xlu0 %2459
        %v2461 = vsub.f32 %v2439, %v2454
        %v2462 = vsub.f32 %v2442, %v2457
        %v2463 = vsub.f32 %v2447, %v2460
        %v2464 = vmul.f32 %v2461, 1.442695
        %v2465 = vpow.pop %v2464
        %v2466 = vmul.f32 %v2462, 1.442695
        %v2467 = vpow.pop %v2466
        %v2468 = vmul.f32 %v2463, 1.442695
        %v2469 = vpow.pop %v2468
        %v2470 = vsel %vm955, %v2465, 0.0
        %2471 = vadd.xlane.f32.xlu0 %v2470
        %v2472 = vpop.xlane.xlu0 %2471
        %v2473 = vsel %vm955, %v2467, 0.0
        %2474 = vadd.xlane.f32.xlu0 %v2473
        %v2475 = vpop.xlane.xlu0 %2474
        %v2476 = vsel %vm955, %v2469, 0.0
        %2477 = vadd.xlane.f32.xlu0 %v2476
        %v2478 = vpop.xlane.xlu0 %2477
        %v2479 = vrcp.pop %v2472
        %v2480 = vrcp.pop %v2475
        %v2481 = vrcp.pop %v2478
        %v2482 = vmul.f32 %v2465, %v2479
        %v2483 = vmul.f32 %v2467, %v2480
        %v2484 = vmul.f32 %v2469, %v2481
        %v2485 = vpack.c.bf16 %v2483, %v2482
        %v2486 = vpack.c.bf16 %v2484, %v2484
        %v2488 = vsel %vm955, %v2485, 0
        %v2491 = vsel %vm955, %v2486, 0
        %2493 = vmatprep.subr.bf16.mxu0 0
        %2494 = vmatpush1.bf16.msra.mxu0 0
        %2495 = vmatprep.subr.bf16.mxu0 0
        %2496 = vmatpush1.bf16.msra.mxu0 0
        %2497 = vmatprep.subr.bf16.mxu0 0
        %2498 = vmatpush1.bf16.msra.mxu0 0
        %2499 = vmatprep.subr.bf16.mxu0 0
        %2500 = vmatpush1.bf16.msra.mxu0 0
        %2501 = vmatprep.subr.bf16.mxu0 0
        %2502 = vmatpush1.bf16.msra.mxu0 0
        %2503 = vmatprep.subr.bf16.mxu0 0
        %2504 = vmatpush1.bf16.msra.mxu0 0
        %2505 = vmatprep.subr.bf16.mxu0 0
        %2506 = vmatpush1.bf16.msra.mxu0 %v2201
        %2507 = vmatprep.subr.bf16.mxu0 0
        %2508 = vmatpush1.bf16.msra.mxu0 %v2107
        %2509 = vmatprep.subr.bf16.mxu0 0
        %2510 = vmatpush2.bf16.msra.mxu0 0
        %2511 = vmatprep.subr.bf16.mxu0 0
        %2512 = vmatpush2.bf16.msra.mxu0 0
        %2513 = vmatprep.subr.bf16.mxu0 0
        %2514 = vmatpush2.bf16.msra.mxu0 0
        %2515 = vmatprep.subr.bf16.mxu0 0
        %2516 = vmatpush2.bf16.msra.mxu0 0
        %2517 = vmatprep.subr.bf16.mxu0 0
        %2518 = vmatpush2.bf16.msra.mxu0 0
        %2519 = vmatprep.subr.bf16.mxu0 0
        %2520 = vmatpush2.bf16.msra.mxu0 0
        %2521 = vmatprep.subr.bf16.mxu0 0
        %2522 = vmatpush2.bf16.msra.mxu0 0
        %2523 = vmatprep.subr.bf16.mxu0 0
        %2524 = vmatpush2.bf16.msra.mxu0 0
        %2525 = vmatprep.mubr.bf16.mxu0 0
        %2526 = vmatmul.mubr.bf16.gmra.mxu0 %v2488
        %v2527 = vpop.f32.mrf.mxu0
        %v2528 = vadd.f32 0.0, %v2527
        %v2529 = vpop.f32.mrf.mxu0
        %v2530 = vpop.f32.mrf.mxu0
        %v2531 = vadd.f32 0.0, %v2530
        %v2532 = vpop.f32.mrf.mxu0
        %2533 = vmatprep.mubr.bf16.mxu0 0
        %2534 = vmatmul.mubr.bf16.gmra.mxu0 %v2491
        %v2535 = vpop.f32.mrf.mxu0
        %v2536 = vadd.f32 0.0, %v2535
        %v2537 = vpop.f32.mrf.mxu0
        %v2538 = vpop.f32.mrf.mxu0
        %v2539 = vpop.f32.mrf.mxu0
        %2540 = vdwg.mxu0
        %v2541 = vmul.f32 %v2528, %v866
        %v2542 = vmul.f32 %v2531, %v866
        %v2543 = vmul.f32 %v2536, %v866
        %v2544 = vadd.f32 %v2399, %v2541
        %v2545 = vadd.f32 %v2400, %v2542
        %v2546 = vadd.f32 %v2401, %v2543
        %v2547 = vmul.bf16 %v2097, %v875
        %v2548 = vmul.bf16 %v2098, %v875
        %2549 = vmatprep.subr.bf16.mxu0 0
        %2550 = vmatpush1.bf16.xpose.msra.mxu0 0
        %2551 = vmatprep.subr.bf16.mxu0 0
        %2552 = vmatpush1.bf16.xpose.msra.mxu0 0
        %2553 = vmatprep.subr.bf16.mxu0 0
        %2554 = vmatpush1.bf16.xpose.msra.mxu0 0
        %2555 = vmatprep.subr.bf16.mxu0 0
        %2556 = vmatpush1.bf16.xpose.msra.mxu0 0
        %2557 = vmatprep.subr.bf16.mxu0 0
        %2558 = vmatpush1.bf16.xpose.msra.mxu0 0
        %2559 = vmatprep.subr.bf16.mxu0 0
        %2560 = vmatpush1.bf16.xpose.msra.mxu0 0
        %2561 = vmatprep.subr.bf16.mxu0 0
        %2562 = vmatpush1.bf16.xpose.msra.mxu0 %v2103
        %2563 = vmatprep.subr.bf16.mxu0 0
        %2564 = vmatpush1.bf16.xpose.msra.mxu0 %v2102
        %2565 = vmatprep.subr.bf16.mxu0 0
        %2566 = vmatpush2.bf16.xpose.msra.mxu0 0
        %2567 = vmatprep.subr.bf16.mxu0 0
        %2568 = vmatpush2.bf16.xpose.msra.mxu0 0
        %2569 = vmatprep.subr.bf16.mxu0 0
        %2570 = vmatpush2.bf16.xpose.msra.mxu0 0
        %2571 = vmatprep.subr.bf16.mxu0 0
        %2572 = vmatpush2.bf16.xpose.msra.mxu0 0
        %2573 = vmatprep.subr.bf16.mxu0 0
        %2574 = vmatpush2.bf16.xpose.msra.mxu0 0
        %2575 = vmatprep.subr.bf16.mxu0 0
        %2576 = vmatpush2.bf16.xpose.msra.mxu0 0
        %2577 = vmatprep.subr.bf16.mxu0 0
        %2578 = vmatpush2.bf16.xpose.msra.mxu0 0
        %2579 = vmatprep.subr.bf16.mxu0 0
        %2580 = vmatpush2.bf16.xpose.msra.mxu0 0
        %2581 = vmatprep.mubr.bf16.mxu0 0
        %2582 = vmatmul.mubr.bf16.gmra.mxu0 %v2547
        %v2583 = vpop.f32.mrf.mxu0
        %v2584 = vadd.f32 %v887, %v2583
        %v2585 = vpop.f32.mrf.mxu0
        %v2586 = vpop.f32.mrf.mxu0
        %v2587 = vadd.f32 %v888, %v2586
        %v2588 = vpop.f32.mrf.mxu0
        %2589 = vmatprep.mubr.bf16.mxu0 0
        %2590 = vmatmul.mubr.bf16.gmra.mxu0 %v2548
        %v2591 = vpop.f32.mrf.mxu0
        %v2592 = vadd.f32 %v889, %v2591
        %v2593 = vpop.f32.mrf.mxu0
        %v2594 = vpop.f32.mrf.mxu0
        %v2595 = vpop.f32.mrf.mxu0
        %2596 = vdwg.mxu0
        %v2597 = vsel %vm955, %v2584, -inf
        %2598 = vmax.xlane.f32.xlu0 %v2597
        %v2599 = vpop.xlane.xlu0 %2598
        %v2600 = vsel %vm955, %v2587, -inf
        %2601 = vmax.xlane.f32.xlu0 %v2600
        %v2602 = vpop.xlane.xlu0 %2601
        %v2603 = vsel %vm955, %v2592, -inf
        %2604 = vmax.xlane.f32.xlu0 %v2603
        %v2605 = vpop.xlane.xlu0 %2604
        %v2606 = vsub.f32 %v2584, %v2599
        %v2607 = vsub.f32 %v2587, %v2602
        %v2608 = vsub.f32 %v2592, %v2605
        %v2609 = vmul.f32 %v2606, 1.442695
        %v2610 = vpow.pop %v2609
        %v2611 = vmul.f32 %v2607, 1.442695
        %v2612 = vpow.pop %v2611
        %v2613 = vmul.f32 %v2608, 1.442695
        %v2614 = vpow.pop %v2613
        %v2615 = vsel %vm955, %v2610, 0.0
        %2616 = vadd.xlane.f32.xlu0 %v2615
        %v2617 = vpop.xlane.xlu0 %2616
        %v2618 = vsel %vm955, %v2612, 0.0
        %2619 = vadd.xlane.f32.xlu0 %v2618
        %v2620 = vpop.xlane.xlu0 %2619
        %v2621 = vsel %vm955, %v2614, 0.0
        %2622 = vadd.xlane.f32.xlu0 %v2621
        %v2623 = vpop.xlane.xlu0 %2622
        %v2624 = vrcp.pop %v2617
        %v2625 = vrcp.pop %v2620
        %v2626 = vrcp.pop %v2623
        %v2627 = vmul.f32 %v2610, %v2624
        %v2628 = vmul.f32 %v2612, %v2625
        %v2629 = vmul.f32 %v2614, %v2626
        %v2630 = vpack.c.bf16 %v2628, %v2627
        %v2631 = vpack.c.bf16 %v2629, %v2629
        %v2633 = vsel %vm955, %v2630, 0
        %v2636 = vsel %vm955, %v2631, 0
        %2638 = vmatprep.subr.bf16.mxu0 0
        %2639 = vmatpush1.bf16.msra.mxu0 0
        %2640 = vmatprep.subr.bf16.mxu0 0
        %2641 = vmatpush1.bf16.msra.mxu0 0
        %2642 = vmatprep.subr.bf16.mxu0 0
        %2643 = vmatpush1.bf16.msra.mxu0 0
        %2644 = vmatprep.subr.bf16.mxu0 0
        %2645 = vmatpush1.bf16.msra.mxu0 0
        %2646 = vmatprep.subr.bf16.mxu0 0
        %2647 = vmatpush1.bf16.msra.mxu0 0
        %2648 = vmatprep.subr.bf16.mxu0 0
        %2649 = vmatpush1.bf16.msra.mxu0 0
        %2650 = vmatprep.subr.bf16.mxu0 0
        %2651 = vmatpush1.bf16.msra.mxu0 %v2201
        %2652 = vmatprep.subr.bf16.mxu0 0
        %2653 = vmatpush1.bf16.msra.mxu0 %v2107
        %2654 = vmatprep.subr.bf16.mxu0 0
        %2655 = vmatpush2.bf16.msra.mxu0 0
        %2656 = vmatprep.subr.bf16.mxu0 0
        %2657 = vmatpush2.bf16.msra.mxu0 0
        %2658 = vmatprep.subr.bf16.mxu0 0
        %2659 = vmatpush2.bf16.msra.mxu0 0
        %2660 = vmatprep.subr.bf16.mxu0 0
        %2661 = vmatpush2.bf16.msra.mxu0 0
        %2662 = vmatprep.subr.bf16.mxu0 0
        %2663 = vmatpush2.bf16.msra.mxu0 0
        %2664 = vmatprep.subr.bf16.mxu0 0
        %2665 = vmatpush2.bf16.msra.mxu0 0
        %2666 = vmatprep.subr.bf16.mxu0 0
        %2667 = vmatpush2.bf16.msra.mxu0 0
        %2668 = vmatprep.subr.bf16.mxu0 0
        %2669 = vmatpush2.bf16.msra.mxu0 0
        %2670 = vmatprep.mubr.bf16.mxu0 0
        %2671 = vmatmul.mubr.bf16.gmra.mxu0 %v2633
        %v2672 = vpop.f32.mrf.mxu0
        %v2673 = vadd.f32 0.0, %v2672
        %v2674 = vpop.f32.mrf.mxu0
        %v2675 = vpop.f32.mrf.mxu0
        %v2676 = vadd.f32 0.0, %v2675
        %v2677 = vpop.f32.mrf.mxu0
        %2678 = vmatprep.mubr.bf16.mxu0 0
        %2679 = vmatmul.mubr.bf16.gmra.mxu0 %v2636
        %v2680 = vpop.f32.mrf.mxu0
        %v2681 = vadd.f32 0.0, %v2680
        %v2682 = vpop.f32.mrf.mxu0
        %v2683 = vpop.f32.mrf.mxu0
        %v2684 = vpop.f32.mrf.mxu0
        %2685 = vdwg.mxu0
        %v2686 = vmul.f32 %v2673, %v871
        %v2687 = vmul.f32 %v2676, %v871
        %v2688 = vmul.f32 %v2681, %v871
        %v2689 = vadd.f32 %v2544, %v2686
        %v2690 = vadd.f32 %v2545, %v2687
        %v2691 = vadd.f32 %v2546, %v2688
        %2692 = vst [vmem:[#allocation3 + $0x30] sm:$0xff] %v2689
        %2693 = vst [vmem:[#allocation3 + $0x38] sm:$0xff] %v2690
        %2694 = vst [vmem:[#allocation3 + $0x40] sm:$0xff] %v2691
        %v2695 = vld [vmem:[#allocation2 + $0xd8] sm:$0xff]
        %v2696 = vld [vmem:[#allocation2 + $0xf0] sm:$0xff]
        %v2697 = vld [vmem:[#allocation2 + $0x108] sm:$0xff]
        %v2698 = vpack.c.bf16 %v2696, %v2695
        %v2699 = vpack.c.bf16 %v2697, %v2697
        %v2700 = vld [vmem:[#allocation2 + $0xe0] sm:$0xff]
        %v2701 = vld [vmem:[#allocation2 + $0xf8] sm:$0xff]
        %v2702 = vld [vmem:[#allocation2 + $0x110] sm:$0xff]
        %v2703 = vpack.c.bf16 %v2701, %v2700
        %v2704 = vpack.c.bf16 %v2702, %v2702
        %v2705 = vld [vmem:[#allocation2 + $0xe8] sm:$0xff]
        %v2706 = vld [vmem:[#allocation2 + $0x100] sm:$0xff]
        %v2707 = vld [vmem:[#allocation2 + $0x118] sm:$0xff]
        %v2708 = vpack.c.bf16 %v2706, %v2705
        %v2709 = vpack.c.bf16 %v2707, %v2707
        %v2710 = vmul.bf16 %v2698, %v872
        %v2711 = vmul.bf16 %v2699, %v872
        %2712 = vmatprep.subr.bf16.mxu0 0
        %2713 = vmatpush1.bf16.xpose.msra.mxu0 0
        %2714 = vmatprep.subr.bf16.mxu0 0
        %2715 = vmatpush1.bf16.xpose.msra.mxu0 0
        %2716 = vmatprep.subr.bf16.mxu0 0
        %2717 = vmatpush1.bf16.xpose.msra.mxu0 0
        %2718 = vmatprep.subr.bf16.mxu0 0
        %2719 = vmatpush1.bf16.xpose.msra.mxu0 0
        %2720 = vmatprep.subr.bf16.mxu0 0
        %2721 = vmatpush1.bf16.xpose.msra.mxu0 0
        %2722 = vmatprep.subr.bf16.mxu0 0
        %2723 = vmatpush1.bf16.xpose.msra.mxu0 0
        %2724 = vmatprep.subr.bf16.mxu0 0
        %2725 = vmatpush1.bf16.xpose.msra.mxu0 %v2704
        %2726 = vmatprep.subr.bf16.mxu0 0
        %2727 = vmatpush1.bf16.xpose.msra.mxu0 %v2703
        %2728 = vmatprep.subr.bf16.mxu0 0
        %2729 = vmatpush2.bf16.xpose.msra.mxu0 0
        %2730 = vmatprep.subr.bf16.mxu0 0
        %2731 = vmatpush2.bf16.xpose.msra.mxu0 0
        %2732 = vmatprep.subr.bf16.mxu0 0
        %2733 = vmatpush2.bf16.xpose.msra.mxu0 0
        %2734 = vmatprep.subr.bf16.mxu0 0
        %2735 = vmatpush2.bf16.xpose.msra.mxu0 0
        %2736 = vmatprep.subr.bf16.mxu0 0
        %2737 = vmatpush2.bf16.xpose.msra.mxu0 0
        %2738 = vmatprep.subr.bf16.mxu0 0
        %2739 = vmatpush2.bf16.xpose.msra.mxu0 0
        %2740 = vmatprep.subr.bf16.mxu0 0
        %2741 = vmatpush2.bf16.xpose.msra.mxu0 0
        %2742 = vmatprep.subr.bf16.mxu0 0
        %2743 = vmatpush2.bf16.xpose.msra.mxu0 0
        %2744 = vmatprep.mubr.bf16.mxu0 0
        %2745 = vmatmul.mubr.bf16.gmra.mxu0 %v2710
        %v2746 = vpop.f32.mrf.mxu0
        %v2747 = vadd.f32 %v887, %v2746
        %v2748 = vpop.f32.mrf.mxu0
        %v2749 = vpop.f32.mrf.mxu0
        %v2750 = vadd.f32 %v888, %v2749
        %v2751 = vpop.f32.mrf.mxu0
        %2752 = vmatprep.mubr.bf16.mxu0 0
        %2753 = vmatmul.mubr.bf16.gmra.mxu0 %v2711
        %v2754 = vpop.f32.mrf.mxu0
        %v2755 = vadd.f32 %v889, %v2754
        %v2756 = vpop.f32.mrf.mxu0
        %v2757 = vpop.f32.mrf.mxu0
        %v2758 = vpop.f32.mrf.mxu0
        %2759 = vdwg.mxu0
        %v2760 = vsel %vm955, %v2747, -inf
        %2761 = vmax.xlane.f32.xlu0 %v2760
        %v2762 = vpop.xlane.xlu0 %2761
        %v2763 = vsel %vm955, %v2750, -inf
        %2764 = vmax.xlane.f32.xlu0 %v2763
        %v2765 = vpop.xlane.xlu0 %2764
        %v2766 = vsel %vm955, %v2755, -inf
        %2767 = vmax.xlane.f32.xlu0 %v2766
        %v2768 = vpop.xlane.xlu0 %2767
        %v2769 = vsub.f32 %v2747, %v2762
        %v2770 = vsub.f32 %v2750, %v2765
        %v2771 = vsub.f32 %v2755, %v2768
        %v2772 = vmul.f32 %v2769, 1.442695
        %v2773 = vpow.pop %v2772
        %v2774 = vmul.f32 %v2770, 1.442695
        %v2775 = vpow.pop %v2774
        %v2776 = vmul.f32 %v2771, 1.442695
        %v2777 = vpow.pop %v2776
        %v2778 = vsel %vm955, %v2773, 0.0
        %2779 = vadd.xlane.f32.xlu0 %v2778
        %v2780 = vpop.xlane.xlu0 %2779
        %v2781 = vsel %vm955, %v2775, 0.0
        %2782 = vadd.xlane.f32.xlu0 %v2781
        %v2783 = vpop.xlane.xlu0 %2782
        %v2784 = vsel %vm955, %v2777, 0.0
        %2785 = vadd.xlane.f32.xlu0 %v2784
        %v2786 = vpop.xlane.xlu0 %2785
        %v2787 = vrcp.pop %v2780
        %v2788 = vrcp.pop %v2783
        %v2789 = vrcp.pop %v2786
        %v2790 = vmul.f32 %v2773, %v2787
        %v2791 = vmul.f32 %v2775, %v2788
        %v2792 = vmul.f32 %v2777, %v2789
        %v2793 = vpack.c.bf16 %v2791, %v2790
        %v2794 = vpack.c.bf16 %v2792, %v2792
        %v2796 = vsel %vm955, %v2793, 0
        %v2799 = vsel %vm955, %v2794, 0
        %v2802 = vsel %vm997, %v2709, 0
        %2804 = vmatprep.subr.bf16.mxu0 0
        %2805 = vmatpush1.bf16.msra.mxu0 0
        %2806 = vmatprep.subr.bf16.mxu0 0
        %2807 = vmatpush1.bf16.msra.mxu0 0
        %2808 = vmatprep.subr.bf16.mxu0 0
        %2809 = vmatpush1.bf16.msra.mxu0 0
        %2810 = vmatprep.subr.bf16.mxu0 0
        %2811 = vmatpush1.bf16.msra.mxu0 0
        %2812 = vmatprep.subr.bf16.mxu0 0
        %2813 = vmatpush1.bf16.msra.mxu0 0
        %2814 = vmatprep.subr.bf16.mxu0 0
        %2815 = vmatpush1.bf16.msra.mxu0 0
        %2816 = vmatprep.subr.bf16.mxu0 0
        %2817 = vmatpush1.bf16.msra.mxu0 %v2802
        %2818 = vmatprep.subr.bf16.mxu0 0
        %2819 = vmatpush1.bf16.msra.mxu0 %v2708
        %2820 = vmatprep.subr.bf16.mxu0 0
        %2821 = vmatpush2.bf16.msra.mxu0 0
        %2822 = vmatprep.subr.bf16.mxu0 0
        %2823 = vmatpush2.bf16.msra.mxu0 0
        %2824 = vmatprep.subr.bf16.mxu0 0
        %2825 = vmatpush2.bf16.msra.mxu0 0
        %2826 = vmatprep.subr.bf16.mxu0 0
        %2827 = vmatpush2.bf16.msra.mxu0 0
        %2828 = vmatprep.subr.bf16.mxu0 0
        %2829 = vmatpush2.bf16.msra.mxu0 0
        %2830 = vmatprep.subr.bf16.mxu0 0
        %2831 = vmatpush2.bf16.msra.mxu0 0
        %2832 = vmatprep.subr.bf16.mxu0 0
        %2833 = vmatpush2.bf16.msra.mxu0 0
        %2834 = vmatprep.subr.bf16.mxu0 0
        %2835 = vmatpush2.bf16.msra.mxu0 0
        %2836 = vmatprep.mubr.bf16.mxu0 0
        %2837 = vmatmul.mubr.bf16.gmra.mxu0 %v2796
        %v2838 = vpop.f32.mrf.mxu0
        %v2839 = vadd.f32 0.0, %v2838
        %v2840 = vpop.f32.mrf.mxu0
        %v2841 = vpop.f32.mrf.mxu0
        %v2842 = vadd.f32 0.0, %v2841
        %v2843 = vpop.f32.mrf.mxu0
        %2844 = vmatprep.mubr.bf16.mxu0 0
        %2845 = vmatmul.mubr.bf16.gmra.mxu0 %v2799
        %v2846 = vpop.f32.mrf.mxu0
        %v2847 = vadd.f32 0.0, %v2846
        %v2848 = vpop.f32.mrf.mxu0
        %v2849 = vpop.f32.mrf.mxu0
        %v2850 = vpop.f32.mrf.mxu0
        %2851 = vdwg.mxu0
        %v2852 = vmul.f32 %v2839, %v856
        %v2853 = vmul.f32 %v2842, %v856
        %v2854 = vmul.f32 %v2847, %v856
        %v2855 = vadd.f32 %v2852, 0.0
        %v2856 = vadd.f32 %v2853, 0.0
        %v2857 = vadd.f32 %v2854, 0.0
        %v2858 = vmul.bf16 %v2698, %v873
        %v2859 = vmul.bf16 %v2699, %v873
        %2860 = vmatprep.subr.bf16.mxu0 0
        %2861 = vmatpush1.bf16.xpose.msra.mxu0 0
        %2862 = vmatprep.subr.bf16.mxu0 0
        %2863 = vmatpush1.bf16.xpose.msra.mxu0 0
        %2864 = vmatprep.subr.bf16.mxu0 0
        %2865 = vmatpush1.bf16.xpose.msra.mxu0 0
        %2866 = vmatprep.subr.bf16.mxu0 0
        %2867 = vmatpush1.bf16.xpose.msra.mxu0 0
        %2868 = vmatprep.subr.bf16.mxu0 0
        %2869 = vmatpush1.bf16.xpose.msra.mxu0 0
        %2870 = vmatprep.subr.bf16.mxu0 0
        %2871 = vmatpush1.bf16.xpose.msra.mxu0 0
        %2872 = vmatprep.subr.bf16.mxu0 0
        %2873 = vmatpush1.bf16.xpose.msra.mxu0 %v2704
        %2874 = vmatprep.subr.bf16.mxu0 0
        %2875 = vmatpush1.bf16.xpose.msra.mxu0 %v2703
        %2876 = vmatprep.subr.bf16.mxu0 0
        %2877 = vmatpush2.bf16.xpose.msra.mxu0 0
        %2878 = vmatprep.subr.bf16.mxu0 0
        %2879 = vmatpush2.bf16.xpose.msra.mxu0 0
        %2880 = vmatprep.subr.bf16.mxu0 0
        %2881 = vmatpush2.bf16.xpose.msra.mxu0 0
        %2882 = vmatprep.subr.bf16.mxu0 0
        %2883 = vmatpush2.bf16.xpose.msra.mxu0 0
        %2884 = vmatprep.subr.bf16.mxu0 0
        %2885 = vmatpush2.bf16.xpose.msra.mxu0 0
        %2886 = vmatprep.subr.bf16.mxu0 0
        %2887 = vmatpush2.bf16.xpose.msra.mxu0 0
        %2888 = vmatprep.subr.bf16.mxu0 0
        %2889 = vmatpush2.bf16.xpose.msra.mxu0 0
        %2890 = vmatprep.subr.bf16.mxu0 0
        %2891 = vmatpush2.bf16.xpose.msra.mxu0 0
        %2892 = vmatprep.mubr.bf16.mxu0 0
        %2893 = vmatmul.mubr.bf16.gmra.mxu0 %v2858
        %v2894 = vpop.f32.mrf.mxu0
        %v2895 = vadd.f32 %v887, %v2894
        %v2896 = vpop.f32.mrf.mxu0
        %v2897 = vpop.f32.mrf.mxu0
        %v2898 = vadd.f32 %v888, %v2897
        %v2899 = vpop.f32.mrf.mxu0
        %2900 = vmatprep.mubr.bf16.mxu0 0
        %2901 = vmatmul.mubr.bf16.gmra.mxu0 %v2859
        %v2902 = vpop.f32.mrf.mxu0
        %v2903 = vadd.f32 %v889, %v2902
        %v2904 = vpop.f32.mrf.mxu0
        %v2905 = vpop.f32.mrf.mxu0
        %v2906 = vpop.f32.mrf.mxu0
        %2907 = vdwg.mxu0
        %v2908 = vsel %vm955, %v2895, -inf
        %2909 = vmax.xlane.f32.xlu0 %v2908
        %v2910 = vpop.xlane.xlu0 %2909
        %v2911 = vsel %vm955, %v2898, -inf
        %2912 = vmax.xlane.f32.xlu0 %v2911
        %v2913 = vpop.xlane.xlu0 %2912
        %v2914 = vsel %vm955, %v2903, -inf
        %2915 = vmax.xlane.f32.xlu0 %v2914
        %v2916 = vpop.xlane.xlu0 %2915
        %v2917 = vsub.f32 %v2895, %v2910
        %v2918 = vsub.f32 %v2898, %v2913
        %v2919 = vsub.f32 %v2903, %v2916
        %v2920 = vmul.f32 %v2917, 1.442695
        %v2921 = vpow.pop %v2920
        %v2922 = vmul.f32 %v2918, 1.442695
        %v2923 = vpow.pop %v2922
        %v2924 = vmul.f32 %v2919, 1.442695
        %v2925 = vpow.pop %v2924
        %v2926 = vsel %vm955, %v2921, 0.0
        %2927 = vadd.xlane.f32.xlu0 %v2926
        %v2928 = vpop.xlane.xlu0 %2927
        %v2929 = vsel %vm955, %v2923, 0.0
        %2930 = vadd.xlane.f32.xlu0 %v2929
        %v2931 = vpop.xlane.xlu0 %2930
        %v2932 = vsel %vm955, %v2925, 0.0
        %2933 = vadd.xlane.f32.xlu0 %v2932
        %v2934 = vpop.xlane.xlu0 %2933
        %v2935 = vrcp.pop %v2928
        %v2936 = vrcp.pop %v2931
        %v2937 = vrcp.pop %v2934
        %v2938 = vmul.f32 %v2921, %v2935
        %v2939 = vmul.f32 %v2923, %v2936
        %v2940 = vmul.f32 %v2925, %v2937
        %v2941 = vpack.c.bf16 %v2939, %v2938
        %v2942 = vpack.c.bf16 %v2940, %v2940
        %v2944 = vsel %vm955, %v2941, 0
        %v2947 = vsel %vm955, %v2942, 0
        %2949 = vmatprep.subr.bf16.mxu0 0
        %2950 = vmatpush1.bf16.msra.mxu0 0
        %2951 = vmatprep.subr.bf16.mxu0 0
        %2952 = vmatpush1.bf16.msra.mxu0 0
        %2953 = vmatprep.subr.bf16.mxu0 0
        %2954 = vmatpush1.bf16.msra.mxu0 0
        %2955 = vmatprep.subr.bf16.mxu0 0
        %2956 = vmatpush1.bf16.msra.mxu0 0
        %2957 = vmatprep.subr.bf16.mxu0 0
        %2958 = vmatpush1.bf16.msra.mxu0 0
        %2959 = vmatprep.subr.bf16.mxu0 0
        %2960 = vmatpush1.bf16.msra.mxu0 0
        %2961 = vmatprep.subr.bf16.mxu0 0
        %2962 = vmatpush1.bf16.msra.mxu0 %v2802
        %2963 = vmatprep.subr.bf16.mxu0 0
        %2964 = vmatpush1.bf16.msra.mxu0 %v2708
        %2965 = vmatprep.subr.bf16.mxu0 0
        %2966 = vmatpush2.bf16.msra.mxu0 0
        %2967 = vmatprep.subr.bf16.mxu0 0
        %2968 = vmatpush2.bf16.msra.mxu0 0
        %2969 = vmatprep.subr.bf16.mxu0 0
        %2970 = vmatpush2.bf16.msra.mxu0 0
        %2971 = vmatprep.subr.bf16.mxu0 0
        %2972 = vmatpush2.bf16.msra.mxu0 0
        %2973 = vmatprep.subr.bf16.mxu0 0
        %2974 = vmatpush2.bf16.msra.mxu0 0
        %2975 = vmatprep.subr.bf16.mxu0 0
        %2976 = vmatpush2.bf16.msra.mxu0 0
        %2977 = vmatprep.subr.bf16.mxu0 0
        %2978 = vmatpush2.bf16.msra.mxu0 0
        %2979 = vmatprep.subr.bf16.mxu0 0
        %2980 = vmatpush2.bf16.msra.mxu0 0
        %2981 = vmatprep.mubr.bf16.mxu0 0
        %2982 = vmatmul.mubr.bf16.gmra.mxu0 %v2944
        %v2983 = vpop.f32.mrf.mxu0
        %v2984 = vadd.f32 0.0, %v2983
        %v2985 = vpop.f32.mrf.mxu0
        %v2986 = vpop.f32.mrf.mxu0
        %v2987 = vadd.f32 0.0, %v2986
        %v2988 = vpop.f32.mrf.mxu0
        %2989 = vmatprep.mubr.bf16.mxu0 0
        %2990 = vmatmul.mubr.bf16.gmra.mxu0 %v2947
        %v2991 = vpop.f32.mrf.mxu0
        %v2992 = vadd.f32 0.0, %v2991
        %v2993 = vpop.f32.mrf.mxu0
        %v2994 = vpop.f32.mrf.mxu0
        %v2995 = vpop.f32.mrf.mxu0
        %2996 = vdwg.mxu0
        %v2997 = vmul.f32 %v2984, %v861
        %v2998 = vmul.f32 %v2987, %v861
        %v2999 = vmul.f32 %v2992, %v861
        %v3000 = vadd.f32 %v2855, %v2997
        %v3001 = vadd.f32 %v2856, %v2998
        %v3002 = vadd.f32 %v2857, %v2999
        %v3003 = vmul.bf16 %v2698, %v874
        %v3004 = vmul.bf16 %v2699, %v874
        %3005 = vmatprep.subr.bf16.mxu0 0
        %3006 = vmatpush1.bf16.xpose.msra.mxu0 0
        %3007 = vmatprep.subr.bf16.mxu0 0
        %3008 = vmatpush1.bf16.xpose.msra.mxu0 0
        %3009 = vmatprep.subr.bf16.mxu0 0
        %3010 = vmatpush1.bf16.xpose.msra.mxu0 0
        %3011 = vmatprep.subr.bf16.mxu0 0
        %3012 = vmatpush1.bf16.xpose.msra.mxu0 0
        %3013 = vmatprep.subr.bf16.mxu0 0
        %3014 = vmatpush1.bf16.xpose.msra.mxu0 0
        %3015 = vmatprep.subr.bf16.mxu0 0
        %3016 = vmatpush1.bf16.xpose.msra.mxu0 0
        %3017 = vmatprep.subr.bf16.mxu0 0
        %3018 = vmatpush1.bf16.xpose.msra.mxu0 %v2704
        %3019 = vmatprep.subr.bf16.mxu0 0
        %3020 = vmatpush1.bf16.xpose.msra.mxu0 %v2703
        %3021 = vmatprep.subr.bf16.mxu0 0
        %3022 = vmatpush2.bf16.xpose.msra.mxu0 0
        %3023 = vmatprep.subr.bf16.mxu0 0
        %3024 = vmatpush2.bf16.xpose.msra.mxu0 0
        %3025 = vmatprep.subr.bf16.mxu0 0
        %3026 = vmatpush2.bf16.xpose.msra.mxu0 0
        %3027 = vmatprep.subr.bf16.mxu0 0
        %3028 = vmatpush2.bf16.xpose.msra.mxu0 0
        %3029 = vmatprep.subr.bf16.mxu0 0
        %3030 = vmatpush2.bf16.xpose.msra.mxu0 0
        %3031 = vmatprep.subr.bf16.mxu0 0
        %3032 = vmatpush2.bf16.xpose.msra.mxu0 0
        %3033 = vmatprep.subr.bf16.mxu0 0
        %3034 = vmatpush2.bf16.xpose.msra.mxu0 0
        %3035 = vmatprep.subr.bf16.mxu0 0
        %3036 = vmatpush2.bf16.xpose.msra.mxu0 0
        %3037 = vmatprep.mubr.bf16.mxu0 0
        %3038 = vmatmul.mubr.bf16.gmra.mxu0 %v3003
        %v3039 = vpop.f32.mrf.mxu0
        %v3040 = vadd.f32 %v887, %v3039
        %v3041 = vpop.f32.mrf.mxu0
        %v3042 = vpop.f32.mrf.mxu0
        %v3043 = vadd.f32 %v888, %v3042
        %v3044 = vpop.f32.mrf.mxu0
        %3045 = vmatprep.mubr.bf16.mxu0 0
        %3046 = vmatmul.mubr.bf16.gmra.mxu0 %v3004
        %v3047 = vpop.f32.mrf.mxu0
        %v3048 = vadd.f32 %v889, %v3047
        %v3049 = vpop.f32.mrf.mxu0
        %v3050 = vpop.f32.mrf.mxu0
        %v3051 = vpop.f32.mrf.mxu0
        %3052 = vdwg.mxu0
        %v3053 = vsel %vm955, %v3040, -inf
        %3054 = vmax.xlane.f32.xlu0 %v3053
        %v3055 = vpop.xlane.xlu0 %3054
        %v3056 = vsel %vm955, %v3043, -inf
        %3057 = vmax.xlane.f32.xlu0 %v3056
        %v3058 = vpop.xlane.xlu0 %3057
        %v3059 = vsel %vm955, %v3048, -inf
        %3060 = vmax.xlane.f32.xlu0 %v3059
        %v3061 = vpop.xlane.xlu0 %3060
        %v3062 = vsub.f32 %v3040, %v3055
        %v3063 = vsub.f32 %v3043, %v3058
        %v3064 = vsub.f32 %v3048, %v3061
        %v3065 = vmul.f32 %v3062, 1.442695
        %v3066 = vpow.pop %v3065
        %v3067 = vmul.f32 %v3063, 1.442695
        %v3068 = vpow.pop %v3067
        %v3069 = vmul.f32 %v3064, 1.442695
        %v3070 = vpow.pop %v3069
        %v3071 = vsel %vm955, %v3066, 0.0
        %3072 = vadd.xlane.f32.xlu0 %v3071
        %v3073 = vpop.xlane.xlu0 %3072
        %v3074 = vsel %vm955, %v3068, 0.0
        %3075 = vadd.xlane.f32.xlu0 %v3074
        %v3076 = vpop.xlane.xlu0 %3075
        %v3077 = vsel %vm955, %v3070, 0.0
        %3078 = vadd.xlane.f32.xlu0 %v3077
        %v3079 = vpop.xlane.xlu0 %3078
        %v3080 = vrcp.pop %v3073
        %v3081 = vrcp.pop %v3076
        %v3082 = vrcp.pop %v3079
        %v3083 = vmul.f32 %v3066, %v3080
        %v3084 = vmul.f32 %v3068, %v3081
        %v3085 = vmul.f32 %v3070, %v3082
        %v3086 = vpack.c.bf16 %v3084, %v3083
        %v3087 = vpack.c.bf16 %v3085, %v3085
        %v3089 = vsel %vm955, %v3086, 0
        %v3092 = vsel %vm955, %v3087, 0
        %3094 = vmatprep.subr.bf16.mxu0 0
        %3095 = vmatpush1.bf16.msra.mxu0 0
        %3096 = vmatprep.subr.bf16.mxu0 0
        %3097 = vmatpush1.bf16.msra.mxu0 0
        %3098 = vmatprep.subr.bf16.mxu0 0
        %3099 = vmatpush1.bf16.msra.mxu0 0
        %3100 = vmatprep.subr.bf16.mxu0 0
        %3101 = vmatpush1.bf16.msra.mxu0 0
        %3102 = vmatprep.subr.bf16.mxu0 0
        %3103 = vmatpush1.bf16.msra.mxu0 0
        %3104 = vmatprep.subr.bf16.mxu0 0
        %3105 = vmatpush1.bf16.msra.mxu0 0
        %3106 = vmatprep.subr.bf16.mxu0 0
        %3107 = vmatpush1.bf16.msra.mxu0 %v2802
        %3108 = vmatprep.subr.bf16.mxu0 0
        %3109 = vmatpush1.bf16.msra.mxu0 %v2708
        %3110 = vmatprep.subr.bf16.mxu0 0
        %3111 = vmatpush2.bf16.msra.mxu0 0
        %3112 = vmatprep.subr.bf16.mxu0 0
        %3113 = vmatpush2.bf16.msra.mxu0 0
        %3114 = vmatprep.subr.bf16.mxu0 0
        %3115 = vmatpush2.bf16.msra.mxu0 0
        %3116 = vmatprep.subr.bf16.mxu0 0
        %3117 = vmatpush2.bf16.msra.mxu0 0
        %3118 = vmatprep.subr.bf16.mxu0 0
        %3119 = vmatpush2.bf16.msra.mxu0 0
        %3120 = vmatprep.subr.bf16.mxu0 0
        %3121 = vmatpush2.bf16.msra.mxu0 0
        %3122 = vmatprep.subr.bf16.mxu0 0
        %3123 = vmatpush2.bf16.msra.mxu0 0
        %3124 = vmatprep.subr.bf16.mxu0 0
        %3125 = vmatpush2.bf16.msra.mxu0 0
        %3126 = vmatprep.mubr.bf16.mxu0 0
        %3127 = vmatmul.mubr.bf16.gmra.mxu0 %v3089
        %v3128 = vpop.f32.mrf.mxu0
        %v3129 = vadd.f32 0.0, %v3128
        %v3130 = vpop.f32.mrf.mxu0
        %v3131 = vpop.f32.mrf.mxu0
        %v3132 = vadd.f32 0.0, %v3131
        %v3133 = vpop.f32.mrf.mxu0
        %3134 = vmatprep.mubr.bf16.mxu0 0
        %3135 = vmatmul.mubr.bf16.gmra.mxu0 %v3092
        %v3136 = vpop.f32.mrf.mxu0
        %v3137 = vadd.f32 0.0, %v3136
        %v3138 = vpop.f32.mrf.mxu0
        %v3139 = vpop.f32.mrf.mxu0
        %v3140 = vpop.f32.mrf.mxu0
        %3141 = vdwg.mxu0
        %v3142 = vmul.f32 %v3129, %v866
        %v3143 = vmul.f32 %v3132, %v866
        %v3144 = vmul.f32 %v3137, %v866
        %v3145 = vadd.f32 %v3000, %v3142
        %v3146 = vadd.f32 %v3001, %v3143
        %v3147 = vadd.f32 %v3002, %v3144
        %v3148 = vmul.bf16 %v2698, %v875
        %v3149 = vmul.bf16 %v2699, %v875
        %3150 = vmatprep.subr.bf16.mxu0 0
        %3151 = vmatpush1.bf16.xpose.msra.mxu0 0
        %3152 = vmatprep.subr.bf16.mxu0 0
        %3153 = vmatpush1.bf16.xpose.msra.mxu0 0
        %3154 = vmatprep.subr.bf16.mxu0 0
        %3155 = vmatpush1.bf16.xpose.msra.mxu0 0
        %3156 = vmatprep.subr.bf16.mxu0 0
        %3157 = vmatpush1.bf16.xpose.msra.mxu0 0
        %3158 = vmatprep.subr.bf16.mxu0 0
        %3159 = vmatpush1.bf16.xpose.msra.mxu0 0
        %3160 = vmatprep.subr.bf16.mxu0 0
        %3161 = vmatpush1.bf16.xpose.msra.mxu0 0
        %3162 = vmatprep.subr.bf16.mxu0 0
        %3163 = vmatpush1.bf16.xpose.msra.mxu0 %v2704
        %3164 = vmatprep.subr.bf16.mxu0 0
        %3165 = vmatpush1.bf16.xpose.msra.mxu0 %v2703
        %3166 = vmatprep.subr.bf16.mxu0 0
        %3167 = vmatpush2.bf16.xpose.msra.mxu0 0
        %3168 = vmatprep.subr.bf16.mxu0 0
        %3169 = vmatpush2.bf16.xpose.msra.mxu0 0
        %3170 = vmatprep.subr.bf16.mxu0 0
        %3171 = vmatpush2.bf16.xpose.msra.mxu0 0
        %3172 = vmatprep.subr.bf16.mxu0 0
        %3173 = vmatpush2.bf16.xpose.msra.mxu0 0
        %3174 = vmatprep.subr.bf16.mxu0 0
        %3175 = vmatpush2.bf16.xpose.msra.mxu0 0
        %3176 = vmatprep.subr.bf16.mxu0 0
        %3177 = vmatpush2.bf16.xpose.msra.mxu0 0
        %3178 = vmatprep.subr.bf16.mxu0 0
        %3179 = vmatpush2.bf16.xpose.msra.mxu0 0
        %3180 = vmatprep.subr.bf16.mxu0 0
        %3181 = vmatpush2.bf16.xpose.msra.mxu0 0
        %3182 = vmatprep.mubr.bf16.mxu0 0
        %3183 = vmatmul.mubr.bf16.gmra.mxu0 %v3148
        %v3184 = vpop.f32.mrf.mxu0
        %v3185 = vadd.f32 %v887, %v3184
        %v3186 = vpop.f32.mrf.mxu0
        %v3187 = vpop.f32.mrf.mxu0
        %v3188 = vadd.f32 %v888, %v3187
        %v3189 = vpop.f32.mrf.mxu0
        %3190 = vmatprep.mubr.bf16.mxu0 0
        %3191 = vmatmul.mubr.bf16.gmra.mxu0 %v3149
        %v3192 = vpop.f32.mrf.mxu0
        %v3193 = vadd.f32 %v889, %v3192
        %v3194 = vpop.f32.mrf.mxu0
        %v3195 = vpop.f32.mrf.mxu0
        %v3196 = vpop.f32.mrf.mxu0
        %3197 = vdwg.mxu0
        %v3198 = vsel %vm955, %v3185, -inf
        %3199 = vmax.xlane.f32.xlu0 %v3198
        %v3200 = vpop.xlane.xlu0 %3199
        %v3201 = vsel %vm955, %v3188, -inf
        %3202 = vmax.xlane.f32.xlu0 %v3201
        %v3203 = vpop.xlane.xlu0 %3202
        %v3204 = vsel %vm955, %v3193, -inf
        %3205 = vmax.xlane.f32.xlu0 %v3204
        %v3206 = vpop.xlane.xlu0 %3205
        %v3207 = vsub.f32 %v3185, %v3200
        %v3208 = vsub.f32 %v3188, %v3203
        %v3209 = vsub.f32 %v3193, %v3206
        %v3210 = vmul.f32 %v3207, 1.442695
        %v3211 = vpow.pop %v3210
        %v3212 = vmul.f32 %v3208, 1.442695
        %v3213 = vpow.pop %v3212
        %v3214 = vmul.f32 %v3209, 1.442695
        %v3215 = vpow.pop %v3214
        %v3216 = vsel %vm955, %v3211, 0.0
        %3217 = vadd.xlane.f32.xlu0 %v3216
        %v3218 = vpop.xlane.xlu0 %3217
        %v3219 = vsel %vm955, %v3213, 0.0
        %3220 = vadd.xlane.f32.xlu0 %v3219
        %v3221 = vpop.xlane.xlu0 %3220
        %v3222 = vsel %vm955, %v3215, 0.0
        %3223 = vadd.xlane.f32.xlu0 %v3222
        %v3224 = vpop.xlane.xlu0 %3223
        %v3225 = vrcp.pop %v3218
        %v3226 = vrcp.pop %v3221
        %v3227 = vrcp.pop %v3224
        %v3228 = vmul.f32 %v3211, %v3225
        %v3229 = vmul.f32 %v3213, %v3226
        %v3230 = vmul.f32 %v3215, %v3227
        %v3231 = vpack.c.bf16 %v3229, %v3228
        %v3232 = vpack.c.bf16 %v3230, %v3230
        %v3234 = vsel %vm955, %v3231, 0
        %v3237 = vsel %vm955, %v3232, 0
        %3239 = vmatprep.subr.bf16.mxu0 0
        %3240 = vmatpush1.bf16.msra.mxu0 0
        %3241 = vmatprep.subr.bf16.mxu0 0
        %3242 = vmatpush1.bf16.msra.mxu0 0
        %3243 = vmatprep.subr.bf16.mxu0 0
        %3244 = vmatpush1.bf16.msra.mxu0 0
        %3245 = vmatprep.subr.bf16.mxu0 0
        %3246 = vmatpush1.bf16.msra.mxu0 0
        %3247 = vmatprep.subr.bf16.mxu0 0
        %3248 = vmatpush1.bf16.msra.mxu0 0
        %3249 = vmatprep.subr.bf16.mxu0 0
        %3250 = vmatpush1.bf16.msra.mxu0 0
        %3251 = vmatprep.subr.bf16.mxu0 0
        %3252 = vmatpush1.bf16.msra.mxu0 %v2802
        %3253 = vmatprep.subr.bf16.mxu0 0
        %3254 = vmatpush1.bf16.msra.mxu0 %v2708
        %3255 = vmatprep.subr.bf16.mxu0 0
        %3256 = vmatpush2.bf16.msra.mxu0 0
        %3257 = vmatprep.subr.bf16.mxu0 0
        %3258 = vmatpush2.bf16.msra.mxu0 0
        %3259 = vmatprep.subr.bf16.mxu0 0
        %3260 = vmatpush2.bf16.msra.mxu0 0
        %3261 = vmatprep.subr.bf16.mxu0 0
        %3262 = vmatpush2.bf16.msra.mxu0 0
        %3263 = vmatprep.subr.bf16.mxu0 0
        %3264 = vmatpush2.bf16.msra.mxu0 0
        %3265 = vmatprep.subr.bf16.mxu0 0
        %3266 = vmatpush2.bf16.msra.mxu0 0
        %3267 = vmatprep.subr.bf16.mxu0 0
        %3268 = vmatpush2.bf16.msra.mxu0 0
        %3269 = vmatprep.subr.bf16.mxu0 0
        %3270 = vmatpush2.bf16.msra.mxu0 0
        %3271 = vmatprep.mubr.bf16.mxu0 0
        %3272 = vmatmul.mubr.bf16.gmra.mxu0 %v3234
        %v3273 = vpop.f32.mrf.mxu0
        %v3274 = vadd.f32 0.0, %v3273
        %v3275 = vpop.f32.mrf.mxu0
        %v3276 = vpop.f32.mrf.mxu0
        %v3277 = vadd.f32 0.0, %v3276
        %v3278 = vpop.f32.mrf.mxu0
        %3279 = vmatprep.mubr.bf16.mxu0 0
        %3280 = vmatmul.mubr.bf16.gmra.mxu0 %v3237
        %v3281 = vpop.f32.mrf.mxu0
        %v3282 = vadd.f32 0.0, %v3281
        %v3283 = vpop.f32.mrf.mxu0
        %v3284 = vpop.f32.mrf.mxu0
        %v3285 = vpop.f32.mrf.mxu0
        %3286 = vdwg.mxu0
        %v3287 = vmul.f32 %v3274, %v871
        %v3288 = vmul.f32 %v3277, %v871
        %v3289 = vmul.f32 %v3282, %v871
        %v3290 = vadd.f32 %v3145, %v3287
        %v3291 = vadd.f32 %v3146, %v3288
        %v3292 = vadd.f32 %v3147, %v3289
        %3293 = vst [vmem:[#allocation3 + $0x48] sm:$0xff] %v3290
        %3294 = vst [vmem:[#allocation3 + $0x50] sm:$0xff] %v3291
        %3295 = vst [vmem:[#allocation3 + $0x58] sm:$0xff] %v3292
        %v3296 = vld [vmem:[#allocation3] sm:$0xff]
        %v3297 = vld [vmem:[#allocation3 + $0x8] sm:$0xff]
        %v3298 = vld [vmem:[#allocation3 + $0x10] sm:$0xff]
        %v3299 = vld [vmem:[#allocation3 + $0x18] sm:$0xff]
        %v3300 = vld [vmem:[#allocation3 + $0x20] sm:$0xff]
        %v3301 = vld [vmem:[#allocation3 + $0x28] sm:$0xff]
        %v3302 = vld [vmem:[#allocation3 + $0x30] sm:$0xff]
        %v3303 = vld [vmem:[#allocation3 + $0x38] sm:$0xff]
        %v3304 = vld [vmem:[#allocation3 + $0x40] sm:$0xff]
        %v3305 = vld [vmem:[#allocation3 + $0x48] sm:$0xff]
        %v3306 = vld [vmem:[#allocation3 + $0x50] sm:$0xff]
        %v3307 = vld [vmem:[#allocation3 + $0x58] sm:$0xff]
        %v3308 = vpack.c.bf16 %v3297, %v3296
        %v3309 = vpack.c.bf16 %v3299, %v3298
        %v3310 = vpack.c.bf16 %v3301, %v3300
        %v3311 = vpack.c.bf16 %v3303, %v3302
        %v3312 = vpack.c.bf16 %v3305, %v3304
        %v3313 = vpack.c.bf16 %v3307, %v3306
        %v3314 = vld [vmem:[#allocation12] sm:$0xf]
        %v3315 = vld [vmem:[#allocation12 + $0x4] sm:$0xf]
        %v3316 = vld [vmem:[#allocation12 + $0x8] sm:$0xf]
        %v3317 = vld [vmem:[#allocation12 + $0xc] sm:$0xf]
        %v3318 = vld [vmem:[#allocation12 + $0x10] sm:$0xf]
        %v3319 = vld [vmem:[#allocation12 + $0x14] sm:$0xf]
        %v3320 = vld [vmem:[#allocation12 + $0x18] sm:$0xf]
        %v3321 = vld [vmem:[#allocation12 + $0x1c] sm:$0xf]
        %v3322 = vld [vmem:[#allocation12 + $0x20] sm:$0xf]
        %v3323 = vld [vmem:[#allocation12 + $0x24] sm:$0xf]
        %v3324 = vld [vmem:[#allocation12 + $0x28] sm:$0xf]
        %v3325 = vld [vmem:[#allocation12 + $0x2c] sm:$0xf]
        %v3326 = vld [vmem:[#allocation12 + $0x30] sm:$0xf]
        %v3327 = vld [vmem:[#allocation12 + $0x34] sm:$0xf]
        %v3328 = vld [vmem:[#allocation12 + $0x38] sm:$0xf]
        %v3329 = vld [vmem:[#allocation12 + $0x3c] sm:$0xf]
        %v3330 = vld [vmem:[%s5] sm:$0x1]
        %v3332 = vlaneseq
        %v3333 = vshrl.u32 %v3332, 7
        %v3334 = vsub.s32 0, %v3333
        %v3335 = vrot.slane %v3330, %v3334
        %v3353 = vunpack.c.l.b16 %v3314
        %v3354 = vunpack.c.l.b16 %v3315
        %v3355 = vunpack.c.l.b16 %v3316
        %v3356 = vunpack.c.l.b16 %v3317
        %v3357 = vunpack.c.l.b16 %v3318
        %v3358 = vunpack.c.l.b16 %v3319
        %v3359 = vunpack.c.l.b16 %v3320
        %v3360 = vunpack.c.l.b16 %v3321
        %v3361 = vunpack.c.l.b16 %v3322
        %v3362 = vunpack.c.l.b16 %v3323
        %v3363 = vunpack.c.l.b16 %v3324
        %v3364 = vunpack.c.l.b16 %v3325
        %v3365 = vunpack.c.l.b16 %v3326
        %v3366 = vunpack.c.l.b16 %v3327
        %v3367 = vunpack.c.l.b16 %v3328
        %v3368 = vunpack.c.l.b16 %v3329
        %v3369 = vpack.c.b16 %v3354, %v3353
        %v3370 = vpack.c.b16 %v3356, %v3355
        %v3371 = vpack.c.b16 %v3358, %v3357
        %v3372 = vpack.c.b16 %v3360, %v3359
        %v3373 = vpack.c.b16 %v3362, %v3361
        %v3374 = vpack.c.b16 %v3364, %v3363
        %v3375 = vpack.c.b16 %v3366, %v3365
        %v3376 = vpack.c.b16 %v3368, %v3367
        %3385 = vmatprep.subr.bf16.mxu0 0
        %3386 = vmatpush1.bf16.msra.mxu0 %v3376
        %3387 = vmatprep.subr.bf16.mxu0 0
        %3388 = vmatpush1.bf16.msra.mxu0 %v3375
        %3389 = vmatprep.subr.bf16.mxu0 0
        %3390 = vmatpush1.bf16.msra.mxu0 %v3374
        %3391 = vmatprep.subr.bf16.mxu0 0
        %3392 = vmatpush1.bf16.msra.mxu0 %v3373
        %3393 = vmatprep.subr.bf16.mxu0 0
        %3394 = vmatpush1.bf16.msra.mxu0 %v3372
        %3395 = vmatprep.subr.bf16.mxu0 0
        %3396 = vmatpush1.bf16.msra.mxu0 %v3371
        %3397 = vmatprep.subr.bf16.mxu0 0
        %3398 = vmatpush1.bf16.msra.mxu0 %v3370
        %3399 = vmatprep.subr.bf16.mxu0 0
        %3400 = vmatpush1.bf16.msra.mxu0 %v3369
        %3401 = vmatprep.subr.bf16.mxu0 0
        %3402 = vmatpush2.bf16.msra.mxu0 0
        %3403 = vmatprep.subr.bf16.mxu0 0
        %3404 = vmatpush2.bf16.msra.mxu0 0
        %3405 = vmatprep.subr.bf16.mxu0 0
        %3406 = vmatpush2.bf16.msra.mxu0 0
        %3407 = vmatprep.subr.bf16.mxu0 0
        %3408 = vmatpush2.bf16.msra.mxu0 0
        %3409 = vmatprep.subr.bf16.mxu0 0
        %3410 = vmatpush2.bf16.msra.mxu0 0
        %3411 = vmatprep.subr.bf16.mxu0 0
        %3412 = vmatpush2.bf16.msra.mxu0 0
        %3413 = vmatprep.subr.bf16.mxu0 0
        %3414 = vmatpush2.bf16.msra.mxu0 0
        %3415 = vmatprep.subr.bf16.mxu0 0
        %3416 = vmatpush2.bf16.msra.mxu0 0
        %3417 = vmatprep.mubr.bf16.mxu0 0
        %3418 = vmatmul.mubr.bf16.gmra.mxu0 %v3308
        %v3419 = vpop.f32.mrf.mxu0
        %v3420 = vadd.f32 %v3335, %v3419
        %v3421 = vpop.f32.mrf.mxu0
        %v3422 = vpop.f32.mrf.mxu0
        %v3423 = vadd.f32 %v3335, %v3422
        %v3424 = vpop.f32.mrf.mxu0
        %3425 = vmatprep.mubr.bf16.mxu0 0
        %3426 = vmatmul.mubr.bf16.gmra.mxu0 %v3309
        %v3427 = vpop.f32.mrf.mxu0
        %v3428 = vadd.f32 %v3335, %v3427
        %v3429 = vpop.f32.mrf.mxu0
        %v3430 = vpop.f32.mrf.mxu0
        %v3431 = vadd.f32 %v3335, %v3430
        %v3432 = vpop.f32.mrf.mxu0
        %3433 = vmatprep.mubr.bf16.mxu0 0
        %3434 = vmatmul.mubr.bf16.gmra.mxu0 %v3310
        %v3435 = vpop.f32.mrf.mxu0
        %v3436 = vadd.f32 %v3335, %v3435
        %v3437 = vpop.f32.mrf.mxu0
        %v3438 = vpop.f32.mrf.mxu0
        %v3439 = vadd.f32 %v3335, %v3438
        %v3440 = vpop.f32.mrf.mxu0
        %3441 = vmatprep.mubr.bf16.mxu0 0
        %3442 = vmatmul.mubr.bf16.gmra.mxu0 %v3311
        %v3443 = vpop.f32.mrf.mxu0
        %v3444 = vadd.f32 %v3335, %v3443
        %v3445 = vpop.f32.mrf.mxu0
        %v3446 = vpop.f32.mrf.mxu0
        %v3447 = vadd.f32 %v3335, %v3446
        %v3448 = vpop.f32.mrf.mxu0
        %3449 = vmatprep.mubr.bf16.mxu0 0
        %3450 = vmatmul.mubr.bf16.gmra.mxu0 %v3312
        %v3451 = vpop.f32.mrf.mxu0
        %v3452 = vadd.f32 %v3335, %v3451
        %v3453 = vpop.f32.mrf.mxu0
        %v3454 = vpop.f32.mrf.mxu0
        %v3455 = vadd.f32 %v3335, %v3454
        %v3456 = vpop.f32.mrf.mxu0
        %3457 = vmatprep.mubr.bf16.mxu0 0
        %3458 = vmatmul.mubr.bf16.gmra.mxu0 %v3313
        %v3459 = vpop.f32.mrf.mxu0
        %v3460 = vadd.f32 %v3335, %v3459
        %v3461 = vpop.f32.mrf.mxu0
        %v3462 = vpop.f32.mrf.mxu0
        %v3463 = vadd.f32 %v3335, %v3462
        %v3464 = vpop.f32.mrf.mxu0
        %3465 = vdwg.mxu0
        %3466 = vst [vmem:[%s327] sm:$0xff] %v3420
        %3467 = vst [vmem:[%s327 + $0x8] sm:$0xff] %v3423
        %3468 = vst [vmem:[%s327 + $0x10] sm:$0xff] %v3428
        %3469 = vst [vmem:[%s327 + $0x18] sm:$0xff] %v3431
        %3470 = vst [vmem:[%s327 + $0x20] sm:$0xff] %v3436
        %3471 = vst [vmem:[%s327 + $0x28] sm:$0xff] %v3439
        %3472 = vst [vmem:[%s327 + $0x30] sm:$0xff] %v3444
        %3473 = vst [vmem:[%s327 + $0x38] sm:$0xff] %v3447
        %3474 = vst [vmem:[%s327 + $0x40] sm:$0xff] %v3452
        %3475 = vst [vmem:[%s327 + $0x48] sm:$0xff] %v3455
        %3476 = vst [vmem:[%s327 + $0x50] sm:$0xff] %v3460
        %3477 = vst [vmem:[%s327 + $0x58] sm:$0xff] %v3463
        %s3478 = sand.u32 %s164, 1
        %s3479 = scalar_lea.sflag [#allocation6], %s3478
        %s3480 = sand.u32 %s164, 1
        %s3481 = smul.addr %s3480, 96
        %s3482 = scalar_lea.vmem [#allocation13], %s3481
        // Predicated region
        $region65: #{tpu_custom_call.1} parent=43 // pred_check
          %p3483 = pneg %p174
        $region66: #{tpu_custom_call.1} parent=43 // pred_check_branch
          %3485 = sbr.rel (%p3483) target = $region68
        $region67: #{tpu_custom_call.1} parent=43 // pred_region
          %s3486 = smul.u32 12, %s25
          %s3488 = ssub.s32 1536, 1536
          %3489 = vsyncadd %s3479, %s3488
          %s3490 = smul.addr %s3486, 128
          %s3491 = scalar_lea.hbm %s6, %s3490
          %s3492 = sshll.u32 %s3482, 4
          %s3493 = int_to_ptr.vmem [resolvable:$true] %s3492
          %3498 = dma.vmem_to_hbm [thread:$0]  %s3493, 1536, %s3491, %s3479, 128, 128, 8
        $region68: #{tpu_custom_call.1} parent=43 // pred_fallthru
          _
      $region44: #{tpu_custom_call.1} parent=5 // pred_fallthru
        _
      %p3499 = scmp.le.s32.totalorder 2, %s20
      // Predicated region
      $region69: #{tpu_custom_call.1} parent=5 // pred_check
        %p3500 = pneg %p3499
      $region70: #{tpu_custom_call.1} parent=5 // pred_check_branch
        %3502 = sbr.rel (%p3500) target = $region72
      $region71: #{tpu_custom_call.1} parent=5 // pred_region
        %s3503 = ssub.s32 %s20, 2
        // Predicated region
        $region73: #{tpu_custom_call.1} parent=71 // pred_check
          %p3504 = pneg %p180
        $region74: #{tpu_custom_call.1} parent=71 // pred_check_branch
          %3506 = sbr.rel (%p3504) target = $region76
        $region75: #{tpu_custom_call.1} parent=71 // pred_region
          %s3507 = sand.u32 %s165, 1
          %s3508 = scalar_lea.sflag [#allocation6], %s3507
          %s3509 = sand.u32 %s165, 1
          %s3510 = smul.addr %s3509, 96
          %s3511 = scalar_lea.vmem [#allocation13], %s3510
          %3512 = dma.done %s3508, 1536
        $region76: #{tpu_custom_call.1} parent=71 // pred_fallthru
          _
      $region72: #{tpu_custom_call.1} parent=5 // pred_fallthru
        _
    $region6: #{tpu_custom_call.1} parent=1 // loop_footer
      %s24 = sadd.s32 1, %s20
    $region7: #{tpu_custom_call.1} parent=1 // loop_footer_branch
      %19 = sbr.rel target = $region3
    $region8: #{tpu_custom_call.1} parent=1 // loop_exit
      _
    %3513 = vsyncpa [#allocation5], 1
    %s3514 = scalar_lea.sflag [#allocation5], 1
    %3515 = vsyncpa %s3514, 1
    %3516 = vsyncpa [#allocation8], 1
    %3517 = vsyncpa [#allocation11], 1
    %3518 = vsyncpa [#allocation6], 1
    %s3519 = scalar_lea.sflag [#allocation6], 1
    %3520 = vsyncpa %s3519, 1

</llo_original>
